<compile_context>
chip_gen: v7x
topology: tpu7x:2x2x1
jax: 0.10.0
libtpu: 0.0.40
codegen_flags: <defaults>
</compile_context>

<pallas_src>
import functools

import jax
import jax.numpy as jnp
from jax.experimental import pallas as pl
from jax.experimental.pallas import tpu as pltpu


# ----------------------------- fused level kernel ---------------------------

def _level_head_kernel(x_ref, gx_ref, gy_ref,
                       stem_w, stem_s, stem_b,
                       conv1_w, conv1_s, conv1_b,
                       conv2_w, conv2_s, conv2_b,
                       pred_w, pred_b,
                       o_ref, *, H, W, stride, n_reg):
    HW = H * W
    x = x_ref[0]                                     # (HW, Cin)

    # ---- stem: 1x1 conv + folded BN + SiLU ---------------------------------
    y = jnp.dot(x, stem_w[...], preferred_element_type=jnp.float32)
    y = y * stem_s[...] + stem_b[...]
    feat = y * jax.nn.sigmoid(y)                     # (HW, hid)

    # pixel x-coordinate (float, exact small ints) for 3x3 edge masks / decode
    gx = gx_ref[...]                                 # (HW, 1)
    gy = gy_ref[...]                                 # (HW, 1)
    left_ok = gx >= 1.0                              # neighbor at dx = -1 valid
    right_ok = gx < float(W - 1)                     # neighbor at dx = +1 valid

    P = W + 1                                        # flat halo size

    def conv3x3_silu(f, w_ref, s_ref, b_ref):
        # f: (HW, cin); w_ref: (9, cin, cout); folded BN + SiLU.
        cin = f.shape[1]
        cout = w_ref.shape[2]
        pad = jnp.zeros((P, cin), jnp.float32)
        fp = jnp.concatenate([pad, f, pad], axis=0)  # (HW + 2P, cin)
        acc = jnp.zeros((HW, cout), jnp.float32)
        for dy in range(3):                          # 9 full-tile matmuls
            for dx in range(3):
                ox = dx - 1
                s = (dy - 1) * W + ox
                slab = fp[P + s:P + s + HW, :]       # shifted view (zeros off-edge)
                if ox == -1:
                    slab = jnp.where(left_ok, slab, 0.0)
                elif ox == 1:
                    slab = jnp.where(right_ok, slab, 0.0)
                acc = acc + jnp.dot(slab, w_ref[dy * 3 + dx],
                                    preferred_element_type=jnp.float32)
        z = acc * s_ref[...] + b_ref[...]
        return z * jax.nn.sigmoid(z)

    # ---- merged cls/reg 3x3 convs (lanes 0:hid = cls, hid:2hid = reg) ------
    both1 = conv3x3_silu(feat, conv1_w, conv1_s, conv1_b)     # (HW, 2*hid)
    both2 = conv3x3_silu(both1, conv2_w, conv2_s, conv2_b)    # (HW, 2*hid)

    # ---- fused prediction heads: [reg(26), obj(1), cls(nc)] ----------------
    out = jnp.dot(both2, pred_w[...],
                  preferred_element_type=jnp.float32) + pred_b[...]

    # ---- inference-time sigmoid + decode_outputs ---------------------------
    n_ch = out.shape[1]
    ch = jax.lax.broadcasted_iota(jnp.int32, (HW, n_ch), 1)
    grid_val = jnp.where(ch == 0, gx, gy)            # x for ch 0, y for ch 1
    xy = (out + grid_val) * stride                   # ch 0:2
    wh = jnp.exp(out) * stride                       # ch 2:26
    sig = jax.nn.sigmoid(out)                        # ch 26:   (obj, cls)
    o_ref[0] = jnp.where(ch < 2, xy, jnp.where(ch < n_reg, wh, sig))


def _rep0(ndim):
    if ndim == 2:
        return lambda b: (0, 0)
    if ndim == 3:
        return lambda b: (0, 0, 0)
    raise ValueError(ndim)


# ----------------------------- parameters -----------------------------------

def init_params(key, num_classes, width, in_channels):
    hidden = int(256 * width)
    keys = iter(jax.random.split(key, 256))

    def nk():
        return next(keys)

    def base_conv(cin, cout, ksize):
        if ksize == 1:
            w = 0.05 * jax.random.normal(nk(), (cin, cout), jnp.float32)
        else:
            w = 0.05 * jax.random.normal(nk(), (9, cin, cout), jnp.float32)
        gamma = 1.0 + 0.1 * jax.random.normal(nk(), (cout,), jnp.float32)
        beta = 0.1 * jax.random.normal(nk(), (cout,), jnp.float32)
        mean = 0.1 * jax.random.normal(nk(), (cout,), jnp.float32)
        var = 0.5 + 0.1 * jnp.abs(jax.random.normal(nk(), (cout,), jnp.float32))
        scale = gamma / jnp.sqrt(var + 1e-3)          # fold BN (eps=1e-3)
        bias = beta - mean * scale
        return (w, scale.reshape(1, cout), bias.reshape(1, cout))

    def pred(cin, cout):
        w = 0.05 * jax.random.normal(nk(), (cin, cout), jnp.float32)
        b = 0.1 * jax.random.normal(nk(), (cout,), jnp.float32)
        return (w, b.reshape(1, cout))

    levels = []
    for cin_full in in_channels:
        cin = int(cin_full * width)
        levels.append(dict(
            stem=base_conv(cin, hidden, 1),
            cls_convs=[base_conv(hidden, hidden, 3), base_conv(hidden, hidden, 3)],
            reg_convs=[base_conv(hidden, hidden, 3), base_conv(hidden, hidden, 3)],
            cls_pred=pred(hidden, num_classes),
            reg_pred=pred(hidden, 26),
            obj_pred=pred(hidden, 1),
        ))
    return dict(levels=levels)


def pack_level(p, num_classes):
    """Merge the per-branch weights of one level into the fused kernel layout."""
    hid = p["stem"][0].shape[1]
    stem_w, stem_s, stem_b = p["stem"]

    # conv stage 1: cls/reg concatenated along Cout -> (9, hid, 2*hid)
    cw1, cs1, cb1 = p["cls_convs"][0]
    rw1, rs1, rb1 = p["reg_convs"][0]
    conv1_w = jnp.concatenate([cw1, rw1], axis=2)
    conv1_s = jnp.concatenate([cs1, rs1], axis=1)
    conv1_b = jnp.concatenate([cb1, rb1], axis=1)

    # conv stage 2: block-diagonal (cls lanes stay cls, reg lanes stay reg)
    cw2, cs2, cb2 = p["cls_convs"][1]
    rw2, rs2, rb2 = p["reg_convs"][1]
    z = jnp.zeros((9, hid, hid), jnp.float32)
    conv2_w = jnp.concatenate(
        [jnp.concatenate([cw2, z], axis=2),
         jnp.concatenate([z, rw2], axis=2)], axis=1)          # (9, 2*hid, 2*hid)
    conv2_s = jnp.concatenate([cs2, rs2], axis=1)
    conv2_b = jnp.concatenate([cb2, rb2], axis=1)

    # fused prediction matmul: rows 0:hid read cls_feat, rows hid: read reg_feat
    cls_w, cls_b = p["cls_pred"]                               # (hid, nc)
    reg_w, reg_b = p["reg_pred"]                               # (hid, 26)
    obj_w, obj_b = p["obj_pred"]                               # (hid, 1)
    top = jnp.concatenate([jnp.zeros((hid, 27), jnp.float32), cls_w], axis=1)
    bot = jnp.concatenate([reg_w, obj_w,
                           jnp.zeros((hid, num_classes), jnp.float32)], axis=1)
    pred_w = jnp.concatenate([top, bot], axis=0)               # (2*hid, 27+nc)
    pred_b = jnp.concatenate([reg_b, obj_b, cls_b], axis=1)    # (1, 27+nc)

    return (stem_w, stem_s, stem_b,
            conv1_w, conv1_s, conv1_b,
            conv2_w, conv2_s, conv2_b,
            pred_w, pred_b)


# ----------------------------- forward (Pallas) ------------------------------

def yolox_head_forward(params, xin_nchw, strides, num_classes):
    n_out = 27 + num_classes
    level_outs = []
    for k, x_nchw in enumerate(xin_nchw):
        p = params["levels"][k]
        B, Cin, H, W = x_nchw.shape
        HW = H * W
        x = jnp.transpose(x_nchw, (0, 2, 3, 1)).reshape(B, HW, Cin)
        x = x.astype(jnp.float32)

        # per-pixel grid coordinates (tiny constants, consumed in-kernel)
        ys, xs = jnp.meshgrid(jnp.arange(H, dtype=jnp.float32),
                              jnp.arange(W, dtype=jnp.float32), indexing="ij")
        gx_arr = xs.reshape(HW, 1)
        gy_arr = ys.reshape(HW, 1)

        args = pack_level(p, num_classes)
        in_specs = [pl.BlockSpec((1, HW, Cin), lambda b: (b, 0, 0)),
                    pl.BlockSpec((HW, 1), lambda b: (0, 0)),
                    pl.BlockSpec((HW, 1), lambda b: (0, 0))]
        in_specs += [pl.BlockSpec(a.shape, _rep0(a.ndim)) for a in args]

        kern = functools.partial(_level_head_kernel, H=H, W=W,
                                 stride=float(strides[k]), n_reg=26)
        out = pl.pallas_call(
            kern,
            out_shape=jax.ShapeDtypeStruct((B, HW, n_out), jnp.float32),
            grid=(B,),
            in_specs=in_specs,
            out_specs=pl.BlockSpec((1, HW, n_out), lambda b: (b, 0, 0)),
            compiler_params=pltpu.CompilerParams(
                dimension_semantics=("parallel",)),
        )(x, gx_arr, gy_arr, *args)
        level_outs.append(out)

    return jnp.concatenate(level_outs, axis=1)        # (B, A, 27 + num_classes)


# ----------------------------- pure-JAX reference ----------------------------

def ref_forward(params, xin_nchw, strides):
    def _silu(v):
        return v * jax.nn.sigmoid(v)

    def base1(xf, wsb):
        w, s, b = wsb
        return _silu(xf @ w * s + b)

    def base3(xh, wsb):
        w9, s, b = wsb
        Bx, Hx, Wx, _ = xh.shape
        xp = jnp.pad(xh, ((0, 0), (1, 1), (1, 1), (0, 0)))
        acc = jnp.zeros((Bx, Hx, Wx, w9.shape[2]), jnp.float32)
        for dy in range(3):
            for dx in range(3):
                acc = acc + jnp.einsum("bhwc,cd->bhwd",
                                       xp[:, dy:dy + Hx, dx:dx + Wx, :],
                                       w9[dy * 3 + dx])
        return _silu(acc * s + b)

    outputs, hw = [], []
    for k, x_nchw in enumerate(xin_nchw):
        p = params["levels"][k]
        x = jnp.transpose(x_nchw, (0, 2, 3, 1)).astype(jnp.float32)
        B, H, W, Cin = x.shape
        hw.append((H, W))
        feat = base1(x.reshape(B, H * W, Cin), p["stem"]).reshape(B, H, W, -1)
        hd = feat.shape[-1]
        cls_feat = feat
        for wsb in p["cls_convs"]:
            cls_feat = base3(cls_feat, wsb)
        reg_feat = feat
        for wsb in p["reg_convs"]:
            reg_feat = base3(reg_feat, wsb)
        cls_feat = cls_feat.reshape(B, H * W, hd)
        reg_feat = reg_feat.reshape(B, H * W, hd)
        cls_o = jax.nn.sigmoid(cls_feat @ p["cls_pred"][0] + p["cls_pred"][1])
        reg_o = reg_feat @ p["reg_pred"][0] + p["reg_pred"][1]
        obj_o = jax.nn.sigmoid(reg_feat @ p["obj_pred"][0] + p["obj_pred"][1])
        outputs.append(jnp.concatenate([reg_o, obj_o, cls_o], axis=-1))
    out = jnp.concatenate(outputs, axis=1)

    grids, svec = [], []
    for (h, w), s in zip(hw, strides):
        yv, xv = jnp.meshgrid(jnp.arange(h), jnp.arange(w), indexing="ij")
        g = jnp.stack((xv, yv), axis=2).reshape(1, -1, 2).astype(jnp.float32)
        grids.append(g)
        svec.append(jnp.full((1, g.shape[1], 1), float(s), jnp.float32))
    grid_all = jnp.concatenate(grids, axis=1)
    stride_all = jnp.concatenate(svec, axis=1)
    xy = (out[..., :2] + grid_all) * stride_all
    rest = jnp.exp(out[..., 2:26]) * stride_all
    return jnp.concatenate([xy, rest, out[..., 26:]], axis=-1)


# ----------------------------- main ------------------------------------------

if __name__ == "__main__":
    num_classes = 5                 # output channels = 27 + num_classes = 32
    width = 0.0625                  # hidden = int(256 * width) = 16
    strides = [8, 16, 32]
    in_channels = [256, 512, 1024]  # scaled -> [16, 32, 64]
    B, img = 2, 64                  # feature maps: 8x8, 4x4, 2x2

    key = jax.random.PRNGKey(0)
    kp, kx = jax.random.split(key)
    params = init_params(kp, num_classes, width, in_channels)

    xin = []
    xkeys = jax.random.split(kx, len(strides))
    for i, s in enumerate(strides):
        c = int(in_channels[i] * width)
        h = img // s
        xin.append(jax.random.normal(xkeys[i], (B, c, h, h), jnp.float32))

    out = yolox_head_forward(params, xin, strides, num_classes)
    out = jax.block_until_ready(out)

    A = sum((img // s) ** 2 for s in strides)
    assert out.shape == (B, A, 27 + num_classes), out.shape

    ref = ref_forward(params, xin, strides)
    err = float(jnp.max(jnp.abs(out - ref)))
    assert bool(jnp.allclose(out, ref, atol=1e-2, rtol=1e-2)), err

    print("KERNEL_OK")
</pallas_src>

<mosaic_0001>
module attributes {stable_mosaic.version = 11 : i64} {
  func.func @_level_head_kernel(%arg0: i32, %arg1: memref<1x64x16xf32, #tpu.memory_space<vmem>>, %arg2: memref<64x1xf32, #tpu.memory_space<vmem>>, %arg3: memref<64x1xf32, #tpu.memory_space<vmem>>, %arg4: memref<16x16xf32, #tpu.memory_space<vmem>>, %arg5: memref<1x16xf32, #tpu.memory_space<vmem>>, %arg6: memref<1x16xf32, #tpu.memory_space<vmem>>, %arg7: memref<9x16x32xf32, #tpu.memory_space<vmem>>, %arg8: memref<1x32xf32, #tpu.memory_space<vmem>>, %arg9: memref<1x32xf32, #tpu.memory_space<vmem>>, %arg10: memref<9x32x32xf32, #tpu.memory_space<vmem>>, %arg11: memref<1x32xf32, #tpu.memory_space<vmem>>, %arg12: memref<1x32xf32, #tpu.memory_space<vmem>>, %arg13: memref<32x32xf32, #tpu.memory_space<vmem>>, %arg14: memref<1x32xf32, #tpu.memory_space<vmem>>, %arg15: memref<1x64x32xf32, #tpu.memory_space<vmem>>) attributes {dimension_semantics = [#tpu.dimension_semantics<parallel>], iteration_bounds = array<i64: 2>, scalar_prefetch = 0 : i64, scratch_operands = 0 : i64, tpu.core_type = #tpu.core_type<tc>, window_params = [{transform_indices = @transform_0, window_bounds = array<i64: 1, 64, 16>}, {pipeline_mode = #tpu.pipeline_mode<synchronous>, transform_indices = @transform_1, window_bounds = array<i64: 64, 1>}, {pipeline_mode = #tpu.pipeline_mode<synchronous>, transform_indices = @transform_2, window_bounds = array<i64: 64, 1>}, {pipeline_mode = #tpu.pipeline_mode<synchronous>, transform_indices = @transform_3, window_bounds = array<i64: 16, 16>}, {pipeline_mode = #tpu.pipeline_mode<synchronous>, transform_indices = @transform_4, window_bounds = array<i64: 1, 16>}, {pipeline_mode = #tpu.pipeline_mode<synchronous>, transform_indices = @transform_5, window_bounds = array<i64: 1, 16>}, {pipeline_mode = #tpu.pipeline_mode<synchronous>, transform_indices = @transform_6, window_bounds = array<i64: 9, 16, 32>}, {pipeline_mode = #tpu.pipeline_mode<synchronous>, transform_indices = @transform_7, window_bounds = array<i64: 1, 32>}, {pipeline_mode = #tpu.pipeline_mode<synchronous>, transform_indices = @transform_8, window_bounds = array<i64: 1, 32>}, {pipeline_mode = #tpu.pipeline_mode<synchronous>, transform_indices = @transform_9, window_bounds = array<i64: 9, 32, 32>}, {pipeline_mode = #tpu.pipeline_mode<synchronous>, transform_indices = @transform_10, window_bounds = array<i64: 1, 32>}, {pipeline_mode = #tpu.pipeline_mode<synchronous>, transform_indices = @transform_11, window_bounds = array<i64: 1, 32>}, {pipeline_mode = #tpu.pipeline_mode<synchronous>, transform_indices = @transform_12, window_bounds = array<i64: 32, 32>}, {pipeline_mode = #tpu.pipeline_mode<synchronous>, transform_indices = @transform_13, window_bounds = array<i64: 1, 32>}, {transform_indices = @transform_14, window_bounds = array<i64: 1, 64, 32>}]} {
    %c0 = arith.constant 0 : index
    %c0_0 = arith.constant 0 : index
    %c0_1 = arith.constant 0 : index
    %0 = vector.load %arg1[%c0, %c0_0, %c0_1] : memref<1x64x16xf32, #tpu.memory_space<vmem>>, vector<1x64x16xf32>
    %1 = vector.shape_cast %0 : vector<1x64x16xf32> to vector<64x16xf32>
    %c0_2 = arith.constant 0 : index
    %c0_3 = arith.constant 0 : index
    %2 = vector.load %arg4[%c0_2, %c0_3] : memref<16x16xf32, #tpu.memory_space<vmem>>, vector<16x16xf32>
    %cst = arith.constant dense<0.000000e+00> : vector<64x16xf32>
    %3 = tpu.matmul %1, %2, %cst {dimension_numbers = #tpu.dot_dimension_numbers<[1], [0], [0], [1], [0, 0, 1, 1], [], []>} : vector<64x16xf32>, vector<16x16xf32>, vector<64x16xf32> -> vector<64x16xf32>
    %c0_4 = arith.constant 0 : index
    %c0_5 = arith.constant 0 : index
    %4 = vector.load %arg5[%c0_4, %c0_5] : memref<1x16xf32, #tpu.memory_space<vmem>>, vector<1x16xf32>
    %5 = vector.broadcast %4 : vector<1x16xf32> to vector<64x16xf32>
    %6 = arith.mulf %3, %5 : vector<64x16xf32>
    %c0_6 = arith.constant 0 : index
    %c0_7 = arith.constant 0 : index
    %7 = vector.load %arg6[%c0_6, %c0_7] : memref<1x16xf32, #tpu.memory_space<vmem>>, vector<1x16xf32>
    %8 = vector.broadcast %7 : vector<1x16xf32> to vector<64x16xf32>
    %9 = arith.addf %6, %8 : vector<64x16xf32>
    %10 = arith.negf %9 : vector<64x16xf32>
    %11 = math.exp %10 : vector<64x16xf32>
    %cst_8 = arith.constant 1.000000e+00 : f32
    %12 = vector.broadcast %cst_8 : f32 to vector<64x16xf32>
    %13 = arith.addf %12, %11 : vector<64x16xf32>
    %14 = arith.divf %12, %13 : vector<64x16xf32>
    %15 = arith.mulf %9, %14 : vector<64x16xf32>
    %c0_9 = arith.constant 0 : index
    %c0_10 = arith.constant 0 : index
    %16 = vector.load %arg2[%c0_9, %c0_10] : memref<64x1xf32, #tpu.memory_space<vmem>>, vector<64x1xf32>
    %c0_11 = arith.constant 0 : index
    %c0_12 = arith.constant 0 : index
    %17 = vector.load %arg3[%c0_11, %c0_12] : memref<64x1xf32, #tpu.memory_space<vmem>>, vector<64x1xf32>
    %cst_13 = arith.constant 1.000000e+00 : f32
    %18 = vector.broadcast %cst_13 : f32 to vector<64x1xf32>
    %19 = arith.cmpf oge, %16, %18 : vector<64x1xf32>
    %cst_14 = arith.constant 7.000000e+00 : f32
    %20 = vector.broadcast %cst_14 : f32 to vector<64x1xf32>
    %21 = arith.cmpf olt, %16, %20 : vector<64x1xf32>
    %cst_15 = arith.constant 0.000000e+00 : f32
    %22 = vector.broadcast %cst_15 : f32 to vector<9x16xf32>
    %23 = tpu.concatenate %22, %15, %22 in 0 : vector<9x16xf32>, vector<64x16xf32>, vector<9x16xf32> -> vector<82x16xf32>
    %cst_16 = arith.constant 0.000000e+00 : f32
    %24 = vector.broadcast %cst_16 : f32 to vector<64x32xf32>
    %25 = vector.extract_strided_slice %23 {offsets = [0, 0], sizes = [64, 16], strides = [1, 1]} : vector<82x16xf32> to vector<64x16xf32>
    %cst_17 = arith.constant 0.000000e+00 : f32
    %26 = vector.shape_cast %19 : vector<64x1xi1> to vector<64x1xi1>
    %27 = vector.broadcast %26 : vector<64x1xi1> to vector<64x16xi1>
    %28 = vector.broadcast %cst_17 : f32 to vector<64x16xf32>
    %29 = arith.select %27, %25, %28 : vector<64x16xi1>, vector<64x16xf32>
    %c0_18 = arith.constant 0 : index
    %c0_19 = arith.constant 0 : index
    %c0_20 = arith.constant 0 : index
    %30 = vector.load %arg7[%c0_18, %c0_19, %c0_20] : memref<9x16x32xf32, #tpu.memory_space<vmem>>, vector<1x16x32xf32>
    %31 = vector.shape_cast %30 : vector<1x16x32xf32> to vector<16x32xf32>
    %cst_21 = arith.constant dense<0.000000e+00> : vector<64x32xf32>
    %32 = tpu.matmul %29, %31, %cst_21 {dimension_numbers = #tpu.dot_dimension_numbers<[1], [0], [0], [1], [0, 0, 1, 1], [], []>} : vector<64x16xf32>, vector<16x32xf32>, vector<64x32xf32> -> vector<64x32xf32>
    %33 = arith.addf %24, %32 : vector<64x32xf32>
    %34 = vector.extract_strided_slice %23 {offsets = [1, 0], sizes = [64, 16], strides = [1, 1]} : vector<82x16xf32> to vector<64x16xf32>
    %c1 = arith.constant 1 : index
    %c0_22 = arith.constant 0 : index
    %c0_23 = arith.constant 0 : index
    %35 = vector.load %arg7[%c1, %c0_22, %c0_23] : memref<9x16x32xf32, #tpu.memory_space<vmem>>, vector<1x16x32xf32>
    %36 = vector.shape_cast %35 : vector<1x16x32xf32> to vector<16x32xf32>
    %cst_24 = arith.constant dense<0.000000e+00> : vector<64x32xf32>
    %37 = tpu.matmul %34, %36, %cst_24 {dimension_numbers = #tpu.dot_dimension_numbers<[1], [0], [0], [1], [0, 0, 1, 1], [], []>} : vector<64x16xf32>, vector<16x32xf32>, vector<64x32xf32> -> vector<64x32xf32>
    %38 = arith.addf %33, %37 : vector<64x32xf32>
    %39 = vector.extract_strided_slice %23 {offsets = [2, 0], sizes = [64, 16], strides = [1, 1]} : vector<82x16xf32> to vector<64x16xf32>
    %cst_25 = arith.constant 0.000000e+00 : f32
    %40 = vector.shape_cast %21 : vector<64x1xi1> to vector<64x1xi1>
    %41 = vector.broadcast %40 : vector<64x1xi1> to vector<64x16xi1>
    %42 = vector.broadcast %cst_25 : f32 to vector<64x16xf32>
    %43 = arith.select %41, %39, %42 : vector<64x16xi1>, vector<64x16xf32>
    %c2 = arith.constant 2 : index
    %c0_26 = arith.constant 0 : index
    %c0_27 = arith.constant 0 : index
    %44 = vector.load %arg7[%c2, %c0_26, %c0_27] : memref<9x16x32xf32, #tpu.memory_space<vmem>>, vector<1x16x32xf32>
    %45 = vector.shape_cast %44 : vector<1x16x32xf32> to vector<16x32xf32>
    %cst_28 = arith.constant dense<0.000000e+00> : vector<64x32xf32>
    %46 = tpu.matmul %43, %45, %cst_28 {dimension_numbers = #tpu.dot_dimension_numbers<[1], [0], [0], [1], [0, 0, 1, 1], [], []>} : vector<64x16xf32>, vector<16x32xf32>, vector<64x32xf32> -> vector<64x32xf32>
    %47 = arith.addf %38, %46 : vector<64x32xf32>
    %48 = vector.extract_strided_slice %23 {offsets = [8, 0], sizes = [64, 16], strides = [1, 1]} : vector<82x16xf32> to vector<64x16xf32>
    %cst_29 = arith.constant 0.000000e+00 : f32
    %49 = vector.shape_cast %19 : vector<64x1xi1> to vector<64x1xi1>
    %50 = vector.broadcast %49 : vector<64x1xi1> to vector<64x16xi1>
    %51 = vector.broadcast %cst_29 : f32 to vector<64x16xf32>
    %52 = arith.select %50, %48, %51 : vector<64x16xi1>, vector<64x16xf32>
    %c3 = arith.constant 3 : index
    %c0_30 = arith.constant 0 : index
    %c0_31 = arith.constant 0 : index
    %53 = vector.load %arg7[%c3, %c0_30, %c0_31] : memref<9x16x32xf32, #tpu.memory_space<vmem>>, vector<1x16x32xf32>
    %54 = vector.shape_cast %53 : vector<1x16x32xf32> to vector<16x32xf32>
    %cst_32 = arith.constant dense<0.000000e+00> : vector<64x32xf32>
    %55 = tpu.matmul %52, %54, %cst_32 {dimension_numbers = #tpu.dot_dimension_numbers<[1], [0], [0], [1], [0, 0, 1, 1], [], []>} : vector<64x16xf32>, vector<16x32xf32>, vector<64x32xf32> -> vector<64x32xf32>
    %56 = arith.addf %47, %55 : vector<64x32xf32>
    %57 = vector.extract_strided_slice %23 {offsets = [9, 0], sizes = [64, 16], strides = [1, 1]} : vector<82x16xf32> to vector<64x16xf32>
    %c4 = arith.constant 4 : index
    %c0_33 = arith.constant 0 : index
    %c0_34 = arith.constant 0 : index
    %58 = vector.load %arg7[%c4, %c0_33, %c0_34] : memref<9x16x32xf32, #tpu.memory_space<vmem>>, vector<1x16x32xf32>
    %59 = vector.shape_cast %58 : vector<1x16x32xf32> to vector<16x32xf32>
    %cst_35 = arith.constant dense<0.000000e+00> : vector<64x32xf32>
    %60 = tpu.matmul %57, %59, %cst_35 {dimension_numbers = #tpu.dot_dimension_numbers<[1], [0], [0], [1], [0, 0, 1, 1], [], []>} : vector<64x16xf32>, vector<16x32xf32>, vector<64x32xf32> -> vector<64x32xf32>
    %61 = arith.addf %56, %60 : vector<64x32xf32>
    %62 = vector.extract_strided_slice %23 {offsets = [10, 0], sizes = [64, 16], strides = [1, 1]} : vector<82x16xf32> to vector<64x16xf32>
    %cst_36 = arith.constant 0.000000e+00 : f32
    %63 = vector.shape_cast %21 : vector<64x1xi1> to vector<64x1xi1>
    %64 = vector.broadcast %63 : vector<64x1xi1> to vector<64x16xi1>
    %65 = vector.broadcast %cst_36 : f32 to vector<64x16xf32>
    %66 = arith.select %64, %62, %65 : vector<64x16xi1>, vector<64x16xf32>
    %c5 = arith.constant 5 : index
    %c0_37 = arith.constant 0 : index
    %c0_38 = arith.constant 0 : index
    %67 = vector.load %arg7[%c5, %c0_37, %c0_38] : memref<9x16x32xf32, #tpu.memory_space<vmem>>, vector<1x16x32xf32>
    %68 = vector.shape_cast %67 : vector<1x16x32xf32> to vector<16x32xf32>
    %cst_39 = arith.constant dense<0.000000e+00> : vector<64x32xf32>
    %69 = tpu.matmul %66, %68, %cst_39 {dimension_numbers = #tpu.dot_dimension_numbers<[1], [0], [0], [1], [0, 0, 1, 1], [], []>} : vector<64x16xf32>, vector<16x32xf32>, vector<64x32xf32> -> vector<64x32xf32>
    %70 = arith.addf %61, %69 : vector<64x32xf32>
    %71 = vector.extract_strided_slice %23 {offsets = [16, 0], sizes = [64, 16], strides = [1, 1]} : vector<82x16xf32> to vector<64x16xf32>
    %cst_40 = arith.constant 0.000000e+00 : f32
    %72 = vector.shape_cast %19 : vector<64x1xi1> to vector<64x1xi1>
    %73 = vector.broadcast %72 : vector<64x1xi1> to vector<64x16xi1>
    %74 = vector.broadcast %cst_40 : f32 to vector<64x16xf32>
    %75 = arith.select %73, %71, %74 : vector<64x16xi1>, vector<64x16xf32>
    %c6 = arith.constant 6 : index
    %c0_41 = arith.constant 0 : index
    %c0_42 = arith.constant 0 : index
    %76 = vector.load %arg7[%c6, %c0_41, %c0_42] : memref<9x16x32xf32, #tpu.memory_space<vmem>>, vector<1x16x32xf32>
    %77 = vector.shape_cast %76 : vector<1x16x32xf32> to vector<16x32xf32>
    %cst_43 = arith.constant dense<0.000000e+00> : vector<64x32xf32>
    %78 = tpu.matmul %75, %77, %cst_43 {dimension_numbers = #tpu.dot_dimension_numbers<[1], [0], [0], [1], [0, 0, 1, 1], [], []>} : vector<64x16xf32>, vector<16x32xf32>, vector<64x32xf32> -> vector<64x32xf32>
    %79 = arith.addf %70, %78 : vector<64x32xf32>
    %80 = vector.extract_strided_slice %23 {offsets = [17, 0], sizes = [64, 16], strides = [1, 1]} : vector<82x16xf32> to vector<64x16xf32>
    %c7 = arith.constant 7 : index
    %c0_44 = arith.constant 0 : index
    %c0_45 = arith.constant 0 : index
    %81 = vector.load %arg7[%c7, %c0_44, %c0_45] : memref<9x16x32xf32, #tpu.memory_space<vmem>>, vector<1x16x32xf32>
    %82 = vector.shape_cast %81 : vector<1x16x32xf32> to vector<16x32xf32>
    %cst_46 = arith.constant dense<0.000000e+00> : vector<64x32xf32>
    %83 = tpu.matmul %80, %82, %cst_46 {dimension_numbers = #tpu.dot_dimension_numbers<[1], [0], [0], [1], [0, 0, 1, 1], [], []>} : vector<64x16xf32>, vector<16x32xf32>, vector<64x32xf32> -> vector<64x32xf32>
    %84 = arith.addf %79, %83 : vector<64x32xf32>
    %85 = vector.extract_strided_slice %23 {offsets = [18, 0], sizes = [64, 16], strides = [1, 1]} : vector<82x16xf32> to vector<64x16xf32>
    %cst_47 = arith.constant 0.000000e+00 : f32
    %86 = vector.shape_cast %21 : vector<64x1xi1> to vector<64x1xi1>
    %87 = vector.broadcast %86 : vector<64x1xi1> to vector<64x16xi1>
    %88 = vector.broadcast %cst_47 : f32 to vector<64x16xf32>
    %89 = arith.select %87, %85, %88 : vector<64x16xi1>, vector<64x16xf32>
    %c8 = arith.constant 8 : index
    %c0_48 = arith.constant 0 : index
    %c0_49 = arith.constant 0 : index
    %90 = vector.load %arg7[%c8, %c0_48, %c0_49] : memref<9x16x32xf32, #tpu.memory_space<vmem>>, vector<1x16x32xf32>
    %91 = vector.shape_cast %90 : vector<1x16x32xf32> to vector<16x32xf32>
    %cst_50 = arith.constant dense<0.000000e+00> : vector<64x32xf32>
    %92 = tpu.matmul %89, %91, %cst_50 {dimension_numbers = #tpu.dot_dimension_numbers<[1], [0], [0], [1], [0, 0, 1, 1], [], []>} : vector<64x16xf32>, vector<16x32xf32>, vector<64x32xf32> -> vector<64x32xf32>
    %93 = arith.addf %84, %92 : vector<64x32xf32>
    %c0_51 = arith.constant 0 : index
    %c0_52 = arith.constant 0 : index
    %94 = vector.load %arg8[%c0_51, %c0_52] : memref<1x32xf32, #tpu.memory_space<vmem>>, vector<1x32xf32>
    %95 = vector.broadcast %94 : vector<1x32xf32> to vector<64x32xf32>
    %96 = arith.mulf %93, %95 : vector<64x32xf32>
    %c0_53 = arith.constant 0 : index
    %c0_54 = arith.constant 0 : index
    %97 = vector.load %arg9[%c0_53, %c0_54] : memref<1x32xf32, #tpu.memory_space<vmem>>, vector<1x32xf32>
    %98 = vector.broadcast %97 : vector<1x32xf32> to vector<64x32xf32>
    %99 = arith.addf %96, %98 : vector<64x32xf32>
    %100 = arith.negf %99 : vector<64x32xf32>
    %101 = math.exp %100 : vector<64x32xf32>
    %cst_55 = arith.constant 1.000000e+00 : f32
    %102 = vector.broadcast %cst_55 : f32 to vector<64x32xf32>
    %103 = arith.addf %102, %101 : vector<64x32xf32>
    %104 = arith.divf %102, %103 : vector<64x32xf32>
    %105 = arith.mulf %99, %104 : vector<64x32xf32>
    %cst_56 = arith.constant 0.000000e+00 : f32
    %106 = vector.broadcast %cst_56 : f32 to vector<9x32xf32>
    %107 = tpu.concatenate %106, %105, %106 in 0 : vector<9x32xf32>, vector<64x32xf32>, vector<9x32xf32> -> vector<82x32xf32>
    %cst_57 = arith.constant 0.000000e+00 : f32
    %108 = vector.broadcast %cst_57 : f32 to vector<64x32xf32>
    %109 = vector.extract_strided_slice %107 {offsets = [0, 0], sizes = [64, 32], strides = [1, 1]} : vector<82x32xf32> to vector<64x32xf32>
    %cst_58 = arith.constant 0.000000e+00 : f32
    %110 = vector.shape_cast %19 : vector<64x1xi1> to vector<64x1xi1>
    %111 = vector.broadcast %110 : vector<64x1xi1> to vector<64x32xi1>
    %112 = vector.broadcast %cst_58 : f32 to vector<64x32xf32>
    %113 = arith.select %111, %109, %112 : vector<64x32xi1>, vector<64x32xf32>
    %c0_59 = arith.constant 0 : index
    %c0_60 = arith.constant 0 : index
    %c0_61 = arith.constant 0 : index
    %114 = vector.load %arg10[%c0_59, %c0_60, %c0_61] : memref<9x32x32xf32, #tpu.memory_space<vmem>>, vector<1x32x32xf32>
    %115 = vector.shape_cast %114 : vector<1x32x32xf32> to vector<32x32xf32>
    %cst_62 = arith.constant dense<0.000000e+00> : vector<64x32xf32>
    %116 = tpu.matmul %113, %115, %cst_62 {dimension_numbers = #tpu.dot_dimension_numbers<[1], [0], [0], [1], [0, 0, 1, 1], [], []>} : vector<64x32xf32>, vector<32x32xf32>, vector<64x32xf32> -> vector<64x32xf32>
    %117 = arith.addf %108, %116 : vector<64x32xf32>
    %118 = vector.extract_strided_slice %107 {offsets = [1, 0], sizes = [64, 32], strides = [1, 1]} : vector<82x32xf32> to vector<64x32xf32>
    %c1_63 = arith.constant 1 : index
    %c0_64 = arith.constant 0 : index
    %c0_65 = arith.constant 0 : index
    %119 = vector.load %arg10[%c1_63, %c0_64, %c0_65] : memref<9x32x32xf32, #tpu.memory_space<vmem>>, vector<1x32x32xf32>
    %120 = vector.shape_cast %119 : vector<1x32x32xf32> to vector<32x32xf32>
    %cst_66 = arith.constant dense<0.000000e+00> : vector<64x32xf32>
    %121 = tpu.matmul %118, %120, %cst_66 {dimension_numbers = #tpu.dot_dimension_numbers<[1], [0], [0], [1], [0, 0, 1, 1], [], []>} : vector<64x32xf32>, vector<32x32xf32>, vector<64x32xf32> -> vector<64x32xf32>
    %122 = arith.addf %117, %121 : vector<64x32xf32>
    %123 = vector.extract_strided_slice %107 {offsets = [2, 0], sizes = [64, 32], strides = [1, 1]} : vector<82x32xf32> to vector<64x32xf32>
    %cst_67 = arith.constant 0.000000e+00 : f32
    %124 = vector.shape_cast %21 : vector<64x1xi1> to vector<64x1xi1>
    %125 = vector.broadcast %124 : vector<64x1xi1> to vector<64x32xi1>
    %126 = vector.broadcast %cst_67 : f32 to vector<64x32xf32>
    %127 = arith.select %125, %123, %126 : vector<64x32xi1>, vector<64x32xf32>
    %c2_68 = arith.constant 2 : index
    %c0_69 = arith.constant 0 : index
    %c0_70 = arith.constant 0 : index
    %128 = vector.load %arg10[%c2_68, %c0_69, %c0_70] : memref<9x32x32xf32, #tpu.memory_space<vmem>>, vector<1x32x32xf32>
    %129 = vector.shape_cast %128 : vector<1x32x32xf32> to vector<32x32xf32>
    %cst_71 = arith.constant dense<0.000000e+00> : vector<64x32xf32>
    %130 = tpu.matmul %127, %129, %cst_71 {dimension_numbers = #tpu.dot_dimension_numbers<[1], [0], [0], [1], [0, 0, 1, 1], [], []>} : vector<64x32xf32>, vector<32x32xf32>, vector<64x32xf32> -> vector<64x32xf32>
    %131 = arith.addf %122, %130 : vector<64x32xf32>
    %132 = vector.extract_strided_slice %107 {offsets = [8, 0], sizes = [64, 32], strides = [1, 1]} : vector<82x32xf32> to vector<64x32xf32>
    %cst_72 = arith.constant 0.000000e+00 : f32
    %133 = vector.shape_cast %19 : vector<64x1xi1> to vector<64x1xi1>
    %134 = vector.broadcast %133 : vector<64x1xi1> to vector<64x32xi1>
    %135 = vector.broadcast %cst_72 : f32 to vector<64x32xf32>
    %136 = arith.select %134, %132, %135 : vector<64x32xi1>, vector<64x32xf32>
    %c3_73 = arith.constant 3 : index
    %c0_74 = arith.constant 0 : index
    %c0_75 = arith.constant 0 : index
    %137 = vector.load %arg10[%c3_73, %c0_74, %c0_75] : memref<9x32x32xf32, #tpu.memory_space<vmem>>, vector<1x32x32xf32>
    %138 = vector.shape_cast %137 : vector<1x32x32xf32> to vector<32x32xf32>
    %cst_76 = arith.constant dense<0.000000e+00> : vector<64x32xf32>
    %139 = tpu.matmul %136, %138, %cst_76 {dimension_numbers = #tpu.dot_dimension_numbers<[1], [0], [0], [1], [0, 0, 1, 1], [], []>} : vector<64x32xf32>, vector<32x32xf32>, vector<64x32xf32> -> vector<64x32xf32>
    %140 = arith.addf %131, %139 : vector<64x32xf32>
    %141 = vector.extract_strided_slice %107 {offsets = [9, 0], sizes = [64, 32], strides = [1, 1]} : vector<82x32xf32> to vector<64x32xf32>
    %c4_77 = arith.constant 4 : index
    %c0_78 = arith.constant 0 : index
    %c0_79 = arith.constant 0 : index
    %142 = vector.load %arg10[%c4_77, %c0_78, %c0_79] : memref<9x32x32xf32, #tpu.memory_space<vmem>>, vector<1x32x32xf32>
    %143 = vector.shape_cast %142 : vector<1x32x32xf32> to vector<32x32xf32>
    %cst_80 = arith.constant dense<0.000000e+00> : vector<64x32xf32>
    %144 = tpu.matmul %141, %143, %cst_80 {dimension_numbers = #tpu.dot_dimension_numbers<[1], [0], [0], [1], [0, 0, 1, 1], [], []>} : vector<64x32xf32>, vector<32x32xf32>, vector<64x32xf32> -> vector<64x32xf32>
    %145 = arith.addf %140, %144 : vector<64x32xf32>
    %146 = vector.extract_strided_slice %107 {offsets = [10, 0], sizes = [64, 32], strides = [1, 1]} : vector<82x32xf32> to vector<64x32xf32>
    %cst_81 = arith.constant 0.000000e+00 : f32
    %147 = vector.shape_cast %21 : vector<64x1xi1> to vector<64x1xi1>
    %148 = vector.broadcast %147 : vector<64x1xi1> to vector<64x32xi1>
    %149 = vector.broadcast %cst_81 : f32 to vector<64x32xf32>
    %150 = arith.select %148, %146, %149 : vector<64x32xi1>, vector<64x32xf32>
    %c5_82 = arith.constant 5 : index
    %c0_83 = arith.constant 0 : index
    %c0_84 = arith.constant 0 : index
    %151 = vector.load %arg10[%c5_82, %c0_83, %c0_84] : memref<9x32x32xf32, #tpu.memory_space<vmem>>, vector<1x32x32xf32>
    %152 = vector.shape_cast %151 : vector<1x32x32xf32> to vector<32x32xf32>
    %cst_85 = arith.constant dense<0.000000e+00> : vector<64x32xf32>
    %153 = tpu.matmul %150, %152, %cst_85 {dimension_numbers = #tpu.dot_dimension_numbers<[1], [0], [0], [1], [0, 0, 1, 1], [], []>} : vector<64x32xf32>, vector<32x32xf32>, vector<64x32xf32> -> vector<64x32xf32>
    %154 = arith.addf %145, %153 : vector<64x32xf32>
    %155 = vector.extract_strided_slice %107 {offsets = [16, 0], sizes = [64, 32], strides = [1, 1]} : vector<82x32xf32> to vector<64x32xf32>
    %cst_86 = arith.constant 0.000000e+00 : f32
    %156 = vector.shape_cast %19 : vector<64x1xi1> to vector<64x1xi1>
    %157 = vector.broadcast %156 : vector<64x1xi1> to vector<64x32xi1>
    %158 = vector.broadcast %cst_86 : f32 to vector<64x32xf32>
    %159 = arith.select %157, %155, %158 : vector<64x32xi1>, vector<64x32xf32>
    %c6_87 = arith.constant 6 : index
    %c0_88 = arith.constant 0 : index
    %c0_89 = arith.constant 0 : index
    %160 = vector.load %arg10[%c6_87, %c0_88, %c0_89] : memref<9x32x32xf32, #tpu.memory_space<vmem>>, vector<1x32x32xf32>
    %161 = vector.shape_cast %160 : vector<1x32x32xf32> to vector<32x32xf32>
    %cst_90 = arith.constant dense<0.000000e+00> : vector<64x32xf32>
    %162 = tpu.matmul %159, %161, %cst_90 {dimension_numbers = #tpu.dot_dimension_numbers<[1], [0], [0], [1], [0, 0, 1, 1], [], []>} : vector<64x32xf32>, vector<32x32xf32>, vector<64x32xf32> -> vector<64x32xf32>
    %163 = arith.addf %154, %162 : vector<64x32xf32>
    %164 = vector.extract_strided_slice %107 {offsets = [17, 0], sizes = [64, 32], strides = [1, 1]} : vector<82x32xf32> to vector<64x32xf32>
    %c7_91 = arith.constant 7 : index
    %c0_92 = arith.constant 0 : index
    %c0_93 = arith.constant 0 : index
    %165 = vector.load %arg10[%c7_91, %c0_92, %c0_93] : memref<9x32x32xf32, #tpu.memory_space<vmem>>, vector<1x32x32xf32>
    %166 = vector.shape_cast %165 : vector<1x32x32xf32> to vector<32x32xf32>
    %cst_94 = arith.constant dense<0.000000e+00> : vector<64x32xf32>
    %167 = tpu.matmul %164, %166, %cst_94 {dimension_numbers = #tpu.dot_dimension_numbers<[1], [0], [0], [1], [0, 0, 1, 1], [], []>} : vector<64x32xf32>, vector<32x32xf32>, vector<64x32xf32> -> vector<64x32xf32>
    %168 = arith.addf %163, %167 : vector<64x32xf32>
    %169 = vector.extract_strided_slice %107 {offsets = [18, 0], sizes = [64, 32], strides = [1, 1]} : vector<82x32xf32> to vector<64x32xf32>
    %cst_95 = arith.constant 0.000000e+00 : f32
    %170 = vector.shape_cast %21 : vector<64x1xi1> to vector<64x1xi1>
    %171 = vector.broadcast %170 : vector<64x1xi1> to vector<64x32xi1>
    %172 = vector.broadcast %cst_95 : f32 to vector<64x32xf32>
    %173 = arith.select %171, %169, %172 : vector<64x32xi1>, vector<64x32xf32>
    %c8_96 = arith.constant 8 : index
    %c0_97 = arith.constant 0 : index
    %c0_98 = arith.constant 0 : index
    %174 = vector.load %arg10[%c8_96, %c0_97, %c0_98] : memref<9x32x32xf32, #tpu.memory_space<vmem>>, vector<1x32x32xf32>
    %175 = vector.shape_cast %174 : vector<1x32x32xf32> to vector<32x32xf32>
    %cst_99 = arith.constant dense<0.000000e+00> : vector<64x32xf32>
    %176 = tpu.matmul %173, %175, %cst_99 {dimension_numbers = #tpu.dot_dimension_numbers<[1], [0], [0], [1], [0, 0, 1, 1], [], []>} : vector<64x32xf32>, vector<32x32xf32>, vector<64x32xf32> -> vector<64x32xf32>
    %177 = arith.addf %168, %176 : vector<64x32xf32>
    %c0_100 = arith.constant 0 : index
    %c0_101 = arith.constant 0 : index
    %178 = vector.load %arg11[%c0_100, %c0_101] : memref<1x32xf32, #tpu.memory_space<vmem>>, vector<1x32xf32>
    %179 = vector.broadcast %178 : vector<1x32xf32> to vector<64x32xf32>
    %180 = arith.mulf %177, %179 : vector<64x32xf32>
    %c0_102 = arith.constant 0 : index
    %c0_103 = arith.constant 0 : index
    %181 = vector.load %arg12[%c0_102, %c0_103] : memref<1x32xf32, #tpu.memory_space<vmem>>, vector<1x32xf32>
    %182 = vector.broadcast %181 : vector<1x32xf32> to vector<64x32xf32>
    %183 = arith.addf %180, %182 : vector<64x32xf32>
    %184 = arith.negf %183 : vector<64x32xf32>
    %185 = math.exp %184 : vector<64x32xf32>
    %cst_104 = arith.constant 1.000000e+00 : f32
    %186 = vector.broadcast %cst_104 : f32 to vector<64x32xf32>
    %187 = arith.addf %186, %185 : vector<64x32xf32>
    %188 = arith.divf %186, %187 : vector<64x32xf32>
    %189 = arith.mulf %183, %188 : vector<64x32xf32>
    %c0_105 = arith.constant 0 : index
    %c0_106 = arith.constant 0 : index
    %190 = vector.load %arg13[%c0_105, %c0_106] : memref<32x32xf32, #tpu.memory_space<vmem>>, vector<32x32xf32>
    %cst_107 = arith.constant dense<0.000000e+00> : vector<64x32xf32>
    %191 = tpu.matmul %189, %190, %cst_107 {dimension_numbers = #tpu.dot_dimension_numbers<[1], [0], [0], [1], [0, 0, 1, 1], [], []>} : vector<64x32xf32>, vector<32x32xf32>, vector<64x32xf32> -> vector<64x32xf32>
    %c0_108 = arith.constant 0 : index
    %c0_109 = arith.constant 0 : index
    %192 = vector.load %arg14[%c0_108, %c0_109] : memref<1x32xf32, #tpu.memory_space<vmem>>, vector<1x32xf32>
    %193 = vector.broadcast %192 : vector<1x32xf32> to vector<64x32xf32>
    %194 = arith.addf %191, %193 : vector<64x32xf32>
    %195 = tpu.iota {dimensions = array<i32: 1>} : vector<64x32xi32>
    %c0_i32 = arith.constant 0 : i32
    %196 = vector.broadcast %c0_i32 : i32 to vector<64x32xi32>
    %197 = arith.cmpi eq, %195, %196 : vector<64x32xi32>
    %198 = vector.shape_cast %16 : vector<64x1xf32> to vector<64x1xf32>
    %199 = vector.broadcast %198 : vector<64x1xf32> to vector<64x32xf32>
    %200 = vector.shape_cast %17 : vector<64x1xf32> to vector<64x1xf32>
    %201 = vector.broadcast %200 : vector<64x1xf32> to vector<64x32xf32>
    %202 = arith.select %197, %199, %201 : vector<64x32xi1>, vector<64x32xf32>
    %203 = arith.addf %194, %202 : vector<64x32xf32>
    %cst_110 = arith.constant 8.000000e+00 : f32
    %204 = vector.broadcast %cst_110 : f32 to vector<64x32xf32>
    %205 = arith.mulf %203, %204 : vector<64x32xf32>
    %206 = math.exp %194 : vector<64x32xf32>
    %cst_111 = arith.constant 8.000000e+00 : f32
    %207 = vector.broadcast %cst_111 : f32 to vector<64x32xf32>
    %208 = arith.mulf %206, %207 : vector<64x32xf32>
    %209 = arith.negf %194 : vector<64x32xf32>
    %210 = math.exp %209 : vector<64x32xf32>
    %cst_112 = arith.constant 1.000000e+00 : f32
    %211 = vector.broadcast %cst_112 : f32 to vector<64x32xf32>
    %212 = arith.addf %211, %210 : vector<64x32xf32>
    %213 = arith.divf %211, %212 : vector<64x32xf32>
    %c2_i32 = arith.constant 2 : i32
    %214 = vector.broadcast %c2_i32 : i32 to vector<64x32xi32>
    %215 = arith.cmpi slt, %195, %214 : vector<64x32xi32>
    %c26_i32 = arith.constant 26 : i32
    %216 = vector.broadcast %c26_i32 : i32 to vector<64x32xi32>
    %217 = arith.cmpi slt, %195, %216 : vector<64x32xi32>
    %218 = arith.select %217, %208, %213 : vector<64x32xi1>, vector<64x32xf32>
    %219 = arith.select %215, %205, %218 : vector<64x32xi1>, vector<64x32xf32>
    %c0_113 = arith.constant 0 : index
    %c0_114 = arith.constant 0 : index
    %c0_115 = arith.constant 0 : index
    %220 = vector.load %arg15[%c0_113, %c0_114, %c0_115] : memref<1x64x32xf32, #tpu.memory_space<vmem>>, vector<1x64x32xf32>
    %221 = vector.shape_cast %220 : vector<1x64x32xf32> to vector<64x32xf32>
    %222 = vector.shape_cast %219 : vector<64x32xf32> to vector<1x64x32xf32>
    tpu.vector_store %arg15[%c0_113, %c0_114, %c0_115], %222 {strides = array<i32>} : memref<1x64x32xf32, #tpu.memory_space<vmem>>, vector<1x64x32xf32>,
    return
  }
  func.func @transform_0(%arg0: i32) -> (i32, i32, i32) {
    %c0_i32 = arith.constant 0 : i32
    %c0_i32_0 = arith.constant 0 : i32
    %c0_i32_1 = arith.constant 0 : i32
    return %arg0, %c0_i32, %c0_i32_0 : i32, i32, i32
  }
  func.func @transform_1(%arg0: i32) -> (i32, i32) {
    %c0_i32 = arith.constant 0 : i32
    %c0_i32_0 = arith.constant 0 : i32
    %c0_i32_1 = arith.constant 0 : i32
    return %c0_i32, %c0_i32_0 : i32, i32
  }
  func.func @transform_2(%arg0: i32) -> (i32, i32) {
    %c0_i32 = arith.constant 0 : i32
    %c0_i32_0 = arith.constant 0 : i32
    %c0_i32_1 = arith.constant 0 : i32
    return %c0_i32, %c0_i32_0 : i32, i32
  }
  func.func @transform_3(%arg0: i32) -> (i32, i32) {
    %c0_i32 = arith.constant 0 : i32
    %c0_i32_0 = arith.constant 0 : i32
    %c0_i32_1 = arith.constant 0 : i32
    return %c0_i32, %c0_i32_0 : i32, i32
  }
  func.func @transform_4(%arg0: i32) -> (i32, i32) {
    %c0_i32 = arith.constant 0 : i32
    %c0_i32_0 = arith.constant 0 : i32
    %c0_i32_1 = arith.constant 0 : i32
    return %c0_i32, %c0_i32_0 : i32, i32
  }
  func.func @transform_5(%arg0: i32) -> (i32, i32) {
    %c0_i32 = arith.constant 0 : i32
    %c0_i32_0 = arith.constant 0 : i32
    %c0_i32_1 = arith.constant 0 : i32
    return %c0_i32, %c0_i32_0 : i32, i32
  }
  func.func @transform_6(%arg0: i32) -> (i32, i32, i32) {
    %c0_i32 = arith.constant 0 : i32
    %c0_i32_0 = arith.constant 0 : i32
    %c0_i32_1 = arith.constant 0 : i32
    %c0_i32_2 = arith.constant 0 : i32
    return %c0_i32, %c0_i32_0, %c0_i32_1 : i32, i32, i32
  }
  func.func @transform_7(%arg0: i32) -> (i32, i32) {
    %c0_i32 = arith.constant 0 : i32
    %c0_i32_0 = arith.constant 0 : i32
    %c0_i32_1 = arith.constant 0 : i32
    return %c0_i32, %c0_i32_0 : i32, i32
  }
  func.func @transform_8(%arg0: i32) -> (i32, i32) {
    %c0_i32 = arith.constant 0 : i32
    %c0_i32_0 = arith.constant 0 : i32
    %c0_i32_1 = arith.constant 0 : i32
    return %c0_i32, %c0_i32_0 : i32, i32
  }
  func.func @transform_9(%arg0: i32) -> (i32, i32, i32) {
    %c0_i32 = arith.constant 0 : i32
    %c0_i32_0 = arith.constant 0 : i32
    %c0_i32_1 = arith.constant 0 : i32
    %c0_i32_2 = arith.constant 0 : i32
    return %c0_i32, %c0_i32_0, %c0_i32_1 : i32, i32, i32
  }
  func.func @transform_10(%arg0: i32) -> (i32, i32) {
    %c0_i32 = arith.constant 0 : i32
    %c0_i32_0 = arith.constant 0 : i32
    %c0_i32_1 = arith.constant 0 : i32
    return %c0_i32, %c0_i32_0 : i32, i32
  }
  func.func @transform_11(%arg0: i32) -> (i32, i32) {
    %c0_i32 = arith.constant 0 : i32
    %c0_i32_0 = arith.constant 0 : i32
    %c0_i32_1 = arith.constant 0 : i32
    return %c0_i32, %c0_i32_0 : i32, i32
  }
  func.func @transform_12(%arg0: i32) -> (i32, i32) {
    %c0_i32 = arith.constant 0 : i32
    %c0_i32_0 = arith.constant 0 : i32
    %c0_i32_1 = arith.constant 0 : i32
    return %c0_i32, %c0_i32_0 : i32, i32
  }
  func.func @transform_13(%arg0: i32) -> (i32, i32) {
    %c0_i32 = arith.constant 0 : i32
    %c0_i32_0 = arith.constant 0 : i32
    %c0_i32_1 = arith.constant 0 : i32
    return %c0_i32, %c0_i32_0 : i32, i32
  }
  func.func @transform_14(%arg0: i32) -> (i32, i32, i32) {
    %c0_i32 = arith.constant 0 : i32
    %c0_i32_0 = arith.constant 0 : i32
    %c0_i32_1 = arith.constant 0 : i32
    return %arg0, %c0_i32, %c0_i32_0 : i32, i32, i32
  }
}

</mosaic_0001>

<llo_original>
// kernel: tpu_custom_call.1
$region0: #{tpu_custom_call.1}
  #allocation0 [shape = 'u32[]', space=smem, size = 0x4, offset = 0x4, fixed_abs, tag = 'smem constant byte address 0x4 - core index']
  #allocation1 [shape = 'u32[144,128]{1,0:T(1,128)}', space=vmem, size = 0x12000, scoped, tag = 'internal scratch']
  %s0 = inlined_call_operand.vmem [shape: f32[2,64,16], index: 0, kind: input, shape index: {}]
  %s1 = inlined_call_operand.vmem [shape: f32[64,1], index: 1, kind: input, shape index: {}]
  %s2 = inlined_call_operand.vmem [shape: f32[64,1], index: 2, kind: input, shape index: {}]
  %s3 = inlined_call_operand.hbm [shape: f32[16,16], index: 3, kind: input, shape index: {}]
  %s4 = inlined_call_operand.vmem [shape: f32[1,16], index: 4, kind: input, shape index: {}]
  %s5 = inlined_call_operand.vmem [shape: f32[1,16], index: 5, kind: input, shape index: {}]
  %s6 = inlined_call_operand.hbm [shape: f32[9,16,32], index: 6, kind: input, shape index: {}]
  %s7 = inlined_call_operand.vmem [shape: f32[1,32], index: 7, kind: input, shape index: {}]
  %s8 = inlined_call_operand.vmem [shape: f32[1,32], index: 8, kind: input, shape index: {}]
  %s9 = inlined_call_operand.vmem [shape: f32[9,32,32], index: 9, kind: input, shape index: {}]
  %s10 = inlined_call_operand.vmem [shape: f32[1,32], index: 10, kind: input, shape index: {}]
  %s11 = inlined_call_operand.vmem [shape: f32[1,32], index: 11, kind: input, shape index: {}]
  %s12 = inlined_call_operand.vmem [shape: f32[32,32], index: 12, kind: input, shape index: {}]
  %s13 = inlined_call_operand.vmem [shape: f32[1,32], index: 13, kind: input, shape index: {}]
  %s14 = inlined_call_operand.vmem [shape: f32[2,64,32], index: 14, kind: output, shape index: {}]
  %s15 = sld [smem:[#allocation0]]
  $region97: #{tpu_custom_call.1} parent=0
    _
  %s17 = ssub.s32 1, %s15
  %s18 = scalar_select 0, %s17, %s15
  $region1: #{tpu_custom_call.1} parent=0
    #allocation2 [shape = 'u8[8192]{0}', space=vmem, size = 0x2000, scoped, tag = 'input window, operand 3, single buffered']
    #allocation3 [shape = 's32[2]{0}', space=sflag, size = 0x8, scoped, tag = 'scoped memory for tpu_custom_call.1']
    #allocation4 [shape = 'u8[73728]{0}', space=vmem, size = 0x12000, scoped, tag = 'input window, operand 6, single buffered']
    #allocation5 [shape = 's32[1]{0}', space=sflag, size = 0x4, scoped, tag = 'scoped memory for tpu_custom_call.1']
    %19 = vsyncpa [#allocation3], 0
    %20 = vsyncpa [#allocation5], 0
    loop: start=0, step=1, limit=4
    $region2: #{tpu_custom_call.1} parent=1 // loop_pre_header
      _
    $region3: #{tpu_custom_call.1} parent=1 // loop_header
      %s22 = sphi 0, %s26
      %p23 = scmp.ge.s32.totalorder %s22, 4
      %s32 = sphi 0, %s34
      %s35 = sphi 0, %s32
      %s36 = sphi 0, %s35
      %s52 = sphi 0, %s36
      %s56 = sphi 0, %s56
      %s58 = sphi 0, %s56
      %s59 = sphi 0, %s58
      %s73 = sphi 0, %s59
      %s77 = sphi 0, %s77
      %s79 = sphi 0, %s77
      %s80 = sphi 0, %s79
      %s94 = sphi 0, %s80
      %s98 = sphi 0, %s98
      %s100 = sphi 0, %s98
      %s101 = sphi 0, %s100
      %s115 = sphi 0, %s101
      %s119 = sphi 0, %s119
      %s121 = sphi 0, %s119
      %s122 = sphi 0, %s121
      %s136 = sphi 0, %s122
      %s140 = sphi 0, %s140
      %s142 = sphi 0, %s140
      %s143 = sphi 0, %s142
      %s157 = sphi 0, %s143
      %s161 = sphi 0, %s161
      %s163 = sphi 0, %s161
      %s164 = sphi 0, %s163
      %s178 = sphi 0, %s164
      %s182 = sphi 0, %s182
      %s184 = sphi 0, %s182
      %s185 = sphi 0, %s184
      %s199 = sphi 0, %s185
      %s203 = sphi 0, %s203
      %s205 = sphi 0, %s203
      %s206 = sphi 0, %s205
      %s220 = sphi 0, %s206
      %s224 = sphi 0, %s224
      %s226 = sphi 0, %s224
      %s227 = sphi 0, %s226
      %s241 = sphi 0, %s227
      %s245 = sphi 0, %s245
      %s247 = sphi 0, %s245
      %s248 = sphi 0, %s247
      %s262 = sphi 0, %s248
      %s266 = sphi 0, %s266
      %s268 = sphi 0, %s266
      %s269 = sphi 0, %s268
      %s283 = sphi 0, %s269
      %s287 = sphi 0, %s287
      %s289 = sphi 0, %s287
      %s290 = sphi 0, %s289
      %s304 = sphi 0, %s290
      %s308 = sphi 0, %s308
      %s310 = sphi 0, %s308
      %s311 = sphi 0, %s310
      %s325 = sphi 0, %s311
      %s331 = sphi 0, %s333
      %s334 = sphi 0, %s331
      %s335 = sphi 0, %s334
      %s351 = sphi 0, %s335
    $region4: #{tpu_custom_call.1} parent=1 // loop_header_branch
      %25 = sbr.rel (%p23) target = $region8
    $region5: #{tpu_custom_call.1} parent=1 // loop_body
      %s27 = ssub.s32 %s22, 1
      %s28 = ssub.s32 %s22, 2
      %s29 = sadd.s32 %s22, 1
      %s30 = ssub.s32 %s22, %s29
      %p31 = scmp.eq.s32.totalorder %s30, 0
      %s33 = sadd.s32 %s32, 1
      %s34 = scalar_select %p31, %s32, %s33
      %p37 = pneg %p31
      %p38 = scmp.eq.s32.totalorder %s22, 1
      %p39 = por %p37, %p38
      %p40 = scmp.ne.s32.totalorder %s32, %s35
      %p41 = scmp.eq.s32.totalorder %s22, 0
      %p42 = por %p40, %p41
      %p43 = scmp.ne.s32.totalorder %s32, %s35
      %p44 = scmp.eq.s32.totalorder %s27, 1
      %p45 = por %p43, %p44
      %p46 = scmp.ne.s32.totalorder %s35, %s36
      %p47 = scmp.eq.s32.totalorder %s27, 0
      %p48 = por %p46, %p47
      %p49 = scmp.ne.s32.totalorder %s35, %s36
      %p50 = scmp.eq.s32.totalorder %s28, 1
      %p51 = por %p49, %p50
      %p53 = scmp.ne.s32.totalorder %s36, %s52
      %p54 = scmp.eq.s32.totalorder %s28, 0
      %p55 = por %p53, %p54
      %s57 = sadd.s32 %s56, 1
      %p60 = scmp.eq.s32.totalorder %s22, 1
      %p61 = scmp.ne.s32.totalorder %s56, %s58
      %p62 = scmp.eq.s32.totalorder %s22, 0
      %p63 = por %p61, %p62
      %p64 = scmp.ne.s32.totalorder %s56, %s58
      %p65 = scmp.eq.s32.totalorder %s27, 1
      %p66 = por %p64, %p65
      %p67 = scmp.ne.s32.totalorder %s58, %s59
      %p68 = scmp.eq.s32.totalorder %s27, 0
      %p69 = por %p67, %p68
      %p70 = scmp.ne.s32.totalorder %s58, %s59
      %p71 = scmp.eq.s32.totalorder %s28, 1
      %p72 = por %p70, %p71
      %p74 = scmp.ne.s32.totalorder %s59, %s73
      %p75 = scmp.eq.s32.totalorder %s28, 0
      %p76 = por %p74, %p75
      %s78 = sadd.s32 %s77, 1
      %p81 = scmp.eq.s32.totalorder %s22, 1
      %p82 = scmp.ne.s32.totalorder %s77, %s79
      %p83 = scmp.eq.s32.totalorder %s22, 0
      %p84 = por %p82, %p83
      %p85 = scmp.ne.s32.totalorder %s77, %s79
      %p86 = scmp.eq.s32.totalorder %s27, 1
      %p87 = por %p85, %p86
      %p88 = scmp.ne.s32.totalorder %s79, %s80
      %p89 = scmp.eq.s32.totalorder %s27, 0
      %p90 = por %p88, %p89
      %p91 = scmp.ne.s32.totalorder %s79, %s80
      %p92 = scmp.eq.s32.totalorder %s28, 1
      %p93 = por %p91, %p92
      %p95 = scmp.ne.s32.totalorder %s80, %s94
      %p96 = scmp.eq.s32.totalorder %s28, 0
      %p97 = por %p95, %p96
      %s99 = sadd.s32 %s98, 1
      %p102 = scmp.eq.s32.totalorder %s22, 1
      %p103 = scmp.ne.s32.totalorder %s98, %s100
      %p104 = scmp.eq.s32.totalorder %s22, 0
      %p105 = por %p103, %p104
      %p106 = scmp.ne.s32.totalorder %s98, %s100
      %p107 = scmp.eq.s32.totalorder %s27, 1
      %p108 = por %p106, %p107
      %p109 = scmp.ne.s32.totalorder %s100, %s101
      %p110 = scmp.eq.s32.totalorder %s27, 0
      %p111 = por %p109, %p110
      %p112 = scmp.ne.s32.totalorder %s100, %s101
      %p113 = scmp.eq.s32.totalorder %s28, 1
      %p114 = por %p112, %p113
      %p116 = scmp.ne.s32.totalorder %s101, %s115
      %p117 = scmp.eq.s32.totalorder %s28, 0
      %p118 = por %p116, %p117
      %s120 = sadd.s32 %s119, 1
      %p123 = scmp.eq.s32.totalorder %s22, 1
      %p124 = scmp.ne.s32.totalorder %s119, %s121
      %p125 = scmp.eq.s32.totalorder %s22, 0
      %p126 = por %p124, %p125
      %p127 = scmp.ne.s32.totalorder %s119, %s121
      %p128 = scmp.eq.s32.totalorder %s27, 1
      %p129 = por %p127, %p128
      %p130 = scmp.ne.s32.totalorder %s121, %s122
      %p131 = scmp.eq.s32.totalorder %s27, 0
      %p132 = por %p130, %p131
      %p133 = scmp.ne.s32.totalorder %s121, %s122
      %p134 = scmp.eq.s32.totalorder %s28, 1
      %p135 = por %p133, %p134
      %p137 = scmp.ne.s32.totalorder %s122, %s136
      %p138 = scmp.eq.s32.totalorder %s28, 0
      %p139 = por %p137, %p138
      %s141 = sadd.s32 %s140, 1
      %p144 = scmp.eq.s32.totalorder %s22, 1
      %p145 = scmp.ne.s32.totalorder %s140, %s142
      %p146 = scmp.eq.s32.totalorder %s22, 0
      %p147 = por %p145, %p146
      %p148 = scmp.ne.s32.totalorder %s140, %s142
      %p149 = scmp.eq.s32.totalorder %s27, 1
      %p150 = por %p148, %p149
      %p151 = scmp.ne.s32.totalorder %s142, %s143
      %p152 = scmp.eq.s32.totalorder %s27, 0
      %p153 = por %p151, %p152
      %p154 = scmp.ne.s32.totalorder %s142, %s143
      %p155 = scmp.eq.s32.totalorder %s28, 1
      %p156 = por %p154, %p155
      %p158 = scmp.ne.s32.totalorder %s143, %s157
      %p159 = scmp.eq.s32.totalorder %s28, 0
      %p160 = por %p158, %p159
      %s162 = sadd.s32 %s161, 1
      %p165 = scmp.eq.s32.totalorder %s22, 1
      %p166 = scmp.ne.s32.totalorder %s161, %s163
      %p167 = scmp.eq.s32.totalorder %s22, 0
      %p168 = por %p166, %p167
      %p169 = scmp.ne.s32.totalorder %s161, %s163
      %p170 = scmp.eq.s32.totalorder %s27, 1
      %p171 = por %p169, %p170
      %p172 = scmp.ne.s32.totalorder %s163, %s164
      %p173 = scmp.eq.s32.totalorder %s27, 0
      %p174 = por %p172, %p173
      %p175 = scmp.ne.s32.totalorder %s163, %s164
      %p176 = scmp.eq.s32.totalorder %s28, 1
      %p177 = por %p175, %p176
      %p179 = scmp.ne.s32.totalorder %s164, %s178
      %p180 = scmp.eq.s32.totalorder %s28, 0
      %p181 = por %p179, %p180
      %s183 = sadd.s32 %s182, 1
      %p186 = scmp.eq.s32.totalorder %s22, 1
      %p187 = scmp.ne.s32.totalorder %s182, %s184
      %p188 = scmp.eq.s32.totalorder %s22, 0
      %p189 = por %p187, %p188
      %p190 = scmp.ne.s32.totalorder %s182, %s184
      %p191 = scmp.eq.s32.totalorder %s27, 1
      %p192 = por %p190, %p191
      %p193 = scmp.ne.s32.totalorder %s184, %s185
      %p194 = scmp.eq.s32.totalorder %s27, 0
      %p195 = por %p193, %p194
      %p196 = scmp.ne.s32.totalorder %s184, %s185
      %p197 = scmp.eq.s32.totalorder %s28, 1
      %p198 = por %p196, %p197
      %p200 = scmp.ne.s32.totalorder %s185, %s199
      %p201 = scmp.eq.s32.totalorder %s28, 0
      %p202 = por %p200, %p201
      %s204 = sadd.s32 %s203, 1
      %p207 = scmp.eq.s32.totalorder %s22, 1
      %p208 = scmp.ne.s32.totalorder %s203, %s205
      %p209 = scmp.eq.s32.totalorder %s22, 0
      %p210 = por %p208, %p209
      %p211 = scmp.ne.s32.totalorder %s203, %s205
      %p212 = scmp.eq.s32.totalorder %s27, 1
      %p213 = por %p211, %p212
      %p214 = scmp.ne.s32.totalorder %s205, %s206
      %p215 = scmp.eq.s32.totalorder %s27, 0
      %p216 = por %p214, %p215
      %p217 = scmp.ne.s32.totalorder %s205, %s206
      %p218 = scmp.eq.s32.totalorder %s28, 1
      %p219 = por %p217, %p218
      %p221 = scmp.ne.s32.totalorder %s206, %s220
      %p222 = scmp.eq.s32.totalorder %s28, 0
      %p223 = por %p221, %p222
      %s225 = sadd.s32 %s224, 1
      %p228 = scmp.eq.s32.totalorder %s22, 1
      %p229 = scmp.ne.s32.totalorder %s224, %s226
      %p230 = scmp.eq.s32.totalorder %s22, 0
      %p231 = por %p229, %p230
      %p232 = scmp.ne.s32.totalorder %s224, %s226
      %p233 = scmp.eq.s32.totalorder %s27, 1
      %p234 = por %p232, %p233
      %p235 = scmp.ne.s32.totalorder %s226, %s227
      %p236 = scmp.eq.s32.totalorder %s27, 0
      %p237 = por %p235, %p236
      %p238 = scmp.ne.s32.totalorder %s226, %s227
      %p239 = scmp.eq.s32.totalorder %s28, 1
      %p240 = por %p238, %p239
      %p242 = scmp.ne.s32.totalorder %s227, %s241
      %p243 = scmp.eq.s32.totalorder %s28, 0
      %p244 = por %p242, %p243
      %s246 = sadd.s32 %s245, 1
      %p249 = scmp.eq.s32.totalorder %s22, 1
      %p250 = scmp.ne.s32.totalorder %s245, %s247
      %p251 = scmp.eq.s32.totalorder %s22, 0
      %p252 = por %p250, %p251
      %p253 = scmp.ne.s32.totalorder %s245, %s247
      %p254 = scmp.eq.s32.totalorder %s27, 1
      %p255 = por %p253, %p254
      %p256 = scmp.ne.s32.totalorder %s247, %s248
      %p257 = scmp.eq.s32.totalorder %s27, 0
      %p258 = por %p256, %p257
      %p259 = scmp.ne.s32.totalorder %s247, %s248
      %p260 = scmp.eq.s32.totalorder %s28, 1
      %p261 = por %p259, %p260
      %p263 = scmp.ne.s32.totalorder %s248, %s262
      %p264 = scmp.eq.s32.totalorder %s28, 0
      %p265 = por %p263, %p264
      %s267 = sadd.s32 %s266, 1
      %p270 = scmp.eq.s32.totalorder %s22, 1
      %p271 = scmp.ne.s32.totalorder %s266, %s268
      %p272 = scmp.eq.s32.totalorder %s22, 0
      %p273 = por %p271, %p272
      %p274 = scmp.ne.s32.totalorder %s266, %s268
      %p275 = scmp.eq.s32.totalorder %s27, 1
      %p276 = por %p274, %p275
      %p277 = scmp.ne.s32.totalorder %s268, %s269
      %p278 = scmp.eq.s32.totalorder %s27, 0
      %p279 = por %p277, %p278
      %p280 = scmp.ne.s32.totalorder %s268, %s269
      %p281 = scmp.eq.s32.totalorder %s28, 1
      %p282 = por %p280, %p281
      %p284 = scmp.ne.s32.totalorder %s269, %s283
      %p285 = scmp.eq.s32.totalorder %s28, 0
      %p286 = por %p284, %p285
      %s288 = sadd.s32 %s287, 1
      %p291 = scmp.eq.s32.totalorder %s22, 1
      %p292 = scmp.ne.s32.totalorder %s287, %s289
      %p293 = scmp.eq.s32.totalorder %s22, 0
      %p294 = por %p292, %p293
      %p295 = scmp.ne.s32.totalorder %s287, %s289
      %p296 = scmp.eq.s32.totalorder %s27, 1
      %p297 = por %p295, %p296
      %p298 = scmp.ne.s32.totalorder %s289, %s290
      %p299 = scmp.eq.s32.totalorder %s27, 0
      %p300 = por %p298, %p299
      %p301 = scmp.ne.s32.totalorder %s289, %s290
      %p302 = scmp.eq.s32.totalorder %s28, 1
      %p303 = por %p301, %p302
      %p305 = scmp.ne.s32.totalorder %s290, %s304
      %p306 = scmp.eq.s32.totalorder %s28, 0
      %p307 = por %p305, %p306
      %s309 = sadd.s32 %s308, 1
      %p312 = scmp.eq.s32.totalorder %s22, 1
      %p313 = scmp.ne.s32.totalorder %s308, %s310
      %p314 = scmp.eq.s32.totalorder %s22, 0
      %p315 = por %p313, %p314
      %p316 = scmp.ne.s32.totalorder %s308, %s310
      %p317 = scmp.eq.s32.totalorder %s27, 1
      %p318 = por %p316, %p317
      %p319 = scmp.ne.s32.totalorder %s310, %s311
      %p320 = scmp.eq.s32.totalorder %s27, 0
      %p321 = por %p319, %p320
      %p322 = scmp.ne.s32.totalorder %s310, %s311
      %p323 = scmp.eq.s32.totalorder %s28, 1
      %p324 = por %p322, %p323
      %p326 = scmp.ne.s32.totalorder %s311, %s325
      %p327 = scmp.eq.s32.totalorder %s28, 0
      %p328 = por %p326, %p327
      %s329 = ssub.s32 %s22, %s29
      %p330 = scmp.eq.s32.totalorder %s329, 0
      %s332 = sadd.s32 %s331, 1
      %s333 = scalar_select %p330, %s331, %s332
      %p336 = pneg %p330
      %p337 = scmp.eq.s32.totalorder %s22, 1
      %p338 = por %p336, %p337
      %p339 = scmp.ne.s32.totalorder %s331, %s334
      %p340 = scmp.eq.s32.totalorder %s22, 0
      %p341 = por %p339, %p340
      %p342 = scmp.ne.s32.totalorder %s331, %s334
      %p343 = scmp.eq.s32.totalorder %s27, 1
      %p344 = por %p342, %p343
      %p345 = scmp.ne.s32.totalorder %s334, %s335
      %p346 = scmp.eq.s32.totalorder %s27, 0
      %p347 = por %p345, %p346
      %p348 = scmp.ne.s32.totalorder %s334, %s335
      %p349 = scmp.eq.s32.totalorder %s28, 1
      %p350 = por %p348, %p349
      %p352 = scmp.ne.s32.totalorder %s335, %s351
      %p353 = scmp.eq.s32.totalorder %s28, 0
      %p354 = por %p352, %p353
      %p355 = scmp.le.s32.totalorder 1, %s22
      %p356 = scmp.lt.s32.totalorder %s22, 3
      %p357 = pnand %p355, %p356
      %p358 = pneg %p357
      // Predicated region
      $region9: #{tpu_custom_call.1} parent=5 // pred_check
        _
      $region10: #{tpu_custom_call.1} parent=5 // pred_check_branch
        %360 = sbr.rel (%p357) target = $region12
      $region11: #{tpu_custom_call.1} parent=5 // pred_region
        %s361 = ssub.s32 %s22, 1
        // Predicated region
        $region13: #{tpu_custom_call.1} parent=11 // pred_check
          %p362 = pneg %p69
        $region14: #{tpu_custom_call.1} parent=11 // pred_check_branch
          %364 = sbr.rel (%p362) target = $region16
        $region15: #{tpu_custom_call.1} parent=11 // pred_region
          _
        $region16: #{tpu_custom_call.1} parent=11 // pred_fallthru
          _
        // Predicated region
        $region17: #{tpu_custom_call.1} parent=11 // pred_check
          %p365 = pneg %p90
        $region18: #{tpu_custom_call.1} parent=11 // pred_check_branch
          %367 = sbr.rel (%p365) target = $region20
        $region19: #{tpu_custom_call.1} parent=11 // pred_region
          _
        $region20: #{tpu_custom_call.1} parent=11 // pred_fallthru
          _
        // Predicated region
        $region21: #{tpu_custom_call.1} parent=11 // pred_check
          %p368 = pneg %p111
        $region22: #{tpu_custom_call.1} parent=11 // pred_check_branch
          %370 = sbr.rel (%p368) target = $region24
        $region23: #{tpu_custom_call.1} parent=11 // pred_region
          %s372 = ssub.s32 256, 256
          %373 = vsyncadd [#allocation3], %s372
          %s374 = sshll.u32 [#allocation2], 4
          %s375 = int_to_ptr.vmem [resolvable:$true] %s374
          %380 = dma.hbm_to_vmem [thread:$0]  %s3, 256, %s375, [#allocation3], 128, 128, 8
        $region24: #{tpu_custom_call.1} parent=11 // pred_fallthru
          _
        // Predicated region
        $region25: #{tpu_custom_call.1} parent=11 // pred_check
          %p381 = pneg %p132
        $region26: #{tpu_custom_call.1} parent=11 // pred_check_branch
          %383 = sbr.rel (%p381) target = $region28
        $region27: #{tpu_custom_call.1} parent=11 // pred_region
          _
        $region28: #{tpu_custom_call.1} parent=11 // pred_fallthru
          _
        // Predicated region
        $region29: #{tpu_custom_call.1} parent=11 // pred_check
          %p384 = pneg %p153
        $region30: #{tpu_custom_call.1} parent=11 // pred_check_branch
          %386 = sbr.rel (%p384) target = $region32
        $region31: #{tpu_custom_call.1} parent=11 // pred_region
          _
        $region32: #{tpu_custom_call.1} parent=11 // pred_fallthru
          _
        // Predicated region
        $region33: #{tpu_custom_call.1} parent=11 // pred_check
          %p387 = pneg %p174
        $region34: #{tpu_custom_call.1} parent=11 // pred_check_branch
          %389 = sbr.rel (%p387) target = $region36
        $region35: #{tpu_custom_call.1} parent=11 // pred_region
          %s391 = ssub.s32 2304, 2304
          %392 = vsyncadd [#allocation5], %s391
          %s393 = sshll.u32 [#allocation4], 4
          %s394 = int_to_ptr.vmem [resolvable:$true] %s393
          %399 = dma.hbm_to_vmem [thread:$0]  %s6, 2304, %s394, [#allocation5], 128, 128, 8
        $region36: #{tpu_custom_call.1} parent=11 // pred_fallthru
          _
        // Predicated region
        $region37: #{tpu_custom_call.1} parent=11 // pred_check
          %p400 = pneg %p195
        $region38: #{tpu_custom_call.1} parent=11 // pred_check_branch
          %402 = sbr.rel (%p400) target = $region40
        $region39: #{tpu_custom_call.1} parent=11 // pred_region
          _
        $region40: #{tpu_custom_call.1} parent=11 // pred_fallthru
          _
        // Predicated region
        $region41: #{tpu_custom_call.1} parent=11 // pred_check
          %p403 = pneg %p216
        $region42: #{tpu_custom_call.1} parent=11 // pred_check_branch
          %405 = sbr.rel (%p403) target = $region44
        $region43: #{tpu_custom_call.1} parent=11 // pred_region
          _
        $region44: #{tpu_custom_call.1} parent=11 // pred_fallthru
          _
        // Predicated region
        $region45: #{tpu_custom_call.1} parent=11 // pred_check
          %p406 = pneg %p237
        $region46: #{tpu_custom_call.1} parent=11 // pred_check_branch
          %408 = sbr.rel (%p406) target = $region48
        $region47: #{tpu_custom_call.1} parent=11 // pred_region
          _
        $region48: #{tpu_custom_call.1} parent=11 // pred_fallthru
          _
        // Predicated region
        $region49: #{tpu_custom_call.1} parent=11 // pred_check
          %p409 = pneg %p258
        $region50: #{tpu_custom_call.1} parent=11 // pred_check_branch
          %411 = sbr.rel (%p409) target = $region52
        $region51: #{tpu_custom_call.1} parent=11 // pred_region
          _
        $region52: #{tpu_custom_call.1} parent=11 // pred_fallthru
          _
        // Predicated region
        $region53: #{tpu_custom_call.1} parent=11 // pred_check
          %p412 = pneg %p279
        $region54: #{tpu_custom_call.1} parent=11 // pred_check_branch
          %414 = sbr.rel (%p412) target = $region56
        $region55: #{tpu_custom_call.1} parent=11 // pred_region
          _
        $region56: #{tpu_custom_call.1} parent=11 // pred_fallthru
          _
        // Predicated region
        $region57: #{tpu_custom_call.1} parent=11 // pred_check
          %p415 = pneg %p300
        $region58: #{tpu_custom_call.1} parent=11 // pred_check_branch
          %417 = sbr.rel (%p415) target = $region60
        $region59: #{tpu_custom_call.1} parent=11 // pred_region
          _
        $region60: #{tpu_custom_call.1} parent=11 // pred_fallthru
          _
        // Predicated region
        $region61: #{tpu_custom_call.1} parent=11 // pred_check
          %p418 = pneg %p321
        $region62: #{tpu_custom_call.1} parent=11 // pred_check_branch
          %420 = sbr.rel (%p418) target = $region64
        $region63: #{tpu_custom_call.1} parent=11 // pred_region
          _
        $region64: #{tpu_custom_call.1} parent=11 // pred_fallthru
          _
      $region12: #{tpu_custom_call.1} parent=5 // pred_fallthru
        _
      %p421 = scmp.lt.s32.totalorder %s22, 2
      // Predicated region
      $region65: #{tpu_custom_call.1} parent=5 // pred_check
        %p422 = pneg %p421
      $region66: #{tpu_custom_call.1} parent=5 // pred_check_branch
        %424 = sbr.rel (%p422) target = $region68
      $region67: #{tpu_custom_call.1} parent=5 // pred_region
        // Predicated region
        $region69: #{tpu_custom_call.1} parent=67 // pred_check
          %p425 = pneg %p42
        $region70: #{tpu_custom_call.1} parent=67 // pred_check_branch
          %427 = sbr.rel (%p425) target = $region72
        $region71: #{tpu_custom_call.1} parent=67 // pred_region
          %p428 = scmp.lt.s32.totalorder %s22, 1
          %s429 = scalar_select %p428, %s22, 1
          %s430 = smul.addr %s429, 8
          %s431 = smul.addr %s430, 8
          %s432 = scalar_lea.vmem %s0, %s431
        $region72: #{tpu_custom_call.1} parent=67 // pred_fallthru
          _
      $region68: #{tpu_custom_call.1} parent=5 // pred_fallthru
        _
      %p433 = scmp.le.s32.totalorder 1, %s22
      %p434 = scmp.lt.s32.totalorder %s22, 3
      %p435 = pnand %p433, %p434
      %p436 = pneg %p435
      // Predicated region
      $region73: #{tpu_custom_call.1} parent=5 // pred_check
        _
      $region74: #{tpu_custom_call.1} parent=5 // pred_check_branch
        %438 = sbr.rel (%p435) target = $region76
      $region75: #{tpu_custom_call.1} parent=5 // pred_region
        %s439 = ssub.s32 %s22, 1
        // Predicated region
        $region77: #{tpu_custom_call.1} parent=75 // pred_check
          %p440 = pneg %p111
        $region78: #{tpu_custom_call.1} parent=75 // pred_check_branch
          %442 = sbr.rel (%p440) target = $region80
        $region79: #{tpu_custom_call.1} parent=75 // pred_region
          %443 = dma.done [#allocation3], 256
        $region80: #{tpu_custom_call.1} parent=75 // pred_fallthru
          _
        // Predicated region
        $region81: #{tpu_custom_call.1} parent=75 // pred_check
          %p444 = pneg %p174
        $region82: #{tpu_custom_call.1} parent=75 // pred_check_branch
          %446 = sbr.rel (%p444) target = $region84
        $region83: #{tpu_custom_call.1} parent=75 // pred_region
          %447 = dma.done [#allocation5], 2304
        $region84: #{tpu_custom_call.1} parent=75 // pred_fallthru
          _
        %p448 = scmp.lt.s32.totalorder %s27, 1
        %s449 = scalar_select %p448, %s27, 1
        %s450 = smul.addr %s449, 8
        %s451 = smul.addr %s450, 8
        %s452 = scalar_lea.vmem %s0, %s451
        %p453 = pneg %p48
        %p454 = pneg %p45
        %p455 = pneg %p69
        %p456 = pneg %p66
        %p457 = pneg %p90
        %p458 = pneg %p87
        %p459 = pneg %p111
        %p460 = pneg %p108
        %p461 = pneg %p132
        %p462 = pneg %p129
        %p463 = pneg %p153
        %p464 = pneg %p150
        %p465 = pneg %p174
        %p466 = pneg %p171
        %p467 = pneg %p195
        %p468 = pneg %p192
        %p469 = pneg %p216
        %p470 = pneg %p213
        %p471 = pneg %p237
        %p472 = pneg %p234
        %p473 = pneg %p258
        %p474 = pneg %p255
        %p475 = pneg %p279
        %p476 = pneg %p276
        %p477 = pneg %p300
        %p478 = pneg %p297
        %p479 = pneg %p321
        %p480 = pneg %p318
        %p481 = pneg %p347
        %p482 = pneg %p344
        %p483 = scmp.lt.s32.totalorder %s27, 1
        %s484 = scalar_select %p483, %s27, 1
        %s485 = smul.addr %s484, 8
        %s486 = smul.addr %s485, 8
        %s487 = scalar_lea.vmem %s14, %s486
        %p488 = scmp.lt.s32.totalorder %s27, 1
        %s489 = scalar_select %p488, %s27, 1
        %s490 = smul.addr %s489, 8
        %s491 = smul.addr %s490, 8
        %s492 = scalar_lea.vmem %s0, %s491
        %p493 = scmp.lt.s32.totalorder %s27, 1
        %s494 = scalar_select %p493, %s27, 1
        %s495 = smul.addr %s494, 8
        %s496 = smul.addr %s495, 8
        %s497 = scalar_lea.vmem %s14, %s496
        %v498 = vld [vmem:[%s492] sm:$0xff]
        %v499 = vld [vmem:[%s492 + $0x8] sm:$0xff]
        %v500 = vld [vmem:[%s492 + $0x10] sm:$0xff]
        %v501 = vld [vmem:[%s492 + $0x18] sm:$0xff]
        %v502 = vld [vmem:[%s492 + $0x20] sm:$0xff]
        %v503 = vld [vmem:[%s492 + $0x28] sm:$0xff]
        %v504 = vld [vmem:[%s492 + $0x30] sm:$0xff]
        %v505 = vld [vmem:[%s492 + $0x38] sm:$0xff]
        %v506 = vld [vmem:[#allocation2] sm:$0xff]
        %v507 = vld [vmem:[#allocation2 + $0x8] sm:$0xff]
        %vm508 = vcmask 130048
        %v510 = vsel %vm508, %v498, 0
        %v513 = vsel %vm508, %v499, 0
        %v516 = vsel %vm508, %v500, 0
        %v519 = vsel %vm508, %v501, 0
        %v522 = vsel %vm508, %v502, 0
        %v525 = vsel %vm508, %v503, 0
        %v528 = vsel %vm508, %v504, 0
        %v531 = vsel %vm508, %v505, 0
        %533 = vmatprep.subr.mxu0 0.0
        %534 = vmatpush1.msra.mxu0 %v506
        %535 = vmatprep.subr.mxu0 0.0
        %536 = vmatpush1.msra.mxu0 %v507
        %537 = vmatprep.subr.mxu0 0.0
        %538 = vmatpush1.msra.mxu0 0.0
        %539 = vmatprep.subr.mxu0 0.0
        %540 = vmatpush1.msra.mxu0 0.0
        %541 = vmatprep.subr.mxu0 0.0
        %542 = vmatpush1.msra.mxu0 0.0
        %543 = vmatprep.subr.mxu0 0.0
        %544 = vmatpush1.msra.mxu0 0.0
        %545 = vmatprep.subr.mxu0 0.0
        %546 = vmatpush1.msra.mxu0 0.0
        %547 = vmatprep.subr.mxu0 0.0
        %548 = vmatpush1.msra.mxu0 0.0
        %549 = vmatprep.subr.mxu0 0.0
        %550 = vmatpush1.msra.mxu0 0.0
        %551 = vmatprep.subr.mxu0 0.0
        %552 = vmatpush1.msra.mxu0 0.0
        %553 = vmatprep.subr.mxu0 0.0
        %554 = vmatpush1.msra.mxu0 0.0
        %555 = vmatprep.subr.mxu0 0.0
        %556 = vmatpush1.msra.mxu0 0.0
        %557 = vmatprep.subr.mxu0 0.0
        %558 = vmatpush1.msra.mxu0 0.0
        %559 = vmatprep.subr.mxu0 0.0
        %560 = vmatpush1.msra.mxu0 0.0
        %561 = vmatprep.subr.mxu0 0.0
        %562 = vmatpush1.msra.mxu0 0.0
        %563 = vmatprep.subr.mxu0 0.0
        %564 = vmatpush1.msra.mxu0 0.0
        %565 = vmatprep.subr.mxu0 0.0
        %566 = vmatpush1.msra.mxu0 0.0
        %567 = vmatprep.subr.mxu0 0.0
        %568 = vmatpush1.msra.mxu0 0.0
        %569 = vmatprep.subr.mxu0 0.0
        %570 = vmatpush1.msra.mxu0 0.0
        %571 = vmatprep.subr.mxu0 0.0
        %572 = vmatpush1.msra.mxu0 0.0
        %573 = vmatprep.subr.mxu0 0.0
        %574 = vmatpush1.msra.mxu0 0.0
        %575 = vmatprep.subr.mxu0 0.0
        %576 = vmatpush1.msra.mxu0 0.0
        %577 = vmatprep.subr.mxu0 0.0
        %578 = vmatpush1.msra.mxu0 0.0
        %579 = vmatprep.subr.mxu0 0.0
        %580 = vmatpush1.msra.mxu0 0.0
        %581 = vmatprep.subr.mxu0 0.0
        %582 = vmatpush1.msra.mxu0 0.0
        %583 = vmatprep.subr.mxu0 0.0
        %584 = vmatpush1.msra.mxu0 0.0
        %585 = vmatprep.subr.mxu0 0.0
        %586 = vmatpush1.msra.mxu0 0.0
        %587 = vmatprep.subr.mxu0 0.0
        %588 = vmatpush1.msra.mxu0 0.0
        %589 = vmatprep.subr.mxu0 0.0
        %590 = vmatpush1.msra.mxu0 0.0
        %591 = vmatprep.subr.mxu0 0.0
        %592 = vmatpush1.msra.mxu0 0.0
        %593 = vmatprep.subr.mxu0 0.0
        %594 = vmatpush1.msra.mxu0 0.0
        %595 = vmatprep.subr.mxu0 0.0
        %596 = vmatpush1.msra.mxu0 0.0
        %597 = vmatprep.mubr.f32.mxu0 0.0
        %598 = vmatmul.mubr.f32.gmra.mrb[0].mxu0 %v510
        %v599 = vpop.f32.mrb[0].mxu0
        %v600 = vadd.f32 0.0, %v599
        %v601 = vpop.f32.mrb[0].mxu0
        %602 = vmatprep.mubr.f32.mxu0 0.0
        %603 = vmatmul.mubr.f32.gmra.mrb[0].mxu0 %v513
        %v604 = vpop.f32.mrb[0].mxu0
        %v605 = vadd.f32 0.0, %v604
        %v606 = vpop.f32.mrb[0].mxu0
        %607 = vmatprep.mubr.f32.mxu0 0.0
        %608 = vmatmul.mubr.f32.gmra.mrb[0].mxu0 %v516
        %v609 = vpop.f32.mrb[0].mxu0
        %v610 = vadd.f32 0.0, %v609
        %v611 = vpop.f32.mrb[0].mxu0
        %612 = vmatprep.mubr.f32.mxu0 0.0
        %613 = vmatmul.mubr.f32.gmra.mrb[0].mxu0 %v519
        %v614 = vpop.f32.mrb[0].mxu0
        %v615 = vadd.f32 0.0, %v614
        %v616 = vpop.f32.mrb[0].mxu0
        %617 = vmatprep.mubr.f32.mxu0 0.0
        %618 = vmatmul.mubr.f32.gmra.mrb[0].mxu0 %v522
        %v619 = vpop.f32.mrb[0].mxu0
        %v620 = vadd.f32 0.0, %v619
        %v621 = vpop.f32.mrb[0].mxu0
        %622 = vmatprep.mubr.f32.mxu0 0.0
        %623 = vmatmul.mubr.f32.gmra.mrb[0].mxu0 %v525
        %v624 = vpop.f32.mrb[0].mxu0
        %v625 = vadd.f32 0.0, %v624
        %v626 = vpop.f32.mrb[0].mxu0
        %627 = vmatprep.mubr.f32.mxu0 0.0
        %628 = vmatmul.mubr.f32.gmra.mrb[0].mxu0 %v528
        %v629 = vpop.f32.mrb[0].mxu0
        %v630 = vadd.f32 0.0, %v629
        %v631 = vpop.f32.mrb[0].mxu0
        %632 = vmatprep.mubr.f32.mxu0 0.0
        %633 = vmatmul.mubr.f32.gmra.mrb[0].mxu0 %v531
        %v634 = vpop.f32.mrb[0].mxu0
        %v635 = vadd.f32 0.0, %v634
        %v636 = vpop.f32.mrb[0].mxu0
        %637 = vdwg.mxu0
        %v638 = vld [vmem:[%s4] sm:$0x1]
        %v640 = vlaneseq
        %v641 = vshrl.u32 %v640, 7
        %v642 = vsub.s32 0, %v641
        %v643 = vrot.slane %v638, %v642
        %v645 = vmul.f32 %v600, %v643
        %v646 = vmul.f32 %v605, %v643
        %v647 = vmul.f32 %v610, %v643
        %v648 = vmul.f32 %v615, %v643
        %v649 = vmul.f32 %v620, %v643
        %v650 = vmul.f32 %v625, %v643
        %v651 = vmul.f32 %v630, %v643
        %v652 = vmul.f32 %v635, %v643
        %v653 = vld [vmem:[%s5] sm:$0x1]
        %v655 = vlaneseq
        %v656 = vshrl.u32 %v655, 7
        %v657 = vsub.s32 0, %v656
        %v658 = vrot.slane %v653, %v657
        %v660 = vadd.f32 %v645, %v658
        %v661 = vadd.f32 %v646, %v658
        %v662 = vadd.f32 %v647, %v658
        %v663 = vadd.f32 %v648, %v658
        %v664 = vadd.f32 %v649, %v658
        %v665 = vadd.f32 %v650, %v658
        %v666 = vadd.f32 %v651, %v658
        %v667 = vadd.f32 %v652, %v658
        %v668 = vxor.u32 %v660, 2147483648
        %v669 = vxor.u32 %v661, 2147483648
        %v670 = vxor.u32 %v662, 2147483648
        %v671 = vxor.u32 %v663, 2147483648
        %v672 = vxor.u32 %v664, 2147483648
        %v673 = vxor.u32 %v665, 2147483648
        %v674 = vxor.u32 %v666, 2147483648
        %v675 = vxor.u32 %v667, 2147483648
        %v676 = vmul.f32 %v668, 1.442695
        %v677 = vpow.pop %v676
        %v678 = vmul.f32 %v669, 1.442695
        %v679 = vpow.pop %v678
        %v680 = vmul.f32 %v670, 1.442695
        %v681 = vpow.pop %v680
        %v682 = vmul.f32 %v671, 1.442695
        %v683 = vpow.pop %v682
        %v684 = vmul.f32 %v672, 1.442695
        %v685 = vpow.pop %v684
        %v686 = vmul.f32 %v673, 1.442695
        %v687 = vpow.pop %v686
        %v688 = vmul.f32 %v674, 1.442695
        %v689 = vpow.pop %v688
        %v690 = vmul.f32 %v675, 1.442695
        %v691 = vpow.pop %v690
        %v692 = vadd.f32 %v677, 1.0
        %v693 = vadd.f32 %v679, 1.0
        %v694 = vadd.f32 %v681, 1.0
        %v695 = vadd.f32 %v683, 1.0
        %v696 = vadd.f32 %v685, 1.0
        %v697 = vadd.f32 %v687, 1.0
        %v698 = vadd.f32 %v689, 1.0
        %v699 = vadd.f32 %v691, 1.0
        %v700 = vrcp.pop %v692
        %v701 = vmul.f32 1.0, %v700
        %v702 = vrcp.pop %v693
        %v703 = vmul.f32 1.0, %v702
        %v704 = vrcp.pop %v694
        %v705 = vmul.f32 1.0, %v704
        %v706 = vrcp.pop %v695
        %v707 = vmul.f32 1.0, %v706
        %v708 = vrcp.pop %v696
        %v709 = vmul.f32 1.0, %v708
        %v710 = vrcp.pop %v697
        %v711 = vmul.f32 1.0, %v710
        %v712 = vrcp.pop %v698
        %v713 = vmul.f32 1.0, %v712
        %v714 = vrcp.pop %v699
        %v715 = vmul.f32 1.0, %v714
        %v716 = vmul.f32 %v660, %v701
        %v717 = vmul.f32 %v661, %v703
        %v718 = vmul.f32 %v662, %v705
        %v719 = vmul.f32 %v663, %v707
        %v720 = vmul.f32 %v664, %v709
        %v721 = vmul.f32 %v665, %v711
        %v722 = vmul.f32 %v666, %v713
        %v723 = vmul.f32 %v667, %v715
        %v724 = vld [vmem:[%s1] sm:$0xff]
        %v725 = vld [vmem:[%s1 + $0x8] sm:$0xff]
        %v726 = vld [vmem:[%s1 + $0x10] sm:$0xff]
        %v727 = vld [vmem:[%s1 + $0x18] sm:$0xff]
        %v728 = vld [vmem:[%s1 + $0x20] sm:$0xff]
        %v729 = vld [vmem:[%s1 + $0x28] sm:$0xff]
        %v730 = vld [vmem:[%s1 + $0x30] sm:$0xff]
        %v731 = vld [vmem:[%s1 + $0x38] sm:$0xff]
        %v732 = vld [vmem:[%s2] sm:$0xff]
        %v733 = vld [vmem:[%s2 + $0x8] sm:$0xff]
        %v734 = vld [vmem:[%s2 + $0x10] sm:$0xff]
        %v735 = vld [vmem:[%s2 + $0x18] sm:$0xff]
        %v736 = vld [vmem:[%s2 + $0x20] sm:$0xff]
        %v737 = vld [vmem:[%s2 + $0x28] sm:$0xff]
        %v738 = vld [vmem:[%s2 + $0x30] sm:$0xff]
        %v739 = vld [vmem:[%s2 + $0x38] sm:$0xff]
        %vm740 = vcmp.ge.f32.partialorder %v724, 1.0
        %vm741 = vcmp.ge.f32.partialorder %v725, 1.0
        %vm742 = vcmp.ge.f32.partialorder %v726, 1.0
        %vm743 = vcmp.ge.f32.partialorder %v727, 1.0
        %vm744 = vcmp.ge.f32.partialorder %v728, 1.0
        %vm745 = vcmp.ge.f32.partialorder %v729, 1.0
        %vm746 = vcmp.ge.f32.partialorder %v730, 1.0
        %vm747 = vcmp.ge.f32.partialorder %v731, 1.0
        %vm748 = vcmp.lt.f32.partialorder %v724, 7.0
        %vm749 = vcmp.lt.f32.partialorder %v725, 7.0
        %vm750 = vcmp.lt.f32.partialorder %v726, 7.0
        %vm751 = vcmp.lt.f32.partialorder %v727, 7.0
        %vm752 = vcmp.lt.f32.partialorder %v728, 7.0
        %vm753 = vcmp.lt.f32.partialorder %v729, 7.0
        %vm754 = vcmp.lt.f32.partialorder %v730, 7.0
        %vm755 = vcmp.lt.f32.partialorder %v731, 7.0
        %vm764 = vcmask 1040384
        %v765 = vrot.slane %v716, 7
        %v766 = vrot.slane %v717, 7
        %v767 = vsel %vm764, %v765, %v766
        %v768 = vrot.slane %v718, 7
        %v769 = vsel %vm764, %v766, %v768
        %v770 = vrot.slane %v719, 7
        %v771 = vsel %vm764, %v768, %v770
        %v772 = vrot.slane %v720, 7
        %v773 = vsel %vm764, %v770, %v772
        %v774 = vrot.slane %v721, 7
        %v775 = vsel %vm764, %v772, %v774
        %v776 = vrot.slane %v722, 7
        %v777 = vsel %vm764, %v774, %v776
        %v778 = vrot.slane %v723, 7
        %v779 = vsel %vm764, %v776, %v778
        %v789 = vsel %vm764, 0.0, %v765
        %v790 = vsel %vm764, %v778, 0.0
        %v791 = vsel %vm740, 1, 0
        %v792 = vsel %vm741, 1, 0
        %v793 = vsel %vm742, 1, 0
        %v794 = vsel %vm743, 1, 0
        %v795 = vsel %vm744, 1, 0
        %v796 = vsel %vm745, 1, 0
        %v797 = vsel %vm746, 1, 0
        %v798 = vsel %vm747, 1, 0
        %799 = vset.pattern.permute.xlu0 0
        %800 = vperm.xlu0 %799, %v791
        %v801 = vpop.permute.xlu0 %800
        %802 = vset.pattern.permute.xlu0 0
        %803 = vperm.xlu0 %802, %v792
        %v804 = vpop.permute.xlu0 %803
        %805 = vset.pattern.permute.xlu0 0
        %806 = vperm.xlu0 %805, %v793
        %v807 = vpop.permute.xlu0 %806
        %808 = vset.pattern.permute.xlu0 0
        %809 = vperm.xlu0 %808, %v794
        %v810 = vpop.permute.xlu0 %809
        %811 = vset.pattern.permute.xlu0 0
        %812 = vperm.xlu0 %811, %v795
        %v813 = vpop.permute.xlu0 %812
        %814 = vset.pattern.permute.xlu0 0
        %815 = vperm.xlu0 %814, %v796
        %v816 = vpop.permute.xlu0 %815
        %817 = vset.pattern.permute.xlu0 0
        %818 = vperm.xlu0 %817, %v797
        %v819 = vpop.permute.xlu0 %818
        %820 = vset.pattern.permute.xlu0 0
        %821 = vperm.xlu0 %820, %v798
        %v822 = vpop.permute.xlu0 %821
        %vm823 = vcmp.eq.s32.totalorder %v801, 1
        %vm824 = vcmp.eq.s32.totalorder %v804, 1
        %vm825 = vcmp.eq.s32.totalorder %v807, 1
        %vm826 = vcmp.eq.s32.totalorder %v810, 1
        %vm827 = vcmp.eq.s32.totalorder %v813, 1
        %vm828 = vcmp.eq.s32.totalorder %v816, 1
        %vm829 = vcmp.eq.s32.totalorder %v819, 1
        %vm830 = vcmp.eq.s32.totalorder %v822, 1
        %v831 = vsel %vm824, %v789, 0.0
        %v832 = vsel %vm825, %v767, 0.0
        %v833 = vsel %vm826, %v769, 0.0
        %v834 = vsel %vm827, %v771, 0.0
        %v835 = vsel %vm828, %v773, 0.0
        %v836 = vsel %vm829, %v775, 0.0
        %v837 = vsel %vm830, %v777, 0.0
        %v838 = vld [vmem:[#allocation4] sm:$0xff]
        %v839 = vld [vmem:[#allocation4 + $0x8] sm:$0xff]
        %s840 = scalar_lea.vmem [#allocation4], 16
        %v841 = vld [vmem:[%s840] sm:$0xff]
        %v842 = vld [vmem:[%s840 + $0x8] sm:$0xff]
        %vm845 = vcmask 1046528
        %v846 = vrot.slane 0.0, 1
        %v847 = vrot.slane %v789, 1
        %v848 = vsel %vm845, %v846, %v847
        %v849 = vrot.slane %v767, 1
        %v850 = vsel %vm845, %v847, %v849
        %v851 = vrot.slane %v769, 1
        %v852 = vsel %vm845, %v849, %v851
        %v853 = vrot.slane %v771, 1
        %v854 = vsel %vm845, %v851, %v853
        %v855 = vrot.slane %v773, 1
        %v856 = vsel %vm845, %v853, %v855
        %v857 = vrot.slane %v775, 1
        %v858 = vsel %vm845, %v855, %v857
        %v859 = vrot.slane %v777, 1
        %v860 = vsel %vm845, %v857, %v859
        %v861 = vrot.slane %v779, 1
        %v862 = vsel %vm845, %v859, %v861
        %v863 = vsel %vm508, %v848, 0
        %v865 = vsel %vm508, %v850, 0
        %v867 = vsel %vm508, %v852, 0
        %v869 = vsel %vm508, %v854, 0
        %v871 = vsel %vm508, %v856, 0
        %v873 = vsel %vm508, %v858, 0
        %v875 = vsel %vm508, %v860, 0
        %v877 = vsel %vm508, %v862, 0
        %879 = vmatprep.subr.mxu0 0.0
        %880 = vmatpush1.msra.mxu0 %v841
        %881 = vmatprep.subr.mxu0 0.0
        %882 = vmatpush1.msra.mxu0 %v842
        %883 = vmatprep.subr.mxu0 0.0
        %884 = vmatpush1.msra.mxu0 0.0
        %885 = vmatprep.subr.mxu0 0.0
        %886 = vmatpush1.msra.mxu0 0.0
        %887 = vmatprep.subr.mxu0 0.0
        %888 = vmatpush1.msra.mxu0 0.0
        %889 = vmatprep.subr.mxu0 0.0
        %890 = vmatpush1.msra.mxu0 0.0
        %891 = vmatprep.subr.mxu0 0.0
        %892 = vmatpush1.msra.mxu0 0.0
        %893 = vmatprep.subr.mxu0 0.0
        %894 = vmatpush1.msra.mxu0 0.0
        %895 = vmatprep.subr.mxu0 0.0
        %896 = vmatpush1.msra.mxu0 0.0
        %897 = vmatprep.subr.mxu0 0.0
        %898 = vmatpush1.msra.mxu0 0.0
        %899 = vmatprep.subr.mxu0 0.0
        %900 = vmatpush1.msra.mxu0 0.0
        %901 = vmatprep.subr.mxu0 0.0
        %902 = vmatpush1.msra.mxu0 0.0
        %903 = vmatprep.subr.mxu0 0.0
        %904 = vmatpush1.msra.mxu0 0.0
        %905 = vmatprep.subr.mxu0 0.0
        %906 = vmatpush1.msra.mxu0 0.0
        %907 = vmatprep.subr.mxu0 0.0
        %908 = vmatpush1.msra.mxu0 0.0
        %909 = vmatprep.subr.mxu0 0.0
        %910 = vmatpush1.msra.mxu0 0.0
        %911 = vmatprep.subr.mxu0 0.0
        %912 = vmatpush1.msra.mxu0 0.0
        %913 = vmatprep.subr.mxu0 0.0
        %914 = vmatpush1.msra.mxu0 0.0
        %915 = vmatprep.subr.mxu0 0.0
        %916 = vmatpush1.msra.mxu0 0.0
        %917 = vmatprep.subr.mxu0 0.0
        %918 = vmatpush1.msra.mxu0 0.0
        %919 = vmatprep.subr.mxu0 0.0
        %920 = vmatpush1.msra.mxu0 0.0
        %921 = vmatprep.subr.mxu0 0.0
        %922 = vmatpush1.msra.mxu0 0.0
        %923 = vmatprep.subr.mxu0 0.0
        %924 = vmatpush1.msra.mxu0 0.0
        %925 = vmatprep.subr.mxu0 0.0
        %926 = vmatpush1.msra.mxu0 0.0
        %927 = vmatprep.subr.mxu0 0.0
        %928 = vmatpush1.msra.mxu0 0.0
        %929 = vmatprep.subr.mxu0 0.0
        %930 = vmatpush1.msra.mxu0 0.0
        %931 = vmatprep.subr.mxu0 0.0
        %932 = vmatpush1.msra.mxu0 0.0
        %933 = vmatprep.subr.mxu0 0.0
        %934 = vmatpush1.msra.mxu0 0.0
        %935 = vmatprep.subr.mxu0 0.0
        %936 = vmatpush1.msra.mxu0 0.0
        %937 = vmatprep.subr.mxu0 0.0
        %938 = vmatpush1.msra.mxu0 0.0
        %939 = vmatprep.subr.mxu0 0.0
        %940 = vmatpush1.msra.mxu0 0.0
        %941 = vmatprep.subr.mxu0 0.0
        %942 = vmatpush1.msra.mxu0 0.0
        %943 = vmatprep.mubr.f32.mxu0 0.0
        %944 = vmatmul.mubr.f32.gmra.mrb[0].mxu0 %v863
        %v945 = vpop.f32.mrb[0].mxu0
        %v946 = vadd.f32 0.0, %v945
        %v947 = vpop.f32.mrb[0].mxu0
        %948 = vmatprep.mubr.f32.mxu0 0.0
        %949 = vmatmul.mubr.f32.gmra.mrb[0].mxu0 %v865
        %v950 = vpop.f32.mrb[0].mxu0
        %v951 = vadd.f32 0.0, %v950
        %v952 = vpop.f32.mrb[0].mxu0
        %953 = vmatprep.mubr.f32.mxu0 0.0
        %954 = vmatmul.mubr.f32.gmra.mrb[0].mxu0 %v867
        %v955 = vpop.f32.mrb[0].mxu0
        %v956 = vadd.f32 0.0, %v955
        %v957 = vpop.f32.mrb[0].mxu0
        %958 = vmatprep.mubr.f32.mxu0 0.0
        %959 = vmatmul.mubr.f32.gmra.mrb[0].mxu0 %v869
        %v960 = vpop.f32.mrb[0].mxu0
        %v961 = vadd.f32 0.0, %v960
        %v962 = vpop.f32.mrb[0].mxu0
        %963 = vmatprep.mubr.f32.mxu0 0.0
        %964 = vmatmul.mubr.f32.gmra.mrb[0].mxu0 %v871
        %v965 = vpop.f32.mrb[0].mxu0
        %v966 = vadd.f32 0.0, %v965
        %v967 = vpop.f32.mrb[0].mxu0
        %968 = vmatprep.mubr.f32.mxu0 0.0
        %969 = vmatmul.mubr.f32.gmra.mrb[0].mxu0 %v873
        %v970 = vpop.f32.mrb[0].mxu0
        %v971 = vadd.f32 0.0, %v970
        %v972 = vpop.f32.mrb[0].mxu0
        %973 = vmatprep.mubr.f32.mxu0 0.0
        %974 = vmatmul.mubr.f32.gmra.mrb[0].mxu0 %v875
        %v975 = vpop.f32.mrb[0].mxu0
        %v976 = vadd.f32 0.0, %v975
        %v977 = vpop.f32.mrb[0].mxu0
        %978 = vmatprep.mubr.f32.mxu0 0.0
        %979 = vmatmul.mubr.f32.gmra.mrb[0].mxu0 %v877
        %v980 = vpop.f32.mrb[0].mxu0
        %v981 = vadd.f32 0.0, %v980
        %v982 = vpop.f32.mrb[0].mxu0
        %983 = vdwg.mxu0
        %v984 = vsel %vm508, 0.0, 0
        %v987 = vsel %vm508, %v831, 0
        %v990 = vsel %vm508, %v832, 0
        %v993 = vsel %vm508, %v833, 0
        %v996 = vsel %vm508, %v834, 0
        %v999 = vsel %vm508, %v835, 0
        %v1002 = vsel %vm508, %v836, 0
        %v1005 = vsel %vm508, %v837, 0
        %1007 = vmatprep.subr.mxu0 0.0
        %1008 = vmatpush1.msra.mxu0 %v838
        %1009 = vmatprep.subr.mxu0 0.0
        %1010 = vmatpush1.msra.mxu0 %v839
        %1011 = vmatprep.subr.mxu0 0.0
        %1012 = vmatpush1.msra.mxu0 0.0
        %1013 = vmatprep.subr.mxu0 0.0
        %1014 = vmatpush1.msra.mxu0 0.0
        %1015 = vmatprep.subr.mxu0 0.0
        %1016 = vmatpush1.msra.mxu0 0.0
        %1017 = vmatprep.subr.mxu0 0.0
        %1018 = vmatpush1.msra.mxu0 0.0
        %1019 = vmatprep.subr.mxu0 0.0
        %1020 = vmatpush1.msra.mxu0 0.0
        %1021 = vmatprep.subr.mxu0 0.0
        %1022 = vmatpush1.msra.mxu0 0.0
        %1023 = vmatprep.subr.mxu0 0.0
        %1024 = vmatpush1.msra.mxu0 0.0
        %1025 = vmatprep.subr.mxu0 0.0
        %1026 = vmatpush1.msra.mxu0 0.0
        %1027 = vmatprep.subr.mxu0 0.0
        %1028 = vmatpush1.msra.mxu0 0.0
        %1029 = vmatprep.subr.mxu0 0.0
        %1030 = vmatpush1.msra.mxu0 0.0
        %1031 = vmatprep.subr.mxu0 0.0
        %1032 = vmatpush1.msra.mxu0 0.0
        %1033 = vmatprep.subr.mxu0 0.0
        %1034 = vmatpush1.msra.mxu0 0.0
        %1035 = vmatprep.subr.mxu0 0.0
        %1036 = vmatpush1.msra.mxu0 0.0
        %1037 = vmatprep.subr.mxu0 0.0
        %1038 = vmatpush1.msra.mxu0 0.0
        %1039 = vmatprep.subr.mxu0 0.0
        %1040 = vmatpush1.msra.mxu0 0.0
        %1041 = vmatprep.subr.mxu0 0.0
        %1042 = vmatpush1.msra.mxu0 0.0
        %1043 = vmatprep.subr.mxu0 0.0
        %1044 = vmatpush1.msra.mxu0 0.0
        %1045 = vmatprep.subr.mxu0 0.0
        %1046 = vmatpush1.msra.mxu0 0.0
        %1047 = vmatprep.subr.mxu0 0.0
        %1048 = vmatpush1.msra.mxu0 0.0
        %1049 = vmatprep.subr.mxu0 0.0
        %1050 = vmatpush1.msra.mxu0 0.0
        %1051 = vmatprep.subr.mxu0 0.0
        %1052 = vmatpush1.msra.mxu0 0.0
        %1053 = vmatprep.subr.mxu0 0.0
        %1054 = vmatpush1.msra.mxu0 0.0
        %1055 = vmatprep.subr.mxu0 0.0
        %1056 = vmatpush1.msra.mxu0 0.0
        %1057 = vmatprep.subr.mxu0 0.0
        %1058 = vmatpush1.msra.mxu0 0.0
        %1059 = vmatprep.subr.mxu0 0.0
        %1060 = vmatpush1.msra.mxu0 0.0
        %1061 = vmatprep.subr.mxu0 0.0
        %1062 = vmatpush1.msra.mxu0 0.0
        %1063 = vmatprep.subr.mxu0 0.0
        %1064 = vmatpush1.msra.mxu0 0.0
        %1065 = vmatprep.subr.mxu0 0.0
        %1066 = vmatpush1.msra.mxu0 0.0
        %1067 = vmatprep.subr.mxu0 0.0
        %1068 = vmatpush1.msra.mxu0 0.0
        %1069 = vmatprep.subr.mxu0 0.0
        %1070 = vmatpush1.msra.mxu0 0.0
        %1071 = vmatprep.mubr.f32.mxu0 0.0
        %1072 = vmatmul.mubr.f32.gmra.mrb[0].mxu0 %v984
        %v1073 = vpop.f32.mrb[0].mxu0
        %v1074 = vadd.f32 %v946, %v1073
        %v1075 = vpop.f32.mrb[0].mxu0
        %1076 = vmatprep.mubr.f32.mxu0 0.0
        %1077 = vmatmul.mubr.f32.gmra.mrb[0].mxu0 %v987
        %v1078 = vpop.f32.mrb[0].mxu0
        %v1079 = vadd.f32 %v951, %v1078
        %v1080 = vpop.f32.mrb[0].mxu0
        %1081 = vmatprep.mubr.f32.mxu0 0.0
        %1082 = vmatmul.mubr.f32.gmra.mrb[0].mxu0 %v990
        %v1083 = vpop.f32.mrb[0].mxu0
        %v1084 = vadd.f32 %v956, %v1083
        %v1085 = vpop.f32.mrb[0].mxu0
        %1086 = vmatprep.mubr.f32.mxu0 0.0
        %1087 = vmatmul.mubr.f32.gmra.mrb[0].mxu0 %v993
        %v1088 = vpop.f32.mrb[0].mxu0
        %v1089 = vadd.f32 %v961, %v1088
        %v1090 = vpop.f32.mrb[0].mxu0
        %1091 = vmatprep.mubr.f32.mxu0 0.0
        %1092 = vmatmul.mubr.f32.gmra.mrb[0].mxu0 %v996
        %v1093 = vpop.f32.mrb[0].mxu0
        %v1094 = vadd.f32 %v966, %v1093
        %v1095 = vpop.f32.mrb[0].mxu0
        %1096 = vmatprep.mubr.f32.mxu0 0.0
        %1097 = vmatmul.mubr.f32.gmra.mrb[0].mxu0 %v999
        %v1098 = vpop.f32.mrb[0].mxu0
        %v1099 = vadd.f32 %v971, %v1098
        %v1100 = vpop.f32.mrb[0].mxu0
        %1101 = vmatprep.mubr.f32.mxu0 0.0
        %1102 = vmatmul.mubr.f32.gmra.mrb[0].mxu0 %v1002
        %v1103 = vpop.f32.mrb[0].mxu0
        %v1104 = vadd.f32 %v976, %v1103
        %v1105 = vpop.f32.mrb[0].mxu0
        %1106 = vmatprep.mubr.f32.mxu0 0.0
        %1107 = vmatmul.mubr.f32.gmra.mrb[0].mxu0 %v1005
        %v1108 = vpop.f32.mrb[0].mxu0
        %v1109 = vadd.f32 %v981, %v1108
        %v1110 = vpop.f32.mrb[0].mxu0
        %1111 = vdwg.mxu0
        %v1112 = vsel %vm748, 1, 0
        %v1113 = vsel %vm749, 1, 0
        %v1114 = vsel %vm750, 1, 0
        %v1115 = vsel %vm751, 1, 0
        %v1116 = vsel %vm752, 1, 0
        %v1117 = vsel %vm753, 1, 0
        %v1118 = vsel %vm754, 1, 0
        %v1119 = vsel %vm755, 1, 0
        %1120 = vset.pattern.permute.xlu0 0
        %1121 = vperm.xlu0 %1120, %v1112
        %v1122 = vpop.permute.xlu0 %1121
        %1123 = vset.pattern.permute.xlu0 0
        %1124 = vperm.xlu0 %1123, %v1113
        %v1125 = vpop.permute.xlu0 %1124
        %1126 = vset.pattern.permute.xlu0 0
        %1127 = vperm.xlu0 %1126, %v1114
        %v1128 = vpop.permute.xlu0 %1127
        %1129 = vset.pattern.permute.xlu0 0
        %1130 = vperm.xlu0 %1129, %v1115
        %v1131 = vpop.permute.xlu0 %1130
        %1132 = vset.pattern.permute.xlu0 0
        %1133 = vperm.xlu0 %1132, %v1116
        %v1134 = vpop.permute.xlu0 %1133
        %1135 = vset.pattern.permute.xlu0 0
        %1136 = vperm.xlu0 %1135, %v1117
        %v1137 = vpop.permute.xlu0 %1136
        %1138 = vset.pattern.permute.xlu0 0
        %1139 = vperm.xlu0 %1138, %v1118
        %v1140 = vpop.permute.xlu0 %1139
        %1141 = vset.pattern.permute.xlu0 0
        %1142 = vperm.xlu0 %1141, %v1119
        %v1143 = vpop.permute.xlu0 %1142
        %vm1144 = vcmp.eq.s32.totalorder %v1122, 1
        %vm1145 = vcmp.eq.s32.totalorder %v1125, 1
        %vm1146 = vcmp.eq.s32.totalorder %v1128, 1
        %vm1147 = vcmp.eq.s32.totalorder %v1131, 1
        %vm1148 = vcmp.eq.s32.totalorder %v1134, 1
        %vm1149 = vcmp.eq.s32.totalorder %v1137, 1
        %vm1150 = vcmp.eq.s32.totalorder %v1140, 1
        %vm1151 = vcmp.eq.s32.totalorder %v1143, 1
        %vm1152 = vcmask 1045504
        %v1153 = vrot.slane 0.0, 2
        %v1154 = vrot.slane %v789, 2
        %v1155 = vsel %vm1152, %v1153, %v1154
        %v1156 = vrot.slane %v767, 2
        %v1157 = vsel %vm1152, %v1154, %v1156
        %v1158 = vrot.slane %v769, 2
        %v1159 = vsel %vm1152, %v1156, %v1158
        %v1160 = vrot.slane %v771, 2
        %v1161 = vsel %vm1152, %v1158, %v1160
        %v1162 = vrot.slane %v773, 2
        %v1163 = vsel %vm1152, %v1160, %v1162
        %v1164 = vrot.slane %v775, 2
        %v1165 = vsel %vm1152, %v1162, %v1164
        %v1166 = vrot.slane %v777, 2
        %v1167 = vsel %vm1152, %v1164, %v1166
        %v1168 = vrot.slane %v779, 2
        %v1169 = vsel %vm1152, %v1166, %v1168
        %v1178 = vsel %vm1144, %v1155, 0.0
        %v1179 = vsel %vm1145, %v1157, 0.0
        %v1180 = vsel %vm1146, %v1159, 0.0
        %v1181 = vsel %vm1147, %v1161, 0.0
        %v1182 = vsel %vm1148, %v1163, 0.0
        %v1183 = vsel %vm1149, %v1165, 0.0
        %v1184 = vsel %vm1150, %v1167, 0.0
        %v1185 = vsel %vm1151, %v1169, 0.0
        %s1186 = scalar_lea.vmem [#allocation4], 32
        %v1187 = vld [vmem:[%s1186] sm:$0xff]
        %v1188 = vld [vmem:[%s1186 + $0x8] sm:$0xff]
        %v1190 = vsel %vm508, %v1178, 0
        %v1193 = vsel %vm508, %v1179, 0
        %v1196 = vsel %vm508, %v1180, 0
        %v1199 = vsel %vm508, %v1181, 0
        %v1202 = vsel %vm508, %v1182, 0
        %v1205 = vsel %vm508, %v1183, 0
        %v1208 = vsel %vm508, %v1184, 0
        %v1211 = vsel %vm508, %v1185, 0
        %1213 = vmatprep.subr.mxu0 0.0
        %1214 = vmatpush1.msra.mxu0 %v1187
        %1215 = vmatprep.subr.mxu0 0.0
        %1216 = vmatpush1.msra.mxu0 %v1188
        %1217 = vmatprep.subr.mxu0 0.0
        %1218 = vmatpush1.msra.mxu0 0.0
        %1219 = vmatprep.subr.mxu0 0.0
        %1220 = vmatpush1.msra.mxu0 0.0
        %1221 = vmatprep.subr.mxu0 0.0
        %1222 = vmatpush1.msra.mxu0 0.0
        %1223 = vmatprep.subr.mxu0 0.0
        %1224 = vmatpush1.msra.mxu0 0.0
        %1225 = vmatprep.subr.mxu0 0.0
        %1226 = vmatpush1.msra.mxu0 0.0
        %1227 = vmatprep.subr.mxu0 0.0
        %1228 = vmatpush1.msra.mxu0 0.0
        %1229 = vmatprep.subr.mxu0 0.0
        %1230 = vmatpush1.msra.mxu0 0.0
        %1231 = vmatprep.subr.mxu0 0.0
        %1232 = vmatpush1.msra.mxu0 0.0
        %1233 = vmatprep.subr.mxu0 0.0
        %1234 = vmatpush1.msra.mxu0 0.0
        %1235 = vmatprep.subr.mxu0 0.0
        %1236 = vmatpush1.msra.mxu0 0.0
        %1237 = vmatprep.subr.mxu0 0.0
        %1238 = vmatpush1.msra.mxu0 0.0
        %1239 = vmatprep.subr.mxu0 0.0
        %1240 = vmatpush1.msra.mxu0 0.0
        %1241 = vmatprep.subr.mxu0 0.0
        %1242 = vmatpush1.msra.mxu0 0.0
        %1243 = vmatprep.subr.mxu0 0.0
        %1244 = vmatpush1.msra.mxu0 0.0
        %1245 = vmatprep.subr.mxu0 0.0
        %1246 = vmatpush1.msra.mxu0 0.0
        %1247 = vmatprep.subr.mxu0 0.0
        %1248 = vmatpush1.msra.mxu0 0.0
        %1249 = vmatprep.subr.mxu0 0.0
        %1250 = vmatpush1.msra.mxu0 0.0
        %1251 = vmatprep.subr.mxu0 0.0
        %1252 = vmatpush1.msra.mxu0 0.0
        %1253 = vmatprep.subr.mxu0 0.0
        %1254 = vmatpush1.msra.mxu0 0.0
        %1255 = vmatprep.subr.mxu0 0.0
        %1256 = vmatpush1.msra.mxu0 0.0
        %1257 = vmatprep.subr.mxu0 0.0
        %1258 = vmatpush1.msra.mxu0 0.0
        %1259 = vmatprep.subr.mxu0 0.0
        %1260 = vmatpush1.msra.mxu0 0.0
        %1261 = vmatprep.subr.mxu0 0.0
        %1262 = vmatpush1.msra.mxu0 0.0
        %1263 = vmatprep.subr.mxu0 0.0
        %1264 = vmatpush1.msra.mxu0 0.0
        %1265 = vmatprep.subr.mxu0 0.0
        %1266 = vmatpush1.msra.mxu0 0.0
        %1267 = vmatprep.subr.mxu0 0.0
        %1268 = vmatpush1.msra.mxu0 0.0
        %1269 = vmatprep.subr.mxu0 0.0
        %1270 = vmatpush1.msra.mxu0 0.0
        %1271 = vmatprep.subr.mxu0 0.0
        %1272 = vmatpush1.msra.mxu0 0.0
        %1273 = vmatprep.subr.mxu0 0.0
        %1274 = vmatpush1.msra.mxu0 0.0
        %1275 = vmatprep.subr.mxu0 0.0
        %1276 = vmatpush1.msra.mxu0 0.0
        %1277 = vmatprep.mubr.f32.mxu0 0.0
        %1278 = vmatmul.mubr.f32.gmra.mrb[0].mxu0 %v1190
        %v1279 = vpop.f32.mrb[0].mxu0
        %v1280 = vadd.f32 0.0, %v1279
        %v1281 = vpop.f32.mrb[0].mxu0
        %1282 = vmatprep.mubr.f32.mxu0 0.0
        %1283 = vmatmul.mubr.f32.gmra.mrb[0].mxu0 %v1193
        %v1284 = vpop.f32.mrb[0].mxu0
        %v1285 = vadd.f32 0.0, %v1284
        %v1286 = vpop.f32.mrb[0].mxu0
        %1287 = vmatprep.mubr.f32.mxu0 0.0
        %1288 = vmatmul.mubr.f32.gmra.mrb[0].mxu0 %v1196
        %v1289 = vpop.f32.mrb[0].mxu0
        %v1290 = vadd.f32 0.0, %v1289
        %v1291 = vpop.f32.mrb[0].mxu0
        %1292 = vmatprep.mubr.f32.mxu0 0.0
        %1293 = vmatmul.mubr.f32.gmra.mrb[0].mxu0 %v1199
        %v1294 = vpop.f32.mrb[0].mxu0
        %v1295 = vadd.f32 0.0, %v1294
        %v1296 = vpop.f32.mrb[0].mxu0
        %1297 = vmatprep.mubr.f32.mxu0 0.0
        %1298 = vmatmul.mubr.f32.gmra.mrb[0].mxu0 %v1202
        %v1299 = vpop.f32.mrb[0].mxu0
        %v1300 = vadd.f32 0.0, %v1299
        %v1301 = vpop.f32.mrb[0].mxu0
        %1302 = vmatprep.mubr.f32.mxu0 0.0
        %1303 = vmatmul.mubr.f32.gmra.mrb[0].mxu0 %v1205
        %v1304 = vpop.f32.mrb[0].mxu0
        %v1305 = vadd.f32 0.0, %v1304
        %v1306 = vpop.f32.mrb[0].mxu0
        %1307 = vmatprep.mubr.f32.mxu0 0.0
        %1308 = vmatmul.mubr.f32.gmra.mrb[0].mxu0 %v1208
        %v1309 = vpop.f32.mrb[0].mxu0
        %v1310 = vadd.f32 0.0, %v1309
        %v1311 = vpop.f32.mrb[0].mxu0
        %1312 = vmatprep.mubr.f32.mxu0 0.0
        %1313 = vmatmul.mubr.f32.gmra.mrb[0].mxu0 %v1211
        %v1314 = vpop.f32.mrb[0].mxu0
        %v1315 = vadd.f32 0.0, %v1314
        %v1316 = vpop.f32.mrb[0].mxu0
        %1317 = vdwg.mxu0
        %v1318 = vadd.f32 %v1074, %v1280
        %v1319 = vadd.f32 %v1079, %v1285
        %v1320 = vadd.f32 %v1084, %v1290
        %v1321 = vadd.f32 %v1089, %v1295
        %v1322 = vadd.f32 %v1094, %v1300
        %v1323 = vadd.f32 %v1099, %v1305
        %v1324 = vadd.f32 %v1104, %v1310
        %v1325 = vadd.f32 %v1109, %v1315
        %v1326 = vsel %vm823, %v789, 0.0
        %v1327 = vsel %vm824, %v767, 0.0
        %v1328 = vsel %vm825, %v769, 0.0
        %v1329 = vsel %vm826, %v771, 0.0
        %v1330 = vsel %vm827, %v773, 0.0
        %v1331 = vsel %vm828, %v775, 0.0
        %v1332 = vsel %vm829, %v777, 0.0
        %v1333 = vsel %vm830, %v779, 0.0
        %s1334 = scalar_lea.vmem [#allocation4], 48
        %v1335 = vld [vmem:[%s1334] sm:$0xff]
        %v1336 = vld [vmem:[%s1334 + $0x8] sm:$0xff]
        %v1338 = vsel %vm508, %v1326, 0
        %v1341 = vsel %vm508, %v1327, 0
        %v1344 = vsel %vm508, %v1328, 0
        %v1347 = vsel %vm508, %v1329, 0
        %v1350 = vsel %vm508, %v1330, 0
        %v1353 = vsel %vm508, %v1331, 0
        %v1356 = vsel %vm508, %v1332, 0
        %v1359 = vsel %vm508, %v1333, 0
        %1361 = vmatprep.subr.mxu0 0.0
        %1362 = vmatpush1.msra.mxu0 %v1335
        %1363 = vmatprep.subr.mxu0 0.0
        %1364 = vmatpush1.msra.mxu0 %v1336
        %1365 = vmatprep.subr.mxu0 0.0
        %1366 = vmatpush1.msra.mxu0 0.0
        %1367 = vmatprep.subr.mxu0 0.0
        %1368 = vmatpush1.msra.mxu0 0.0
        %1369 = vmatprep.subr.mxu0 0.0
        %1370 = vmatpush1.msra.mxu0 0.0
        %1371 = vmatprep.subr.mxu0 0.0
        %1372 = vmatpush1.msra.mxu0 0.0
        %1373 = vmatprep.subr.mxu0 0.0
        %1374 = vmatpush1.msra.mxu0 0.0
        %1375 = vmatprep.subr.mxu0 0.0
        %1376 = vmatpush1.msra.mxu0 0.0
        %1377 = vmatprep.subr.mxu0 0.0
        %1378 = vmatpush1.msra.mxu0 0.0
        %1379 = vmatprep.subr.mxu0 0.0
        %1380 = vmatpush1.msra.mxu0 0.0
        %1381 = vmatprep.subr.mxu0 0.0
        %1382 = vmatpush1.msra.mxu0 0.0
        %1383 = vmatprep.subr.mxu0 0.0
        %1384 = vmatpush1.msra.mxu0 0.0
        %1385 = vmatprep.subr.mxu0 0.0
        %1386 = vmatpush1.msra.mxu0 0.0
        %1387 = vmatprep.subr.mxu0 0.0
        %1388 = vmatpush1.msra.mxu0 0.0
        %1389 = vmatprep.subr.mxu0 0.0
        %1390 = vmatpush1.msra.mxu0 0.0
        %1391 = vmatprep.subr.mxu0 0.0
        %1392 = vmatpush1.msra.mxu0 0.0
        %1393 = vmatprep.subr.mxu0 0.0
        %1394 = vmatpush1.msra.mxu0 0.0
        %1395 = vmatprep.subr.mxu0 0.0
        %1396 = vmatpush1.msra.mxu0 0.0
        %1397 = vmatprep.subr.mxu0 0.0
        %1398 = vmatpush1.msra.mxu0 0.0
        %1399 = vmatprep.subr.mxu0 0.0
        %1400 = vmatpush1.msra.mxu0 0.0
        %1401 = vmatprep.subr.mxu0 0.0
        %1402 = vmatpush1.msra.mxu0 0.0
        %1403 = vmatprep.subr.mxu0 0.0
        %1404 = vmatpush1.msra.mxu0 0.0
        %1405 = vmatprep.subr.mxu0 0.0
        %1406 = vmatpush1.msra.mxu0 0.0
        %1407 = vmatprep.subr.mxu0 0.0
        %1408 = vmatpush1.msra.mxu0 0.0
        %1409 = vmatprep.subr.mxu0 0.0
        %1410 = vmatpush1.msra.mxu0 0.0
        %1411 = vmatprep.subr.mxu0 0.0
        %1412 = vmatpush1.msra.mxu0 0.0
        %1413 = vmatprep.subr.mxu0 0.0
        %1414 = vmatpush1.msra.mxu0 0.0
        %1415 = vmatprep.subr.mxu0 0.0
        %1416 = vmatpush1.msra.mxu0 0.0
        %1417 = vmatprep.subr.mxu0 0.0
        %1418 = vmatpush1.msra.mxu0 0.0
        %1419 = vmatprep.subr.mxu0 0.0
        %1420 = vmatpush1.msra.mxu0 0.0
        %1421 = vmatprep.subr.mxu0 0.0
        %1422 = vmatpush1.msra.mxu0 0.0
        %1423 = vmatprep.subr.mxu0 0.0
        %1424 = vmatpush1.msra.mxu0 0.0
        %1425 = vmatprep.mubr.f32.mxu0 0.0
        %1426 = vmatmul.mubr.f32.gmra.mrb[0].mxu0 %v1338
        %v1427 = vpop.f32.mrb[0].mxu0
        %v1428 = vadd.f32 0.0, %v1427
        %v1429 = vpop.f32.mrb[0].mxu0
        %1430 = vmatprep.mubr.f32.mxu0 0.0
        %1431 = vmatmul.mubr.f32.gmra.mrb[0].mxu0 %v1341
        %v1432 = vpop.f32.mrb[0].mxu0
        %v1433 = vadd.f32 0.0, %v1432
        %v1434 = vpop.f32.mrb[0].mxu0
        %1435 = vmatprep.mubr.f32.mxu0 0.0
        %1436 = vmatmul.mubr.f32.gmra.mrb[0].mxu0 %v1344
        %v1437 = vpop.f32.mrb[0].mxu0
        %v1438 = vadd.f32 0.0, %v1437
        %v1439 = vpop.f32.mrb[0].mxu0
        %1440 = vmatprep.mubr.f32.mxu0 0.0
        %1441 = vmatmul.mubr.f32.gmra.mrb[0].mxu0 %v1347
        %v1442 = vpop.f32.mrb[0].mxu0
        %v1443 = vadd.f32 0.0, %v1442
        %v1444 = vpop.f32.mrb[0].mxu0
        %1445 = vmatprep.mubr.f32.mxu0 0.0
        %1446 = vmatmul.mubr.f32.gmra.mrb[0].mxu0 %v1350
        %v1447 = vpop.f32.mrb[0].mxu0
        %v1448 = vadd.f32 0.0, %v1447
        %v1449 = vpop.f32.mrb[0].mxu0
        %1450 = vmatprep.mubr.f32.mxu0 0.0
        %1451 = vmatmul.mubr.f32.gmra.mrb[0].mxu0 %v1353
        %v1452 = vpop.f32.mrb[0].mxu0
        %v1453 = vadd.f32 0.0, %v1452
        %v1454 = vpop.f32.mrb[0].mxu0
        %1455 = vmatprep.mubr.f32.mxu0 0.0
        %1456 = vmatmul.mubr.f32.gmra.mrb[0].mxu0 %v1356
        %v1457 = vpop.f32.mrb[0].mxu0
        %v1458 = vadd.f32 0.0, %v1457
        %v1459 = vpop.f32.mrb[0].mxu0
        %1460 = vmatprep.mubr.f32.mxu0 0.0
        %1461 = vmatmul.mubr.f32.gmra.mrb[0].mxu0 %v1359
        %v1462 = vpop.f32.mrb[0].mxu0
        %v1463 = vadd.f32 0.0, %v1462
        %v1464 = vpop.f32.mrb[0].mxu0
        %1465 = vdwg.mxu0
        %v1466 = vadd.f32 %v1318, %v1428
        %v1467 = vadd.f32 %v1319, %v1433
        %v1468 = vadd.f32 %v1320, %v1438
        %v1469 = vadd.f32 %v1321, %v1443
        %v1470 = vadd.f32 %v1322, %v1448
        %v1471 = vadd.f32 %v1323, %v1453
        %v1472 = vadd.f32 %v1324, %v1458
        %v1473 = vadd.f32 %v1325, %v1463
        %s1474 = scalar_lea.vmem [#allocation4], 64
        %v1475 = vld [vmem:[%s1474] sm:$0xff]
        %v1476 = vld [vmem:[%s1474 + $0x8] sm:$0xff]
        %v1478 = vrot.slane %v790, 1
        %v1479 = vsel %vm845, %v861, %v1478
        %v1480 = vsel %vm508, %v1479, 0
        %1482 = vmatprep.subr.mxu0 0.0
        %1483 = vmatpush1.msra.mxu0 %v1475
        %1484 = vmatprep.subr.mxu0 0.0
        %1485 = vmatpush1.msra.mxu0 %v1476
        %1486 = vmatprep.subr.mxu0 0.0
        %1487 = vmatpush1.msra.mxu0 0.0
        %1488 = vmatprep.subr.mxu0 0.0
        %1489 = vmatpush1.msra.mxu0 0.0
        %1490 = vmatprep.subr.mxu0 0.0
        %1491 = vmatpush1.msra.mxu0 0.0
        %1492 = vmatprep.subr.mxu0 0.0
        %1493 = vmatpush1.msra.mxu0 0.0
        %1494 = vmatprep.subr.mxu0 0.0
        %1495 = vmatpush1.msra.mxu0 0.0
        %1496 = vmatprep.subr.mxu0 0.0
        %1497 = vmatpush1.msra.mxu0 0.0
        %1498 = vmatprep.subr.mxu0 0.0
        %1499 = vmatpush1.msra.mxu0 0.0
        %1500 = vmatprep.subr.mxu0 0.0
        %1501 = vmatpush1.msra.mxu0 0.0
        %1502 = vmatprep.subr.mxu0 0.0
        %1503 = vmatpush1.msra.mxu0 0.0
        %1504 = vmatprep.subr.mxu0 0.0
        %1505 = vmatpush1.msra.mxu0 0.0
        %1506 = vmatprep.subr.mxu0 0.0
        %1507 = vmatpush1.msra.mxu0 0.0
        %1508 = vmatprep.subr.mxu0 0.0
        %1509 = vmatpush1.msra.mxu0 0.0
        %1510 = vmatprep.subr.mxu0 0.0
        %1511 = vmatpush1.msra.mxu0 0.0
        %1512 = vmatprep.subr.mxu0 0.0
        %1513 = vmatpush1.msra.mxu0 0.0
        %1514 = vmatprep.subr.mxu0 0.0
        %1515 = vmatpush1.msra.mxu0 0.0
        %1516 = vmatprep.subr.mxu0 0.0
        %1517 = vmatpush1.msra.mxu0 0.0
        %1518 = vmatprep.subr.mxu0 0.0
        %1519 = vmatpush1.msra.mxu0 0.0
        %1520 = vmatprep.subr.mxu0 0.0
        %1521 = vmatpush1.msra.mxu0 0.0
        %1522 = vmatprep.subr.mxu0 0.0
        %1523 = vmatpush1.msra.mxu0 0.0
        %1524 = vmatprep.subr.mxu0 0.0
        %1525 = vmatpush1.msra.mxu0 0.0
        %1526 = vmatprep.subr.mxu0 0.0
        %1527 = vmatpush1.msra.mxu0 0.0
        %1528 = vmatprep.subr.mxu0 0.0
        %1529 = vmatpush1.msra.mxu0 0.0
        %1530 = vmatprep.subr.mxu0 0.0
        %1531 = vmatpush1.msra.mxu0 0.0
        %1532 = vmatprep.subr.mxu0 0.0
        %1533 = vmatpush1.msra.mxu0 0.0
        %1534 = vmatprep.subr.mxu0 0.0
        %1535 = vmatpush1.msra.mxu0 0.0
        %1536 = vmatprep.subr.mxu0 0.0
        %1537 = vmatpush1.msra.mxu0 0.0
        %1538 = vmatprep.subr.mxu0 0.0
        %1539 = vmatpush1.msra.mxu0 0.0
        %1540 = vmatprep.subr.mxu0 0.0
        %1541 = vmatpush1.msra.mxu0 0.0
        %1542 = vmatprep.subr.mxu0 0.0
        %1543 = vmatpush1.msra.mxu0 0.0
        %1544 = vmatprep.subr.mxu0 0.0
        %1545 = vmatpush1.msra.mxu0 0.0
        %1546 = vmatprep.mubr.f32.mxu0 0.0
        %1547 = vmatmul.mubr.f32.gmra.mrb[0].mxu0 %v865
        %v1548 = vpop.f32.mrb[0].mxu0
        %v1549 = vadd.f32 0.0, %v1548
        %v1550 = vpop.f32.mrb[0].mxu0
        %1551 = vmatprep.mubr.f32.mxu0 0.0
        %1552 = vmatmul.mubr.f32.gmra.mrb[0].mxu0 %v867
        %v1553 = vpop.f32.mrb[0].mxu0
        %v1554 = vadd.f32 0.0, %v1553
        %v1555 = vpop.f32.mrb[0].mxu0
        %1556 = vmatprep.mubr.f32.mxu0 0.0
        %1557 = vmatmul.mubr.f32.gmra.mrb[0].mxu0 %v869
        %v1558 = vpop.f32.mrb[0].mxu0
        %v1559 = vadd.f32 0.0, %v1558
        %v1560 = vpop.f32.mrb[0].mxu0
        %1561 = vmatprep.mubr.f32.mxu0 0.0
        %1562 = vmatmul.mubr.f32.gmra.mrb[0].mxu0 %v871
        %v1563 = vpop.f32.mrb[0].mxu0
        %v1564 = vadd.f32 0.0, %v1563
        %v1565 = vpop.f32.mrb[0].mxu0
        %1566 = vmatprep.mubr.f32.mxu0 0.0
        %1567 = vmatmul.mubr.f32.gmra.mrb[0].mxu0 %v873
        %v1568 = vpop.f32.mrb[0].mxu0
        %v1569 = vadd.f32 0.0, %v1568
        %v1570 = vpop.f32.mrb[0].mxu0
        %1571 = vmatprep.mubr.f32.mxu0 0.0
        %1572 = vmatmul.mubr.f32.gmra.mrb[0].mxu0 %v875
        %v1573 = vpop.f32.mrb[0].mxu0
        %v1574 = vadd.f32 0.0, %v1573
        %v1575 = vpop.f32.mrb[0].mxu0
        %1576 = vmatprep.mubr.f32.mxu0 0.0
        %1577 = vmatmul.mubr.f32.gmra.mrb[0].mxu0 %v877
        %v1578 = vpop.f32.mrb[0].mxu0
        %v1579 = vadd.f32 0.0, %v1578
        %v1580 = vpop.f32.mrb[0].mxu0
        %1581 = vmatprep.mubr.f32.mxu0 0.0
        %1582 = vmatmul.mubr.f32.gmra.mrb[0].mxu0 %v1480
        %v1583 = vpop.f32.mrb[0].mxu0
        %v1584 = vadd.f32 0.0, %v1583
        %v1585 = vpop.f32.mrb[0].mxu0
        %1586 = vdwg.mxu0
        %v1587 = vadd.f32 %v1466, %v1549
        %v1588 = vadd.f32 %v1467, %v1554
        %v1589 = vadd.f32 %v1468, %v1559
        %v1590 = vadd.f32 %v1469, %v1564
        %v1591 = vadd.f32 %v1470, %v1569
        %v1592 = vadd.f32 %v1471, %v1574
        %v1593 = vadd.f32 %v1472, %v1579
        %v1594 = vadd.f32 %v1473, %v1584
        %v1595 = vrot.slane %v790, 2
        %v1596 = vsel %vm1152, %v1168, %v1595
        %v1598 = vsel %vm1144, %v1157, 0.0
        %v1599 = vsel %vm1145, %v1159, 0.0
        %v1600 = vsel %vm1146, %v1161, 0.0
        %v1601 = vsel %vm1147, %v1163, 0.0
        %v1602 = vsel %vm1148, %v1165, 0.0
        %v1603 = vsel %vm1149, %v1167, 0.0
        %v1604 = vsel %vm1150, %v1169, 0.0
        %v1605 = vsel %vm1151, %v1596, 0.0
        %s1606 = scalar_lea.vmem [#allocation4], 80
        %v1607 = vld [vmem:[%s1606] sm:$0xff]
        %v1608 = vld [vmem:[%s1606 + $0x8] sm:$0xff]
        %v1610 = vsel %vm508, %v1598, 0
        %v1613 = vsel %vm508, %v1599, 0
        %v1616 = vsel %vm508, %v1600, 0
        %v1619 = vsel %vm508, %v1601, 0
        %v1622 = vsel %vm508, %v1602, 0
        %v1625 = vsel %vm508, %v1603, 0
        %v1628 = vsel %vm508, %v1604, 0
        %v1631 = vsel %vm508, %v1605, 0
        %1633 = vmatprep.subr.mxu0 0.0
        %1634 = vmatpush1.msra.mxu0 %v1607
        %1635 = vmatprep.subr.mxu0 0.0
        %1636 = vmatpush1.msra.mxu0 %v1608
        %1637 = vmatprep.subr.mxu0 0.0
        %1638 = vmatpush1.msra.mxu0 0.0
        %1639 = vmatprep.subr.mxu0 0.0
        %1640 = vmatpush1.msra.mxu0 0.0
        %1641 = vmatprep.subr.mxu0 0.0
        %1642 = vmatpush1.msra.mxu0 0.0
        %1643 = vmatprep.subr.mxu0 0.0
        %1644 = vmatpush1.msra.mxu0 0.0
        %1645 = vmatprep.subr.mxu0 0.0
        %1646 = vmatpush1.msra.mxu0 0.0
        %1647 = vmatprep.subr.mxu0 0.0
        %1648 = vmatpush1.msra.mxu0 0.0
        %1649 = vmatprep.subr.mxu0 0.0
        %1650 = vmatpush1.msra.mxu0 0.0
        %1651 = vmatprep.subr.mxu0 0.0
        %1652 = vmatpush1.msra.mxu0 0.0
        %1653 = vmatprep.subr.mxu0 0.0
        %1654 = vmatpush1.msra.mxu0 0.0
        %1655 = vmatprep.subr.mxu0 0.0
        %1656 = vmatpush1.msra.mxu0 0.0
        %1657 = vmatprep.subr.mxu0 0.0
        %1658 = vmatpush1.msra.mxu0 0.0
        %1659 = vmatprep.subr.mxu0 0.0
        %1660 = vmatpush1.msra.mxu0 0.0
        %1661 = vmatprep.subr.mxu0 0.0
        %1662 = vmatpush1.msra.mxu0 0.0
        %1663 = vmatprep.subr.mxu0 0.0
        %1664 = vmatpush1.msra.mxu0 0.0
        %1665 = vmatprep.subr.mxu0 0.0
        %1666 = vmatpush1.msra.mxu0 0.0
        %1667 = vmatprep.subr.mxu0 0.0
        %1668 = vmatpush1.msra.mxu0 0.0
        %1669 = vmatprep.subr.mxu0 0.0
        %1670 = vmatpush1.msra.mxu0 0.0
        %1671 = vmatprep.subr.mxu0 0.0
        %1672 = vmatpush1.msra.mxu0 0.0
        %1673 = vmatprep.subr.mxu0 0.0
        %1674 = vmatpush1.msra.mxu0 0.0
        %1675 = vmatprep.subr.mxu0 0.0
        %1676 = vmatpush1.msra.mxu0 0.0
        %1677 = vmatprep.subr.mxu0 0.0
        %1678 = vmatpush1.msra.mxu0 0.0
        %1679 = vmatprep.subr.mxu0 0.0
        %1680 = vmatpush1.msra.mxu0 0.0
        %1681 = vmatprep.subr.mxu0 0.0
        %1682 = vmatpush1.msra.mxu0 0.0
        %1683 = vmatprep.subr.mxu0 0.0
        %1684 = vmatpush1.msra.mxu0 0.0
        %1685 = vmatprep.subr.mxu0 0.0
        %1686 = vmatpush1.msra.mxu0 0.0
        %1687 = vmatprep.subr.mxu0 0.0
        %1688 = vmatpush1.msra.mxu0 0.0
        %1689 = vmatprep.subr.mxu0 0.0
        %1690 = vmatpush1.msra.mxu0 0.0
        %1691 = vmatprep.subr.mxu0 0.0
        %1692 = vmatpush1.msra.mxu0 0.0
        %1693 = vmatprep.subr.mxu0 0.0
        %1694 = vmatpush1.msra.mxu0 0.0
        %1695 = vmatprep.subr.mxu0 0.0
        %1696 = vmatpush1.msra.mxu0 0.0
        %1697 = vmatprep.mubr.f32.mxu0 0.0
        %1698 = vmatmul.mubr.f32.gmra.mrb[0].mxu0 %v1610
        %v1699 = vpop.f32.mrb[0].mxu0
        %v1700 = vadd.f32 0.0, %v1699
        %v1701 = vpop.f32.mrb[0].mxu0
        %1702 = vmatprep.mubr.f32.mxu0 0.0
        %1703 = vmatmul.mubr.f32.gmra.mrb[0].mxu0 %v1613
        %v1704 = vpop.f32.mrb[0].mxu0
        %v1705 = vadd.f32 0.0, %v1704
        %v1706 = vpop.f32.mrb[0].mxu0
        %1707 = vmatprep.mubr.f32.mxu0 0.0
        %1708 = vmatmul.mubr.f32.gmra.mrb[0].mxu0 %v1616
        %v1709 = vpop.f32.mrb[0].mxu0
        %v1710 = vadd.f32 0.0, %v1709
        %v1711 = vpop.f32.mrb[0].mxu0
        %1712 = vmatprep.mubr.f32.mxu0 0.0
        %1713 = vmatmul.mubr.f32.gmra.mrb[0].mxu0 %v1619
        %v1714 = vpop.f32.mrb[0].mxu0
        %v1715 = vadd.f32 0.0, %v1714
        %v1716 = vpop.f32.mrb[0].mxu0
        %1717 = vmatprep.mubr.f32.mxu0 0.0
        %1718 = vmatmul.mubr.f32.gmra.mrb[0].mxu0 %v1622
        %v1719 = vpop.f32.mrb[0].mxu0
        %v1720 = vadd.f32 0.0, %v1719
        %v1721 = vpop.f32.mrb[0].mxu0
        %1722 = vmatprep.mubr.f32.mxu0 0.0
        %1723 = vmatmul.mubr.f32.gmra.mrb[0].mxu0 %v1625
        %v1724 = vpop.f32.mrb[0].mxu0
        %v1725 = vadd.f32 0.0, %v1724
        %v1726 = vpop.f32.mrb[0].mxu0
        %1727 = vmatprep.mubr.f32.mxu0 0.0
        %1728 = vmatmul.mubr.f32.gmra.mrb[0].mxu0 %v1628
        %v1729 = vpop.f32.mrb[0].mxu0
        %v1730 = vadd.f32 0.0, %v1729
        %v1731 = vpop.f32.mrb[0].mxu0
        %1732 = vmatprep.mubr.f32.mxu0 0.0
        %1733 = vmatmul.mubr.f32.gmra.mrb[0].mxu0 %v1631
        %v1734 = vpop.f32.mrb[0].mxu0
        %v1735 = vadd.f32 0.0, %v1734
        %v1736 = vpop.f32.mrb[0].mxu0
        %1737 = vdwg.mxu0
        %v1738 = vadd.f32 %v1587, %v1700
        %v1739 = vadd.f32 %v1588, %v1705
        %v1740 = vadd.f32 %v1589, %v1710
        %v1741 = vadd.f32 %v1590, %v1715
        %v1742 = vadd.f32 %v1591, %v1720
        %v1743 = vadd.f32 %v1592, %v1725
        %v1744 = vadd.f32 %v1593, %v1730
        %v1745 = vadd.f32 %v1594, %v1735
        %v1746 = vsel %vm823, %v767, 0.0
        %v1747 = vsel %vm824, %v769, 0.0
        %v1748 = vsel %vm825, %v771, 0.0
        %v1749 = vsel %vm826, %v773, 0.0
        %v1750 = vsel %vm827, %v775, 0.0
        %v1751 = vsel %vm828, %v777, 0.0
        %v1752 = vsel %vm829, %v779, 0.0
        %v1753 = vsel %vm830, %v790, 0.0
        %s1754 = scalar_lea.vmem [#allocation4], 96
        %v1755 = vld [vmem:[%s1754] sm:$0xff]
        %v1756 = vld [vmem:[%s1754 + $0x8] sm:$0xff]
        %v1758 = vsel %vm508, %v1746, 0
        %v1761 = vsel %vm508, %v1747, 0
        %v1764 = vsel %vm508, %v1748, 0
        %v1767 = vsel %vm508, %v1749, 0
        %v1770 = vsel %vm508, %v1750, 0
        %v1773 = vsel %vm508, %v1751, 0
        %v1776 = vsel %vm508, %v1752, 0
        %v1779 = vsel %vm508, %v1753, 0
        %1781 = vmatprep.subr.mxu0 0.0
        %1782 = vmatpush1.msra.mxu0 %v1755
        %1783 = vmatprep.subr.mxu0 0.0
        %1784 = vmatpush1.msra.mxu0 %v1756
        %1785 = vmatprep.subr.mxu0 0.0
        %1786 = vmatpush1.msra.mxu0 0.0
        %1787 = vmatprep.subr.mxu0 0.0
        %1788 = vmatpush1.msra.mxu0 0.0
        %1789 = vmatprep.subr.mxu0 0.0
        %1790 = vmatpush1.msra.mxu0 0.0
        %1791 = vmatprep.subr.mxu0 0.0
        %1792 = vmatpush1.msra.mxu0 0.0
        %1793 = vmatprep.subr.mxu0 0.0
        %1794 = vmatpush1.msra.mxu0 0.0
        %1795 = vmatprep.subr.mxu0 0.0
        %1796 = vmatpush1.msra.mxu0 0.0
        %1797 = vmatprep.subr.mxu0 0.0
        %1798 = vmatpush1.msra.mxu0 0.0
        %1799 = vmatprep.subr.mxu0 0.0
        %1800 = vmatpush1.msra.mxu0 0.0
        %1801 = vmatprep.subr.mxu0 0.0
        %1802 = vmatpush1.msra.mxu0 0.0
        %1803 = vmatprep.subr.mxu0 0.0
        %1804 = vmatpush1.msra.mxu0 0.0
        %1805 = vmatprep.subr.mxu0 0.0
        %1806 = vmatpush1.msra.mxu0 0.0
        %1807 = vmatprep.subr.mxu0 0.0
        %1808 = vmatpush1.msra.mxu0 0.0
        %1809 = vmatprep.subr.mxu0 0.0
        %1810 = vmatpush1.msra.mxu0 0.0
        %1811 = vmatprep.subr.mxu0 0.0
        %1812 = vmatpush1.msra.mxu0 0.0
        %1813 = vmatprep.subr.mxu0 0.0
        %1814 = vmatpush1.msra.mxu0 0.0
        %1815 = vmatprep.subr.mxu0 0.0
        %1816 = vmatpush1.msra.mxu0 0.0
        %1817 = vmatprep.subr.mxu0 0.0
        %1818 = vmatpush1.msra.mxu0 0.0
        %1819 = vmatprep.subr.mxu0 0.0
        %1820 = vmatpush1.msra.mxu0 0.0
        %1821 = vmatprep.subr.mxu0 0.0
        %1822 = vmatpush1.msra.mxu0 0.0
        %1823 = vmatprep.subr.mxu0 0.0
        %1824 = vmatpush1.msra.mxu0 0.0
        %1825 = vmatprep.subr.mxu0 0.0
        %1826 = vmatpush1.msra.mxu0 0.0
        %1827 = vmatprep.subr.mxu0 0.0
        %1828 = vmatpush1.msra.mxu0 0.0
        %1829 = vmatprep.subr.mxu0 0.0
        %1830 = vmatpush1.msra.mxu0 0.0
        %1831 = vmatprep.subr.mxu0 0.0
        %1832 = vmatpush1.msra.mxu0 0.0
        %1833 = vmatprep.subr.mxu0 0.0
        %1834 = vmatpush1.msra.mxu0 0.0
        %1835 = vmatprep.subr.mxu0 0.0
        %1836 = vmatpush1.msra.mxu0 0.0
        %1837 = vmatprep.subr.mxu0 0.0
        %1838 = vmatpush1.msra.mxu0 0.0
        %1839 = vmatprep.subr.mxu0 0.0
        %1840 = vmatpush1.msra.mxu0 0.0
        %1841 = vmatprep.subr.mxu0 0.0
        %1842 = vmatpush1.msra.mxu0 0.0
        %1843 = vmatprep.subr.mxu0 0.0
        %1844 = vmatpush1.msra.mxu0 0.0
        %1845 = vmatprep.mubr.f32.mxu0 0.0
        %1846 = vmatmul.mubr.f32.gmra.mrb[0].mxu0 %v1758
        %v1847 = vpop.f32.mrb[0].mxu0
        %v1848 = vadd.f32 0.0, %v1847
        %v1849 = vpop.f32.mrb[0].mxu0
        %1850 = vmatprep.mubr.f32.mxu0 0.0
        %1851 = vmatmul.mubr.f32.gmra.mrb[0].mxu0 %v1761
        %v1852 = vpop.f32.mrb[0].mxu0
        %v1853 = vadd.f32 0.0, %v1852
        %v1854 = vpop.f32.mrb[0].mxu0
        %1855 = vmatprep.mubr.f32.mxu0 0.0
        %1856 = vmatmul.mubr.f32.gmra.mrb[0].mxu0 %v1764
        %v1857 = vpop.f32.mrb[0].mxu0
        %v1858 = vadd.f32 0.0, %v1857
        %v1859 = vpop.f32.mrb[0].mxu0
        %1860 = vmatprep.mubr.f32.mxu0 0.0
        %1861 = vmatmul.mubr.f32.gmra.mrb[0].mxu0 %v1767
        %v1862 = vpop.f32.mrb[0].mxu0
        %v1863 = vadd.f32 0.0, %v1862
        %v1864 = vpop.f32.mrb[0].mxu0
        %1865 = vmatprep.mubr.f32.mxu0 0.0
        %1866 = vmatmul.mubr.f32.gmra.mrb[0].mxu0 %v1770
        %v1867 = vpop.f32.mrb[0].mxu0
        %v1868 = vadd.f32 0.0, %v1867
        %v1869 = vpop.f32.mrb[0].mxu0
        %1870 = vmatprep.mubr.f32.mxu0 0.0
        %1871 = vmatmul.mubr.f32.gmra.mrb[0].mxu0 %v1773
        %v1872 = vpop.f32.mrb[0].mxu0
        %v1873 = vadd.f32 0.0, %v1872
        %v1874 = vpop.f32.mrb[0].mxu0
        %1875 = vmatprep.mubr.f32.mxu0 0.0
        %1876 = vmatmul.mubr.f32.gmra.mrb[0].mxu0 %v1776
        %v1877 = vpop.f32.mrb[0].mxu0
        %v1878 = vadd.f32 0.0, %v1877
        %v1879 = vpop.f32.mrb[0].mxu0
        %1880 = vmatprep.mubr.f32.mxu0 0.0
        %1881 = vmatmul.mubr.f32.gmra.mrb[0].mxu0 %v1779
        %v1882 = vpop.f32.mrb[0].mxu0
        %v1883 = vadd.f32 0.0, %v1882
        %v1884 = vpop.f32.mrb[0].mxu0
        %1885 = vdwg.mxu0
        %v1886 = vadd.f32 %v1738, %v1848
        %v1887 = vadd.f32 %v1739, %v1853
        %v1888 = vadd.f32 %v1740, %v1858
        %v1889 = vadd.f32 %v1741, %v1863
        %v1890 = vadd.f32 %v1742, %v1868
        %v1891 = vadd.f32 %v1743, %v1873
        %v1892 = vadd.f32 %v1744, %v1878
        %v1893 = vadd.f32 %v1745, %v1883
        %s1894 = scalar_lea.vmem [#allocation4], 112
        %v1895 = vld [vmem:[%s1894] sm:$0xff]
        %v1896 = vld [vmem:[%s1894 + $0x8] sm:$0xff]
        %v1897 = vsel %vm845, %v1478, %v846
        %v1898 = vsel %vm508, %v1897, 0
        %1900 = vmatprep.subr.mxu0 0.0
        %1901 = vmatpush1.msra.mxu0 %v1895
        %1902 = vmatprep.subr.mxu0 0.0
        %1903 = vmatpush1.msra.mxu0 %v1896
        %1904 = vmatprep.subr.mxu0 0.0
        %1905 = vmatpush1.msra.mxu0 0.0
        %1906 = vmatprep.subr.mxu0 0.0
        %1907 = vmatpush1.msra.mxu0 0.0
        %1908 = vmatprep.subr.mxu0 0.0
        %1909 = vmatpush1.msra.mxu0 0.0
        %1910 = vmatprep.subr.mxu0 0.0
        %1911 = vmatpush1.msra.mxu0 0.0
        %1912 = vmatprep.subr.mxu0 0.0
        %1913 = vmatpush1.msra.mxu0 0.0
        %1914 = vmatprep.subr.mxu0 0.0
        %1915 = vmatpush1.msra.mxu0 0.0
        %1916 = vmatprep.subr.mxu0 0.0
        %1917 = vmatpush1.msra.mxu0 0.0
        %1918 = vmatprep.subr.mxu0 0.0
        %1919 = vmatpush1.msra.mxu0 0.0
        %1920 = vmatprep.subr.mxu0 0.0
        %1921 = vmatpush1.msra.mxu0 0.0
        %1922 = vmatprep.subr.mxu0 0.0
        %1923 = vmatpush1.msra.mxu0 0.0
        %1924 = vmatprep.subr.mxu0 0.0
        %1925 = vmatpush1.msra.mxu0 0.0
        %1926 = vmatprep.subr.mxu0 0.0
        %1927 = vmatpush1.msra.mxu0 0.0
        %1928 = vmatprep.subr.mxu0 0.0
        %1929 = vmatpush1.msra.mxu0 0.0
        %1930 = vmatprep.subr.mxu0 0.0
        %1931 = vmatpush1.msra.mxu0 0.0
        %1932 = vmatprep.subr.mxu0 0.0
        %1933 = vmatpush1.msra.mxu0 0.0
        %1934 = vmatprep.subr.mxu0 0.0
        %1935 = vmatpush1.msra.mxu0 0.0
        %1936 = vmatprep.subr.mxu0 0.0
        %1937 = vmatpush1.msra.mxu0 0.0
        %1938 = vmatprep.subr.mxu0 0.0
        %1939 = vmatpush1.msra.mxu0 0.0
        %1940 = vmatprep.subr.mxu0 0.0
        %1941 = vmatpush1.msra.mxu0 0.0
        %1942 = vmatprep.subr.mxu0 0.0
        %1943 = vmatpush1.msra.mxu0 0.0
        %1944 = vmatprep.subr.mxu0 0.0
        %1945 = vmatpush1.msra.mxu0 0.0
        %1946 = vmatprep.subr.mxu0 0.0
        %1947 = vmatpush1.msra.mxu0 0.0
        %1948 = vmatprep.subr.mxu0 0.0
        %1949 = vmatpush1.msra.mxu0 0.0
        %1950 = vmatprep.subr.mxu0 0.0
        %1951 = vmatpush1.msra.mxu0 0.0
        %1952 = vmatprep.subr.mxu0 0.0
        %1953 = vmatpush1.msra.mxu0 0.0
        %1954 = vmatprep.subr.mxu0 0.0
        %1955 = vmatpush1.msra.mxu0 0.0
        %1956 = vmatprep.subr.mxu0 0.0
        %1957 = vmatpush1.msra.mxu0 0.0
        %1958 = vmatprep.subr.mxu0 0.0
        %1959 = vmatpush1.msra.mxu0 0.0
        %1960 = vmatprep.subr.mxu0 0.0
        %1961 = vmatpush1.msra.mxu0 0.0
        %1962 = vmatprep.subr.mxu0 0.0
        %1963 = vmatpush1.msra.mxu0 0.0
        %1964 = vmatprep.mubr.f32.mxu0 0.0
        %1965 = vmatmul.mubr.f32.gmra.mrb[0].mxu0 %v867
        %v1966 = vpop.f32.mrb[0].mxu0
        %v1967 = vadd.f32 0.0, %v1966
        %v1968 = vpop.f32.mrb[0].mxu0
        %1969 = vmatprep.mubr.f32.mxu0 0.0
        %1970 = vmatmul.mubr.f32.gmra.mrb[0].mxu0 %v869
        %v1971 = vpop.f32.mrb[0].mxu0
        %v1972 = vadd.f32 0.0, %v1971
        %v1973 = vpop.f32.mrb[0].mxu0
        %1974 = vmatprep.mubr.f32.mxu0 0.0
        %1975 = vmatmul.mubr.f32.gmra.mrb[0].mxu0 %v871
        %v1976 = vpop.f32.mrb[0].mxu0
        %v1977 = vadd.f32 0.0, %v1976
        %v1978 = vpop.f32.mrb[0].mxu0
        %1979 = vmatprep.mubr.f32.mxu0 0.0
        %1980 = vmatmul.mubr.f32.gmra.mrb[0].mxu0 %v873
        %v1981 = vpop.f32.mrb[0].mxu0
        %v1982 = vadd.f32 0.0, %v1981
        %v1983 = vpop.f32.mrb[0].mxu0
        %1984 = vmatprep.mubr.f32.mxu0 0.0
        %1985 = vmatmul.mubr.f32.gmra.mrb[0].mxu0 %v875
        %v1986 = vpop.f32.mrb[0].mxu0
        %v1987 = vadd.f32 0.0, %v1986
        %v1988 = vpop.f32.mrb[0].mxu0
        %1989 = vmatprep.mubr.f32.mxu0 0.0
        %1990 = vmatmul.mubr.f32.gmra.mrb[0].mxu0 %v877
        %v1991 = vpop.f32.mrb[0].mxu0
        %v1992 = vadd.f32 0.0, %v1991
        %v1993 = vpop.f32.mrb[0].mxu0
        %1994 = vmatprep.mubr.f32.mxu0 0.0
        %1995 = vmatmul.mubr.f32.gmra.mrb[0].mxu0 %v1480
        %v1996 = vpop.f32.mrb[0].mxu0
        %v1997 = vadd.f32 0.0, %v1996
        %v1998 = vpop.f32.mrb[0].mxu0
        %1999 = vmatprep.mubr.f32.mxu0 0.0
        %2000 = vmatmul.mubr.f32.gmra.mrb[0].mxu0 %v1898
        %v2001 = vpop.f32.mrb[0].mxu0
        %v2002 = vadd.f32 0.0, %v2001
        %v2003 = vpop.f32.mrb[0].mxu0
        %2004 = vdwg.mxu0
        %v2005 = vadd.f32 %v1886, %v1967
        %v2006 = vadd.f32 %v1887, %v1972
        %v2007 = vadd.f32 %v1888, %v1977
        %v2008 = vadd.f32 %v1889, %v1982
        %v2009 = vadd.f32 %v1890, %v1987
        %v2010 = vadd.f32 %v1891, %v1992
        %v2011 = vadd.f32 %v1892, %v1997
        %v2012 = vadd.f32 %v1893, %v2002
        %v2013 = vsel %vm1152, %v1595, %v1153
        %v2015 = vsel %vm1144, %v1159, 0.0
        %v2016 = vsel %vm1145, %v1161, 0.0
        %v2017 = vsel %vm1146, %v1163, 0.0
        %v2018 = vsel %vm1147, %v1165, 0.0
        %v2019 = vsel %vm1148, %v1167, 0.0
        %v2020 = vsel %vm1149, %v1169, 0.0
        %v2021 = vsel %vm1150, %v1596, 0.0
        %v2022 = vsel %vm1151, %v2013, 0.0
        %s2023 = scalar_lea.vmem [#allocation4], 128
        %v2024 = vld [vmem:[%s2023] sm:$0xff]
        %v2025 = vld [vmem:[%s2023 + $0x8] sm:$0xff]
        %v2027 = vsel %vm508, %v2015, 0
        %v2030 = vsel %vm508, %v2016, 0
        %v2033 = vsel %vm508, %v2017, 0
        %v2036 = vsel %vm508, %v2018, 0
        %v2039 = vsel %vm508, %v2019, 0
        %v2042 = vsel %vm508, %v2020, 0
        %v2045 = vsel %vm508, %v2021, 0
        %v2048 = vsel %vm508, %v2022, 0
        %2050 = vmatprep.subr.mxu0 0.0
        %2051 = vmatpush1.msra.mxu0 %v2024
        %2052 = vmatprep.subr.mxu0 0.0
        %2053 = vmatpush1.msra.mxu0 %v2025
        %2054 = vmatprep.subr.mxu0 0.0
        %2055 = vmatpush1.msra.mxu0 0.0
        %2056 = vmatprep.subr.mxu0 0.0
        %2057 = vmatpush1.msra.mxu0 0.0
        %2058 = vmatprep.subr.mxu0 0.0
        %2059 = vmatpush1.msra.mxu0 0.0
        %2060 = vmatprep.subr.mxu0 0.0
        %2061 = vmatpush1.msra.mxu0 0.0
        %2062 = vmatprep.subr.mxu0 0.0
        %2063 = vmatpush1.msra.mxu0 0.0
        %2064 = vmatprep.subr.mxu0 0.0
        %2065 = vmatpush1.msra.mxu0 0.0
        %2066 = vmatprep.subr.mxu0 0.0
        %2067 = vmatpush1.msra.mxu0 0.0
        %2068 = vmatprep.subr.mxu0 0.0
        %2069 = vmatpush1.msra.mxu0 0.0
        %2070 = vmatprep.subr.mxu0 0.0
        %2071 = vmatpush1.msra.mxu0 0.0
        %2072 = vmatprep.subr.mxu0 0.0
        %2073 = vmatpush1.msra.mxu0 0.0
        %2074 = vmatprep.subr.mxu0 0.0
        %2075 = vmatpush1.msra.mxu0 0.0
        %2076 = vmatprep.subr.mxu0 0.0
        %2077 = vmatpush1.msra.mxu0 0.0
        %2078 = vmatprep.subr.mxu0 0.0
        %2079 = vmatpush1.msra.mxu0 0.0
        %2080 = vmatprep.subr.mxu0 0.0
        %2081 = vmatpush1.msra.mxu0 0.0
        %2082 = vmatprep.subr.mxu0 0.0
        %2083 = vmatpush1.msra.mxu0 0.0
        %2084 = vmatprep.subr.mxu0 0.0
        %2085 = vmatpush1.msra.mxu0 0.0
        %2086 = vmatprep.subr.mxu0 0.0
        %2087 = vmatpush1.msra.mxu0 0.0
        %2088 = vmatprep.subr.mxu0 0.0
        %2089 = vmatpush1.msra.mxu0 0.0
        %2090 = vmatprep.subr.mxu0 0.0
        %2091 = vmatpush1.msra.mxu0 0.0
        %2092 = vmatprep.subr.mxu0 0.0
        %2093 = vmatpush1.msra.mxu0 0.0
        %2094 = vmatprep.subr.mxu0 0.0
        %2095 = vmatpush1.msra.mxu0 0.0
        %2096 = vmatprep.subr.mxu0 0.0
        %2097 = vmatpush1.msra.mxu0 0.0
        %2098 = vmatprep.subr.mxu0 0.0
        %2099 = vmatpush1.msra.mxu0 0.0
        %2100 = vmatprep.subr.mxu0 0.0
        %2101 = vmatpush1.msra.mxu0 0.0
        %2102 = vmatprep.subr.mxu0 0.0
        %2103 = vmatpush1.msra.mxu0 0.0
        %2104 = vmatprep.subr.mxu0 0.0
        %2105 = vmatpush1.msra.mxu0 0.0
        %2106 = vmatprep.subr.mxu0 0.0
        %2107 = vmatpush1.msra.mxu0 0.0
        %2108 = vmatprep.subr.mxu0 0.0
        %2109 = vmatpush1.msra.mxu0 0.0
        %2110 = vmatprep.subr.mxu0 0.0
        %2111 = vmatpush1.msra.mxu0 0.0
        %2112 = vmatprep.subr.mxu0 0.0
        %2113 = vmatpush1.msra.mxu0 0.0
        %2114 = vmatprep.mubr.f32.mxu0 0.0
        %2115 = vmatmul.mubr.f32.gmra.mrb[0].mxu0 %v2027
        %v2116 = vpop.f32.mrb[0].mxu0
        %v2117 = vadd.f32 0.0, %v2116
        %v2118 = vpop.f32.mrb[0].mxu0
        %2119 = vmatprep.mubr.f32.mxu0 0.0
        %2120 = vmatmul.mubr.f32.gmra.mrb[0].mxu0 %v2030
        %v2121 = vpop.f32.mrb[0].mxu0
        %v2122 = vadd.f32 0.0, %v2121
        %v2123 = vpop.f32.mrb[0].mxu0
        %2124 = vmatprep.mubr.f32.mxu0 0.0
        %2125 = vmatmul.mubr.f32.gmra.mrb[0].mxu0 %v2033
        %v2126 = vpop.f32.mrb[0].mxu0
        %v2127 = vadd.f32 0.0, %v2126
        %v2128 = vpop.f32.mrb[0].mxu0
        %2129 = vmatprep.mubr.f32.mxu0 0.0
        %2130 = vmatmul.mubr.f32.gmra.mrb[0].mxu0 %v2036
        %v2131 = vpop.f32.mrb[0].mxu0
        %v2132 = vadd.f32 0.0, %v2131
        %v2133 = vpop.f32.mrb[0].mxu0
        %2134 = vmatprep.mubr.f32.mxu0 0.0
        %2135 = vmatmul.mubr.f32.gmra.mrb[0].mxu0 %v2039
        %v2136 = vpop.f32.mrb[0].mxu0
        %v2137 = vadd.f32 0.0, %v2136
        %v2138 = vpop.f32.mrb[0].mxu0
        %2139 = vmatprep.mubr.f32.mxu0 0.0
        %2140 = vmatmul.mubr.f32.gmra.mrb[0].mxu0 %v2042
        %v2141 = vpop.f32.mrb[0].mxu0
        %v2142 = vadd.f32 0.0, %v2141
        %v2143 = vpop.f32.mrb[0].mxu0
        %2144 = vmatprep.mubr.f32.mxu0 0.0
        %2145 = vmatmul.mubr.f32.gmra.mrb[0].mxu0 %v2045
        %v2146 = vpop.f32.mrb[0].mxu0
        %v2147 = vadd.f32 0.0, %v2146
        %v2148 = vpop.f32.mrb[0].mxu0
        %2149 = vmatprep.mubr.f32.mxu0 0.0
        %2150 = vmatmul.mubr.f32.gmra.mrb[0].mxu0 %v2048
        %v2151 = vpop.f32.mrb[0].mxu0
        %v2152 = vadd.f32 0.0, %v2151
        %v2153 = vpop.f32.mrb[0].mxu0
        %2154 = vdwg.mxu0
        %v2155 = vadd.f32 %v2005, %v2117
        %v2156 = vadd.f32 %v2006, %v2122
        %v2157 = vadd.f32 %v2007, %v2127
        %v2158 = vadd.f32 %v2008, %v2132
        %v2159 = vadd.f32 %v2009, %v2137
        %v2160 = vadd.f32 %v2010, %v2142
        %v2161 = vadd.f32 %v2011, %v2147
        %v2162 = vadd.f32 %v2012, %v2152
        %v2163 = vld [vmem:[%s7] sm:$0x1]
        %v2165 = vlaneseq
        %v2166 = vshrl.u32 %v2165, 7
        %v2167 = vsub.s32 0, %v2166
        %v2168 = vrot.slane %v2163, %v2167
        %v2170 = vmul.f32 %v2155, %v2168
        %v2171 = vmul.f32 %v2156, %v2168
        %v2172 = vmul.f32 %v2157, %v2168
        %v2173 = vmul.f32 %v2158, %v2168
        %v2174 = vmul.f32 %v2159, %v2168
        %v2175 = vmul.f32 %v2160, %v2168
        %v2176 = vmul.f32 %v2161, %v2168
        %v2177 = vmul.f32 %v2162, %v2168
        %v2178 = vld [vmem:[%s8] sm:$0x1]
        %v2180 = vlaneseq
        %v2181 = vshrl.u32 %v2180, 7
        %v2182 = vsub.s32 0, %v2181
        %v2183 = vrot.slane %v2178, %v2182
        %v2185 = vadd.f32 %v2170, %v2183
        %v2186 = vadd.f32 %v2171, %v2183
        %v2187 = vadd.f32 %v2172, %v2183
        %v2188 = vadd.f32 %v2173, %v2183
        %v2189 = vadd.f32 %v2174, %v2183
        %v2190 = vadd.f32 %v2175, %v2183
        %v2191 = vadd.f32 %v2176, %v2183
        %v2192 = vadd.f32 %v2177, %v2183
        %v2193 = vxor.u32 %v2185, 2147483648
        %v2194 = vxor.u32 %v2186, 2147483648
        %v2195 = vxor.u32 %v2187, 2147483648
        %v2196 = vxor.u32 %v2188, 2147483648
        %v2197 = vxor.u32 %v2189, 2147483648
        %v2198 = vxor.u32 %v2190, 2147483648
        %v2199 = vxor.u32 %v2191, 2147483648
        %v2200 = vxor.u32 %v2192, 2147483648
        %v2201 = vmul.f32 %v2193, 1.442695
        %v2202 = vpow.pop %v2201
        %v2203 = vmul.f32 %v2194, 1.442695
        %v2204 = vpow.pop %v2203
        %v2205 = vmul.f32 %v2195, 1.442695
        %v2206 = vpow.pop %v2205
        %v2207 = vmul.f32 %v2196, 1.442695
        %v2208 = vpow.pop %v2207
        %v2209 = vmul.f32 %v2197, 1.442695
        %v2210 = vpow.pop %v2209
        %v2211 = vmul.f32 %v2198, 1.442695
        %v2212 = vpow.pop %v2211
        %v2213 = vmul.f32 %v2199, 1.442695
        %v2214 = vpow.pop %v2213
        %v2215 = vmul.f32 %v2200, 1.442695
        %v2216 = vpow.pop %v2215
        %v2217 = vadd.f32 %v2202, 1.0
        %v2218 = vadd.f32 %v2204, 1.0
        %v2219 = vadd.f32 %v2206, 1.0
        %v2220 = vadd.f32 %v2208, 1.0
        %v2221 = vadd.f32 %v2210, 1.0
        %v2222 = vadd.f32 %v2212, 1.0
        %v2223 = vadd.f32 %v2214, 1.0
        %v2224 = vadd.f32 %v2216, 1.0
        %v2225 = vrcp.pop %v2217
        %v2226 = vmul.f32 1.0, %v2225
        %v2227 = vrcp.pop %v2218
        %v2228 = vmul.f32 1.0, %v2227
        %v2229 = vrcp.pop %v2219
        %v2230 = vmul.f32 1.0, %v2229
        %v2231 = vrcp.pop %v2220
        %v2232 = vmul.f32 1.0, %v2231
        %v2233 = vrcp.pop %v2221
        %v2234 = vmul.f32 1.0, %v2233
        %v2235 = vrcp.pop %v2222
        %v2236 = vmul.f32 1.0, %v2235
        %v2237 = vrcp.pop %v2223
        %v2238 = vmul.f32 1.0, %v2237
        %v2239 = vrcp.pop %v2224
        %v2240 = vmul.f32 1.0, %v2239
        %v2241 = vmul.f32 %v2185, %v2226
        %v2242 = vmul.f32 %v2186, %v2228
        %v2243 = vmul.f32 %v2187, %v2230
        %v2244 = vmul.f32 %v2188, %v2232
        %v2245 = vmul.f32 %v2189, %v2234
        %v2246 = vmul.f32 %v2190, %v2236
        %v2247 = vmul.f32 %v2191, %v2238
        %v2248 = vmul.f32 %v2192, %v2240
        %v2257 = vrot.slane %v2241, 7
        %v2258 = vrot.slane %v2242, 7
        %v2259 = vsel %vm764, %v2257, %v2258
        %v2260 = vrot.slane %v2243, 7
        %v2261 = vsel %vm764, %v2258, %v2260
        %v2262 = vrot.slane %v2244, 7
        %v2263 = vsel %vm764, %v2260, %v2262
        %v2264 = vrot.slane %v2245, 7
        %v2265 = vsel %vm764, %v2262, %v2264
        %v2266 = vrot.slane %v2246, 7
        %v2267 = vsel %vm764, %v2264, %v2266
        %v2268 = vrot.slane %v2247, 7
        %v2269 = vsel %vm764, %v2266, %v2268
        %v2270 = vrot.slane %v2248, 7
        %v2271 = vsel %vm764, %v2268, %v2270
        %v2281 = vsel %vm764, 0.0, %v2257
        %v2282 = vsel %vm764, %v2270, 0.0
        %v2283 = vsel %vm824, %v2281, 0.0
        %v2284 = vsel %vm825, %v2259, 0.0
        %v2285 = vsel %vm826, %v2261, 0.0
        %v2286 = vsel %vm827, %v2263, 0.0
        %v2287 = vsel %vm828, %v2265, 0.0
        %v2288 = vsel %vm829, %v2267, 0.0
        %v2289 = vsel %vm830, %v2269, 0.0
        %v2290 = vld [vmem:[%s9] sm:$0xff]
        %v2291 = vld [vmem:[%s9 + $0x8] sm:$0xff]
        %v2292 = vld [vmem:[%s9 + $0x10] sm:$0xff]
        %v2293 = vld [vmem:[%s9 + $0x18] sm:$0xff]
        %s2294 = scalar_lea.vmem %s9, 32
        %v2295 = vld [vmem:[%s2294] sm:$0xff]
        %v2296 = vld [vmem:[%s2294 + $0x8] sm:$0xff]
        %v2297 = vld [vmem:[%s2294 + $0x10] sm:$0xff]
        %v2298 = vld [vmem:[%s2294 + $0x18] sm:$0xff]
        %v2300 = vrot.slane %v2281, 1
        %v2301 = vsel %vm845, %v846, %v2300
        %v2302 = vrot.slane %v2259, 1
        %v2303 = vsel %vm845, %v2300, %v2302
        %v2304 = vrot.slane %v2261, 1
        %v2305 = vsel %vm845, %v2302, %v2304
        %v2306 = vrot.slane %v2263, 1
        %v2307 = vsel %vm845, %v2304, %v2306
        %v2308 = vrot.slane %v2265, 1
        %v2309 = vsel %vm845, %v2306, %v2308
        %v2310 = vrot.slane %v2267, 1
        %v2311 = vsel %vm845, %v2308, %v2310
        %v2312 = vrot.slane %v2269, 1
        %v2313 = vsel %vm845, %v2310, %v2312
        %v2314 = vrot.slane %v2271, 1
        %v2315 = vsel %vm845, %v2312, %v2314
        %vm2316 = vcmask 261120
        %v2317 = vsel %vm2316, %v2301, 0
        %v2319 = vsel %vm2316, %v2303, 0
        %v2321 = vsel %vm2316, %v2305, 0
        %v2323 = vsel %vm2316, %v2307, 0
        %v2325 = vsel %vm2316, %v2309, 0
        %v2327 = vsel %vm2316, %v2311, 0
        %v2329 = vsel %vm2316, %v2313, 0
        %v2331 = vsel %vm2316, %v2315, 0
        %2333 = vmatprep.subr.mxu0 0.0
        %2334 = vmatpush1.msra.mxu0 %v2295
        %2335 = vmatprep.subr.mxu0 0.0
        %2336 = vmatpush1.msra.mxu0 %v2296
        %2337 = vmatprep.subr.mxu0 0.0
        %2338 = vmatpush1.msra.mxu0 %v2297
        %2339 = vmatprep.subr.mxu0 0.0
        %2340 = vmatpush1.msra.mxu0 %v2298
        %2341 = vmatprep.subr.mxu0 0.0
        %2342 = vmatpush1.msra.mxu0 0.0
        %2343 = vmatprep.subr.mxu0 0.0
        %2344 = vmatpush1.msra.mxu0 0.0
        %2345 = vmatprep.subr.mxu0 0.0
        %2346 = vmatpush1.msra.mxu0 0.0
        %2347 = vmatprep.subr.mxu0 0.0
        %2348 = vmatpush1.msra.mxu0 0.0
        %2349 = vmatprep.subr.mxu0 0.0
        %2350 = vmatpush1.msra.mxu0 0.0
        %2351 = vmatprep.subr.mxu0 0.0
        %2352 = vmatpush1.msra.mxu0 0.0
        %2353 = vmatprep.subr.mxu0 0.0
        %2354 = vmatpush1.msra.mxu0 0.0
        %2355 = vmatprep.subr.mxu0 0.0
        %2356 = vmatpush1.msra.mxu0 0.0
        %2357 = vmatprep.subr.mxu0 0.0
        %2358 = vmatpush1.msra.mxu0 0.0
        %2359 = vmatprep.subr.mxu0 0.0
        %2360 = vmatpush1.msra.mxu0 0.0
        %2361 = vmatprep.subr.mxu0 0.0
        %2362 = vmatpush1.msra.mxu0 0.0
        %2363 = vmatprep.subr.mxu0 0.0
        %2364 = vmatpush1.msra.mxu0 0.0
        %2365 = vmatprep.subr.mxu0 0.0
        %2366 = vmatpush1.msra.mxu0 0.0
        %2367 = vmatprep.subr.mxu0 0.0
        %2368 = vmatpush1.msra.mxu0 0.0
        %2369 = vmatprep.subr.mxu0 0.0
        %2370 = vmatpush1.msra.mxu0 0.0
        %2371 = vmatprep.subr.mxu0 0.0
        %2372 = vmatpush1.msra.mxu0 0.0
        %2373 = vmatprep.subr.mxu0 0.0
        %2374 = vmatpush1.msra.mxu0 0.0
        %2375 = vmatprep.subr.mxu0 0.0
        %2376 = vmatpush1.msra.mxu0 0.0
        %2377 = vmatprep.subr.mxu0 0.0
        %2378 = vmatpush1.msra.mxu0 0.0
        %2379 = vmatprep.subr.mxu0 0.0
        %2380 = vmatpush1.msra.mxu0 0.0
        %2381 = vmatprep.subr.mxu0 0.0
        %2382 = vmatpush1.msra.mxu0 0.0
        %2383 = vmatprep.subr.mxu0 0.0
        %2384 = vmatpush1.msra.mxu0 0.0
        %2385 = vmatprep.subr.mxu0 0.0
        %2386 = vmatpush1.msra.mxu0 0.0
        %2387 = vmatprep.subr.mxu0 0.0
        %2388 = vmatpush1.msra.mxu0 0.0
        %2389 = vmatprep.subr.mxu0 0.0
        %2390 = vmatpush1.msra.mxu0 0.0
        %2391 = vmatprep.subr.mxu0 0.0
        %2392 = vmatpush1.msra.mxu0 0.0
        %2393 = vmatprep.subr.mxu0 0.0
        %2394 = vmatpush1.msra.mxu0 0.0
        %2395 = vmatprep.subr.mxu0 0.0
        %2396 = vmatpush1.msra.mxu0 0.0
        %2397 = vmatprep.mubr.f32.mxu0 0.0
        %2398 = vmatmul.mubr.f32.gmra.mrb[0].mxu0 %v2317
        %v2399 = vpop.f32.mrb[0].mxu0
        %v2400 = vadd.f32 0.0, %v2399
        %v2401 = vpop.f32.mrb[0].mxu0
        %2402 = vmatprep.mubr.f32.mxu0 0.0
        %2403 = vmatmul.mubr.f32.gmra.mrb[0].mxu0 %v2319
        %v2404 = vpop.f32.mrb[0].mxu0
        %v2405 = vadd.f32 0.0, %v2404
        %v2406 = vpop.f32.mrb[0].mxu0
        %2407 = vmatprep.mubr.f32.mxu0 0.0
        %2408 = vmatmul.mubr.f32.gmra.mrb[0].mxu0 %v2321
        %v2409 = vpop.f32.mrb[0].mxu0
        %v2410 = vadd.f32 0.0, %v2409
        %v2411 = vpop.f32.mrb[0].mxu0
        %2412 = vmatprep.mubr.f32.mxu0 0.0
        %2413 = vmatmul.mubr.f32.gmra.mrb[0].mxu0 %v2323
        %v2414 = vpop.f32.mrb[0].mxu0
        %v2415 = vadd.f32 0.0, %v2414
        %v2416 = vpop.f32.mrb[0].mxu0
        %2417 = vmatprep.mubr.f32.mxu0 0.0
        %2418 = vmatmul.mubr.f32.gmra.mrb[0].mxu0 %v2325
        %v2419 = vpop.f32.mrb[0].mxu0
        %v2420 = vadd.f32 0.0, %v2419
        %v2421 = vpop.f32.mrb[0].mxu0
        %2422 = vmatprep.mubr.f32.mxu0 0.0
        %2423 = vmatmul.mubr.f32.gmra.mrb[0].mxu0 %v2327
        %v2424 = vpop.f32.mrb[0].mxu0
        %v2425 = vadd.f32 0.0, %v2424
        %v2426 = vpop.f32.mrb[0].mxu0
        %2427 = vmatprep.mubr.f32.mxu0 0.0
        %2428 = vmatmul.mubr.f32.gmra.mrb[0].mxu0 %v2329
        %v2429 = vpop.f32.mrb[0].mxu0
        %v2430 = vadd.f32 0.0, %v2429
        %v2431 = vpop.f32.mrb[0].mxu0
        %2432 = vmatprep.mubr.f32.mxu0 0.0
        %2433 = vmatmul.mubr.f32.gmra.mrb[0].mxu0 %v2331
        %v2434 = vpop.f32.mrb[0].mxu0
        %v2435 = vadd.f32 0.0, %v2434
        %v2436 = vpop.f32.mrb[0].mxu0
        %2437 = vdwg.mxu0
        %v2438 = vsel %vm2316, 0.0, 0
        %v2441 = vsel %vm2316, %v2283, 0
        %v2444 = vsel %vm2316, %v2284, 0
        %v2447 = vsel %vm2316, %v2285, 0
        %v2450 = vsel %vm2316, %v2286, 0
        %v2453 = vsel %vm2316, %v2287, 0
        %v2456 = vsel %vm2316, %v2288, 0
        %v2459 = vsel %vm2316, %v2289, 0
        %2461 = vmatprep.subr.mxu0 0.0
        %2462 = vmatpush1.msra.mxu0 %v2290
        %2463 = vmatprep.subr.mxu0 0.0
        %2464 = vmatpush1.msra.mxu0 %v2291
        %2465 = vmatprep.subr.mxu0 0.0
        %2466 = vmatpush1.msra.mxu0 %v2292
        %2467 = vmatprep.subr.mxu0 0.0
        %2468 = vmatpush1.msra.mxu0 %v2293
        %2469 = vmatprep.subr.mxu0 0.0
        %2470 = vmatpush1.msra.mxu0 0.0
        %2471 = vmatprep.subr.mxu0 0.0
        %2472 = vmatpush1.msra.mxu0 0.0
        %2473 = vmatprep.subr.mxu0 0.0
        %2474 = vmatpush1.msra.mxu0 0.0
        %2475 = vmatprep.subr.mxu0 0.0
        %2476 = vmatpush1.msra.mxu0 0.0
        %2477 = vmatprep.subr.mxu0 0.0
        %2478 = vmatpush1.msra.mxu0 0.0
        %2479 = vmatprep.subr.mxu0 0.0
        %2480 = vmatpush1.msra.mxu0 0.0
        %2481 = vmatprep.subr.mxu0 0.0
        %2482 = vmatpush1.msra.mxu0 0.0
        %2483 = vmatprep.subr.mxu0 0.0
        %2484 = vmatpush1.msra.mxu0 0.0
        %2485 = vmatprep.subr.mxu0 0.0
        %2486 = vmatpush1.msra.mxu0 0.0
        %2487 = vmatprep.subr.mxu0 0.0
        %2488 = vmatpush1.msra.mxu0 0.0
        %2489 = vmatprep.subr.mxu0 0.0
        %2490 = vmatpush1.msra.mxu0 0.0
        %2491 = vmatprep.subr.mxu0 0.0
        %2492 = vmatpush1.msra.mxu0 0.0
        %2493 = vmatprep.subr.mxu0 0.0
        %2494 = vmatpush1.msra.mxu0 0.0
        %2495 = vmatprep.subr.mxu0 0.0
        %2496 = vmatpush1.msra.mxu0 0.0
        %2497 = vmatprep.subr.mxu0 0.0
        %2498 = vmatpush1.msra.mxu0 0.0
        %2499 = vmatprep.subr.mxu0 0.0
        %2500 = vmatpush1.msra.mxu0 0.0
        %2501 = vmatprep.subr.mxu0 0.0
        %2502 = vmatpush1.msra.mxu0 0.0
        %2503 = vmatprep.subr.mxu0 0.0
        %2504 = vmatpush1.msra.mxu0 0.0
        %2505 = vmatprep.subr.mxu0 0.0
        %2506 = vmatpush1.msra.mxu0 0.0
        %2507 = vmatprep.subr.mxu0 0.0
        %2508 = vmatpush1.msra.mxu0 0.0
        %2509 = vmatprep.subr.mxu0 0.0
        %2510 = vmatpush1.msra.mxu0 0.0
        %2511 = vmatprep.subr.mxu0 0.0
        %2512 = vmatpush1.msra.mxu0 0.0
        %2513 = vmatprep.subr.mxu0 0.0
        %2514 = vmatpush1.msra.mxu0 0.0
        %2515 = vmatprep.subr.mxu0 0.0
        %2516 = vmatpush1.msra.mxu0 0.0
        %2517 = vmatprep.subr.mxu0 0.0
        %2518 = vmatpush1.msra.mxu0 0.0
        %2519 = vmatprep.subr.mxu0 0.0
        %2520 = vmatpush1.msra.mxu0 0.0
        %2521 = vmatprep.subr.mxu0 0.0
        %2522 = vmatpush1.msra.mxu0 0.0
        %2523 = vmatprep.subr.mxu0 0.0
        %2524 = vmatpush1.msra.mxu0 0.0
        %2525 = vmatprep.mubr.f32.mxu0 0.0
        %2526 = vmatmul.mubr.f32.gmra.mrb[0].mxu0 %v2438
        %v2527 = vpop.f32.mrb[0].mxu0
        %v2528 = vadd.f32 %v2400, %v2527
        %v2529 = vpop.f32.mrb[0].mxu0
        %2530 = vmatprep.mubr.f32.mxu0 0.0
        %2531 = vmatmul.mubr.f32.gmra.mrb[0].mxu0 %v2441
        %v2532 = vpop.f32.mrb[0].mxu0
        %v2533 = vadd.f32 %v2405, %v2532
        %v2534 = vpop.f32.mrb[0].mxu0
        %2535 = vmatprep.mubr.f32.mxu0 0.0
        %2536 = vmatmul.mubr.f32.gmra.mrb[0].mxu0 %v2444
        %v2537 = vpop.f32.mrb[0].mxu0
        %v2538 = vadd.f32 %v2410, %v2537
        %v2539 = vpop.f32.mrb[0].mxu0
        %2540 = vmatprep.mubr.f32.mxu0 0.0
        %2541 = vmatmul.mubr.f32.gmra.mrb[0].mxu0 %v2447
        %v2542 = vpop.f32.mrb[0].mxu0
        %v2543 = vadd.f32 %v2415, %v2542
        %v2544 = vpop.f32.mrb[0].mxu0
        %2545 = vmatprep.mubr.f32.mxu0 0.0
        %2546 = vmatmul.mubr.f32.gmra.mrb[0].mxu0 %v2450
        %v2547 = vpop.f32.mrb[0].mxu0
        %v2548 = vadd.f32 %v2420, %v2547
        %v2549 = vpop.f32.mrb[0].mxu0
        %2550 = vmatprep.mubr.f32.mxu0 0.0
        %2551 = vmatmul.mubr.f32.gmra.mrb[0].mxu0 %v2453
        %v2552 = vpop.f32.mrb[0].mxu0
        %v2553 = vadd.f32 %v2425, %v2552
        %v2554 = vpop.f32.mrb[0].mxu0
        %2555 = vmatprep.mubr.f32.mxu0 0.0
        %2556 = vmatmul.mubr.f32.gmra.mrb[0].mxu0 %v2456
        %v2557 = vpop.f32.mrb[0].mxu0
        %v2558 = vadd.f32 %v2430, %v2557
        %v2559 = vpop.f32.mrb[0].mxu0
        %2560 = vmatprep.mubr.f32.mxu0 0.0
        %2561 = vmatmul.mubr.f32.gmra.mrb[0].mxu0 %v2459
        %v2562 = vpop.f32.mrb[0].mxu0
        %v2563 = vadd.f32 %v2435, %v2562
        %v2564 = vpop.f32.mrb[0].mxu0
        %2565 = vdwg.mxu0
        %v2566 = vrot.slane %v2281, 2
        %v2567 = vsel %vm1152, %v1153, %v2566
        %v2568 = vrot.slane %v2259, 2
        %v2569 = vsel %vm1152, %v2566, %v2568
        %v2570 = vrot.slane %v2261, 2
        %v2571 = vsel %vm1152, %v2568, %v2570
        %v2572 = vrot.slane %v2263, 2
        %v2573 = vsel %vm1152, %v2570, %v2572
        %v2574 = vrot.slane %v2265, 2
        %v2575 = vsel %vm1152, %v2572, %v2574
        %v2576 = vrot.slane %v2267, 2
        %v2577 = vsel %vm1152, %v2574, %v2576
        %v2578 = vrot.slane %v2269, 2
        %v2579 = vsel %vm1152, %v2576, %v2578
        %v2580 = vrot.slane %v2271, 2
        %v2581 = vsel %vm1152, %v2578, %v2580
        %v2590 = vsel %vm1144, %v2567, 0.0
        %v2591 = vsel %vm1145, %v2569, 0.0
        %v2592 = vsel %vm1146, %v2571, 0.0
        %v2593 = vsel %vm1147, %v2573, 0.0
        %v2594 = vsel %vm1148, %v2575, 0.0
        %v2595 = vsel %vm1149, %v2577, 0.0
        %v2596 = vsel %vm1150, %v2579, 0.0
        %v2597 = vsel %vm1151, %v2581, 0.0
        %s2598 = scalar_lea.vmem %s9, 64
        %v2599 = vld [vmem:[%s2598] sm:$0xff]
        %v2600 = vld [vmem:[%s2598 + $0x8] sm:$0xff]
        %v2601 = vld [vmem:[%s2598 + $0x10] sm:$0xff]
        %v2602 = vld [vmem:[%s2598 + $0x18] sm:$0xff]
        %v2604 = vsel %vm2316, %v2590, 0
        %v2607 = vsel %vm2316, %v2591, 0
        %v2610 = vsel %vm2316, %v2592, 0
        %v2613 = vsel %vm2316, %v2593, 0
        %v2616 = vsel %vm2316, %v2594, 0
        %v2619 = vsel %vm2316, %v2595, 0
        %v2622 = vsel %vm2316, %v2596, 0
        %v2625 = vsel %vm2316, %v2597, 0
        %2627 = vmatprep.subr.mxu0 0.0
        %2628 = vmatpush1.msra.mxu0 %v2599
        %2629 = vmatprep.subr.mxu0 0.0
        %2630 = vmatpush1.msra.mxu0 %v2600
        %2631 = vmatprep.subr.mxu0 0.0
        %2632 = vmatpush1.msra.mxu0 %v2601
        %2633 = vmatprep.subr.mxu0 0.0
        %2634 = vmatpush1.msra.mxu0 %v2602
        %2635 = vmatprep.subr.mxu0 0.0
        %2636 = vmatpush1.msra.mxu0 0.0
        %2637 = vmatprep.subr.mxu0 0.0
        %2638 = vmatpush1.msra.mxu0 0.0
        %2639 = vmatprep.subr.mxu0 0.0
        %2640 = vmatpush1.msra.mxu0 0.0
        %2641 = vmatprep.subr.mxu0 0.0
        %2642 = vmatpush1.msra.mxu0 0.0
        %2643 = vmatprep.subr.mxu0 0.0
        %2644 = vmatpush1.msra.mxu0 0.0
        %2645 = vmatprep.subr.mxu0 0.0
        %2646 = vmatpush1.msra.mxu0 0.0
        %2647 = vmatprep.subr.mxu0 0.0
        %2648 = vmatpush1.msra.mxu0 0.0
        %2649 = vmatprep.subr.mxu0 0.0
        %2650 = vmatpush1.msra.mxu0 0.0
        %2651 = vmatprep.subr.mxu0 0.0
        %2652 = vmatpush1.msra.mxu0 0.0
        %2653 = vmatprep.subr.mxu0 0.0
        %2654 = vmatpush1.msra.mxu0 0.0
        %2655 = vmatprep.subr.mxu0 0.0
        %2656 = vmatpush1.msra.mxu0 0.0
        %2657 = vmatprep.subr.mxu0 0.0
        %2658 = vmatpush1.msra.mxu0 0.0
        %2659 = vmatprep.subr.mxu0 0.0
        %2660 = vmatpush1.msra.mxu0 0.0
        %2661 = vmatprep.subr.mxu0 0.0
        %2662 = vmatpush1.msra.mxu0 0.0
        %2663 = vmatprep.subr.mxu0 0.0
        %2664 = vmatpush1.msra.mxu0 0.0
        %2665 = vmatprep.subr.mxu0 0.0
        %2666 = vmatpush1.msra.mxu0 0.0
        %2667 = vmatprep.subr.mxu0 0.0
        %2668 = vmatpush1.msra.mxu0 0.0
        %2669 = vmatprep.subr.mxu0 0.0
        %2670 = vmatpush1.msra.mxu0 0.0
        %2671 = vmatprep.subr.mxu0 0.0
        %2672 = vmatpush1.msra.mxu0 0.0
        %2673 = vmatprep.subr.mxu0 0.0
        %2674 = vmatpush1.msra.mxu0 0.0
        %2675 = vmatprep.subr.mxu0 0.0
        %2676 = vmatpush1.msra.mxu0 0.0
        %2677 = vmatprep.subr.mxu0 0.0
        %2678 = vmatpush1.msra.mxu0 0.0
        %2679 = vmatprep.subr.mxu0 0.0
        %2680 = vmatpush1.msra.mxu0 0.0
        %2681 = vmatprep.subr.mxu0 0.0
        %2682 = vmatpush1.msra.mxu0 0.0
        %2683 = vmatprep.subr.mxu0 0.0
        %2684 = vmatpush1.msra.mxu0 0.0
        %2685 = vmatprep.subr.mxu0 0.0
        %2686 = vmatpush1.msra.mxu0 0.0
        %2687 = vmatprep.subr.mxu0 0.0
        %2688 = vmatpush1.msra.mxu0 0.0
        %2689 = vmatprep.subr.mxu0 0.0
        %2690 = vmatpush1.msra.mxu0 0.0
        %2691 = vmatprep.mubr.f32.mxu0 0.0
        %2692 = vmatmul.mubr.f32.gmra.mrb[0].mxu0 %v2604
        %v2693 = vpop.f32.mrb[0].mxu0
        %v2694 = vadd.f32 0.0, %v2693
        %v2695 = vpop.f32.mrb[0].mxu0
        %2696 = vmatprep.mubr.f32.mxu0 0.0
        %2697 = vmatmul.mubr.f32.gmra.mrb[0].mxu0 %v2607
        %v2698 = vpop.f32.mrb[0].mxu0
        %v2699 = vadd.f32 0.0, %v2698
        %v2700 = vpop.f32.mrb[0].mxu0
        %2701 = vmatprep.mubr.f32.mxu0 0.0
        %2702 = vmatmul.mubr.f32.gmra.mrb[0].mxu0 %v2610
        %v2703 = vpop.f32.mrb[0].mxu0
        %v2704 = vadd.f32 0.0, %v2703
        %v2705 = vpop.f32.mrb[0].mxu0
        %2706 = vmatprep.mubr.f32.mxu0 0.0
        %2707 = vmatmul.mubr.f32.gmra.mrb[0].mxu0 %v2613
        %v2708 = vpop.f32.mrb[0].mxu0
        %v2709 = vadd.f32 0.0, %v2708
        %v2710 = vpop.f32.mrb[0].mxu0
        %2711 = vmatprep.mubr.f32.mxu0 0.0
        %2712 = vmatmul.mubr.f32.gmra.mrb[0].mxu0 %v2616
        %v2713 = vpop.f32.mrb[0].mxu0
        %v2714 = vadd.f32 0.0, %v2713
        %v2715 = vpop.f32.mrb[0].mxu0
        %2716 = vmatprep.mubr.f32.mxu0 0.0
        %2717 = vmatmul.mubr.f32.gmra.mrb[0].mxu0 %v2619
        %v2718 = vpop.f32.mrb[0].mxu0
        %v2719 = vadd.f32 0.0, %v2718
        %v2720 = vpop.f32.mrb[0].mxu0
        %2721 = vmatprep.mubr.f32.mxu0 0.0
        %2722 = vmatmul.mubr.f32.gmra.mrb[0].mxu0 %v2622
        %v2723 = vpop.f32.mrb[0].mxu0
        %v2724 = vadd.f32 0.0, %v2723
        %v2725 = vpop.f32.mrb[0].mxu0
        %2726 = vmatprep.mubr.f32.mxu0 0.0
        %2727 = vmatmul.mubr.f32.gmra.mrb[0].mxu0 %v2625
        %v2728 = vpop.f32.mrb[0].mxu0
        %v2729 = vadd.f32 0.0, %v2728
        %v2730 = vpop.f32.mrb[0].mxu0
        %2731 = vdwg.mxu0
        %v2732 = vadd.f32 %v2528, %v2694
        %v2733 = vadd.f32 %v2533, %v2699
        %v2734 = vadd.f32 %v2538, %v2704
        %v2735 = vadd.f32 %v2543, %v2709
        %v2736 = vadd.f32 %v2548, %v2714
        %v2737 = vadd.f32 %v2553, %v2719
        %v2738 = vadd.f32 %v2558, %v2724
        %v2739 = vadd.f32 %v2563, %v2729
        %v2740 = vsel %vm823, %v2281, 0.0
        %v2741 = vsel %vm824, %v2259, 0.0
        %v2742 = vsel %vm825, %v2261, 0.0
        %v2743 = vsel %vm826, %v2263, 0.0
        %v2744 = vsel %vm827, %v2265, 0.0
        %v2745 = vsel %vm828, %v2267, 0.0
        %v2746 = vsel %vm829, %v2269, 0.0
        %v2747 = vsel %vm830, %v2271, 0.0
        %s2748 = scalar_lea.vmem %s9, 96
        %v2749 = vld [vmem:[%s2748] sm:$0xff]
        %v2750 = vld [vmem:[%s2748 + $0x8] sm:$0xff]
        %v2751 = vld [vmem:[%s2748 + $0x10] sm:$0xff]
        %v2752 = vld [vmem:[%s2748 + $0x18] sm:$0xff]
        %v2754 = vsel %vm2316, %v2740, 0
        %v2757 = vsel %vm2316, %v2741, 0
        %v2760 = vsel %vm2316, %v2742, 0
        %v2763 = vsel %vm2316, %v2743, 0
        %v2766 = vsel %vm2316, %v2744, 0
        %v2769 = vsel %vm2316, %v2745, 0
        %v2772 = vsel %vm2316, %v2746, 0
        %v2775 = vsel %vm2316, %v2747, 0
        %2777 = vmatprep.subr.mxu0 0.0
        %2778 = vmatpush1.msra.mxu0 %v2749
        %2779 = vmatprep.subr.mxu0 0.0
        %2780 = vmatpush1.msra.mxu0 %v2750
        %2781 = vmatprep.subr.mxu0 0.0
        %2782 = vmatpush1.msra.mxu0 %v2751
        %2783 = vmatprep.subr.mxu0 0.0
        %2784 = vmatpush1.msra.mxu0 %v2752
        %2785 = vmatprep.subr.mxu0 0.0
        %2786 = vmatpush1.msra.mxu0 0.0
        %2787 = vmatprep.subr.mxu0 0.0
        %2788 = vmatpush1.msra.mxu0 0.0
        %2789 = vmatprep.subr.mxu0 0.0
        %2790 = vmatpush1.msra.mxu0 0.0
        %2791 = vmatprep.subr.mxu0 0.0
        %2792 = vmatpush1.msra.mxu0 0.0
        %2793 = vmatprep.subr.mxu0 0.0
        %2794 = vmatpush1.msra.mxu0 0.0
        %2795 = vmatprep.subr.mxu0 0.0
        %2796 = vmatpush1.msra.mxu0 0.0
        %2797 = vmatprep.subr.mxu0 0.0
        %2798 = vmatpush1.msra.mxu0 0.0
        %2799 = vmatprep.subr.mxu0 0.0
        %2800 = vmatpush1.msra.mxu0 0.0
        %2801 = vmatprep.subr.mxu0 0.0
        %2802 = vmatpush1.msra.mxu0 0.0
        %2803 = vmatprep.subr.mxu0 0.0
        %2804 = vmatpush1.msra.mxu0 0.0
        %2805 = vmatprep.subr.mxu0 0.0
        %2806 = vmatpush1.msra.mxu0 0.0
        %2807 = vmatprep.subr.mxu0 0.0
        %2808 = vmatpush1.msra.mxu0 0.0
        %2809 = vmatprep.subr.mxu0 0.0
        %2810 = vmatpush1.msra.mxu0 0.0
        %2811 = vmatprep.subr.mxu0 0.0
        %2812 = vmatpush1.msra.mxu0 0.0
        %2813 = vmatprep.subr.mxu0 0.0
        %2814 = vmatpush1.msra.mxu0 0.0
        %2815 = vmatprep.subr.mxu0 0.0
        %2816 = vmatpush1.msra.mxu0 0.0
        %2817 = vmatprep.subr.mxu0 0.0
        %2818 = vmatpush1.msra.mxu0 0.0
        %2819 = vmatprep.subr.mxu0 0.0
        %2820 = vmatpush1.msra.mxu0 0.0
        %2821 = vmatprep.subr.mxu0 0.0
        %2822 = vmatpush1.msra.mxu0 0.0
        %2823 = vmatprep.subr.mxu0 0.0
        %2824 = vmatpush1.msra.mxu0 0.0
        %2825 = vmatprep.subr.mxu0 0.0
        %2826 = vmatpush1.msra.mxu0 0.0
        %2827 = vmatprep.subr.mxu0 0.0
        %2828 = vmatpush1.msra.mxu0 0.0
        %2829 = vmatprep.subr.mxu0 0.0
        %2830 = vmatpush1.msra.mxu0 0.0
        %2831 = vmatprep.subr.mxu0 0.0
        %2832 = vmatpush1.msra.mxu0 0.0
        %2833 = vmatprep.subr.mxu0 0.0
        %2834 = vmatpush1.msra.mxu0 0.0
        %2835 = vmatprep.subr.mxu0 0.0
        %2836 = vmatpush1.msra.mxu0 0.0
        %2837 = vmatprep.subr.mxu0 0.0
        %2838 = vmatpush1.msra.mxu0 0.0
        %2839 = vmatprep.subr.mxu0 0.0
        %2840 = vmatpush1.msra.mxu0 0.0
        %2841 = vmatprep.mubr.f32.mxu0 0.0
        %2842 = vmatmul.mubr.f32.gmra.mrb[0].mxu0 %v2754
        %v2843 = vpop.f32.mrb[0].mxu0
        %v2844 = vadd.f32 0.0, %v2843
        %v2845 = vpop.f32.mrb[0].mxu0
        %2846 = vmatprep.mubr.f32.mxu0 0.0
        %2847 = vmatmul.mubr.f32.gmra.mrb[0].mxu0 %v2757
        %v2848 = vpop.f32.mrb[0].mxu0
        %v2849 = vadd.f32 0.0, %v2848
        %v2850 = vpop.f32.mrb[0].mxu0
        %2851 = vmatprep.mubr.f32.mxu0 0.0
        %2852 = vmatmul.mubr.f32.gmra.mrb[0].mxu0 %v2760
        %v2853 = vpop.f32.mrb[0].mxu0
        %v2854 = vadd.f32 0.0, %v2853
        %v2855 = vpop.f32.mrb[0].mxu0
        %2856 = vmatprep.mubr.f32.mxu0 0.0
        %2857 = vmatmul.mubr.f32.gmra.mrb[0].mxu0 %v2763
        %v2858 = vpop.f32.mrb[0].mxu0
        %v2859 = vadd.f32 0.0, %v2858
        %v2860 = vpop.f32.mrb[0].mxu0
        %2861 = vmatprep.mubr.f32.mxu0 0.0
        %2862 = vmatmul.mubr.f32.gmra.mrb[0].mxu0 %v2766
        %v2863 = vpop.f32.mrb[0].mxu0
        %v2864 = vadd.f32 0.0, %v2863
        %v2865 = vpop.f32.mrb[0].mxu0
        %2866 = vmatprep.mubr.f32.mxu0 0.0
        %2867 = vmatmul.mubr.f32.gmra.mrb[0].mxu0 %v2769
        %v2868 = vpop.f32.mrb[0].mxu0
        %v2869 = vadd.f32 0.0, %v2868
        %v2870 = vpop.f32.mrb[0].mxu0
        %2871 = vmatprep.mubr.f32.mxu0 0.0
        %2872 = vmatmul.mubr.f32.gmra.mrb[0].mxu0 %v2772
        %v2873 = vpop.f32.mrb[0].mxu0
        %v2874 = vadd.f32 0.0, %v2873
        %v2875 = vpop.f32.mrb[0].mxu0
        %2876 = vmatprep.mubr.f32.mxu0 0.0
        %2877 = vmatmul.mubr.f32.gmra.mrb[0].mxu0 %v2775
        %v2878 = vpop.f32.mrb[0].mxu0
        %v2879 = vadd.f32 0.0, %v2878
        %v2880 = vpop.f32.mrb[0].mxu0
        %2881 = vdwg.mxu0
        %v2882 = vadd.f32 %v2732, %v2844
        %v2883 = vadd.f32 %v2733, %v2849
        %v2884 = vadd.f32 %v2734, %v2854
        %v2885 = vadd.f32 %v2735, %v2859
        %v2886 = vadd.f32 %v2736, %v2864
        %v2887 = vadd.f32 %v2737, %v2869
        %v2888 = vadd.f32 %v2738, %v2874
        %v2889 = vadd.f32 %v2739, %v2879
        %s2890 = scalar_lea.vmem %s9, 128
        %v2891 = vld [vmem:[%s2890] sm:$0xff]
        %v2892 = vld [vmem:[%s2890 + $0x8] sm:$0xff]
        %v2893 = vld [vmem:[%s2890 + $0x10] sm:$0xff]
        %v2894 = vld [vmem:[%s2890 + $0x18] sm:$0xff]
        %v2896 = vrot.slane %v2282, 1
        %v2897 = vsel %vm845, %v2314, %v2896
        %v2898 = vsel %vm2316, %v2897, 0
        %2900 = vmatprep.subr.mxu0 0.0
        %2901 = vmatpush1.msra.mxu0 %v2891
        %2902 = vmatprep.subr.mxu0 0.0
        %2903 = vmatpush1.msra.mxu0 %v2892
        %2904 = vmatprep.subr.mxu0 0.0
        %2905 = vmatpush1.msra.mxu0 %v2893
        %2906 = vmatprep.subr.mxu0 0.0
        %2907 = vmatpush1.msra.mxu0 %v2894
        %2908 = vmatprep.subr.mxu0 0.0
        %2909 = vmatpush1.msra.mxu0 0.0
        %2910 = vmatprep.subr.mxu0 0.0
        %2911 = vmatpush1.msra.mxu0 0.0
        %2912 = vmatprep.subr.mxu0 0.0
        %2913 = vmatpush1.msra.mxu0 0.0
        %2914 = vmatprep.subr.mxu0 0.0
        %2915 = vmatpush1.msra.mxu0 0.0
        %2916 = vmatprep.subr.mxu0 0.0
        %2917 = vmatpush1.msra.mxu0 0.0
        %2918 = vmatprep.subr.mxu0 0.0
        %2919 = vmatpush1.msra.mxu0 0.0
        %2920 = vmatprep.subr.mxu0 0.0
        %2921 = vmatpush1.msra.mxu0 0.0
        %2922 = vmatprep.subr.mxu0 0.0
        %2923 = vmatpush1.msra.mxu0 0.0
        %2924 = vmatprep.subr.mxu0 0.0
        %2925 = vmatpush1.msra.mxu0 0.0
        %2926 = vmatprep.subr.mxu0 0.0
        %2927 = vmatpush1.msra.mxu0 0.0
        %2928 = vmatprep.subr.mxu0 0.0
        %2929 = vmatpush1.msra.mxu0 0.0
        %2930 = vmatprep.subr.mxu0 0.0
        %2931 = vmatpush1.msra.mxu0 0.0
        %2932 = vmatprep.subr.mxu0 0.0
        %2933 = vmatpush1.msra.mxu0 0.0
        %2934 = vmatprep.subr.mxu0 0.0
        %2935 = vmatpush1.msra.mxu0 0.0
        %2936 = vmatprep.subr.mxu0 0.0
        %2937 = vmatpush1.msra.mxu0 0.0
        %2938 = vmatprep.subr.mxu0 0.0
        %2939 = vmatpush1.msra.mxu0 0.0
        %2940 = vmatprep.subr.mxu0 0.0
        %2941 = vmatpush1.msra.mxu0 0.0
        %2942 = vmatprep.subr.mxu0 0.0
        %2943 = vmatpush1.msra.mxu0 0.0
        %2944 = vmatprep.subr.mxu0 0.0
        %2945 = vmatpush1.msra.mxu0 0.0
        %2946 = vmatprep.subr.mxu0 0.0
        %2947 = vmatpush1.msra.mxu0 0.0
        %2948 = vmatprep.subr.mxu0 0.0
        %2949 = vmatpush1.msra.mxu0 0.0
        %2950 = vmatprep.subr.mxu0 0.0
        %2951 = vmatpush1.msra.mxu0 0.0
        %2952 = vmatprep.subr.mxu0 0.0
        %2953 = vmatpush1.msra.mxu0 0.0
        %2954 = vmatprep.subr.mxu0 0.0
        %2955 = vmatpush1.msra.mxu0 0.0
        %2956 = vmatprep.subr.mxu0 0.0
        %2957 = vmatpush1.msra.mxu0 0.0
        %2958 = vmatprep.subr.mxu0 0.0
        %2959 = vmatpush1.msra.mxu0 0.0
        %2960 = vmatprep.subr.mxu0 0.0
        %2961 = vmatpush1.msra.mxu0 0.0
        %2962 = vmatprep.subr.mxu0 0.0
        %2963 = vmatpush1.msra.mxu0 0.0
        %2964 = vmatprep.mubr.f32.mxu0 0.0
        %2965 = vmatmul.mubr.f32.gmra.mrb[0].mxu0 %v2319
        %v2966 = vpop.f32.mrb[0].mxu0
        %v2967 = vadd.f32 0.0, %v2966
        %v2968 = vpop.f32.mrb[0].mxu0
        %2969 = vmatprep.mubr.f32.mxu0 0.0
        %2970 = vmatmul.mubr.f32.gmra.mrb[0].mxu0 %v2321
        %v2971 = vpop.f32.mrb[0].mxu0
        %v2972 = vadd.f32 0.0, %v2971
        %v2973 = vpop.f32.mrb[0].mxu0
        %2974 = vmatprep.mubr.f32.mxu0 0.0
        %2975 = vmatmul.mubr.f32.gmra.mrb[0].mxu0 %v2323
        %v2976 = vpop.f32.mrb[0].mxu0
        %v2977 = vadd.f32 0.0, %v2976
        %v2978 = vpop.f32.mrb[0].mxu0
        %2979 = vmatprep.mubr.f32.mxu0 0.0
        %2980 = vmatmul.mubr.f32.gmra.mrb[0].mxu0 %v2325
        %v2981 = vpop.f32.mrb[0].mxu0
        %v2982 = vadd.f32 0.0, %v2981
        %v2983 = vpop.f32.mrb[0].mxu0
        %2984 = vmatprep.mubr.f32.mxu0 0.0
        %2985 = vmatmul.mubr.f32.gmra.mrb[0].mxu0 %v2327
        %v2986 = vpop.f32.mrb[0].mxu0
        %v2987 = vadd.f32 0.0, %v2986
        %v2988 = vpop.f32.mrb[0].mxu0
        %2989 = vmatprep.mubr.f32.mxu0 0.0
        %2990 = vmatmul.mubr.f32.gmra.mrb[0].mxu0 %v2329
        %v2991 = vpop.f32.mrb[0].mxu0
        %v2992 = vadd.f32 0.0, %v2991
        %v2993 = vpop.f32.mrb[0].mxu0
        %2994 = vmatprep.mubr.f32.mxu0 0.0
        %2995 = vmatmul.mubr.f32.gmra.mrb[0].mxu0 %v2331
        %v2996 = vpop.f32.mrb[0].mxu0
        %v2997 = vadd.f32 0.0, %v2996
        %v2998 = vpop.f32.mrb[0].mxu0
        %2999 = vmatprep.mubr.f32.mxu0 0.0
        %3000 = vmatmul.mubr.f32.gmra.mrb[0].mxu0 %v2898
        %v3001 = vpop.f32.mrb[0].mxu0
        %v3002 = vadd.f32 0.0, %v3001
        %v3003 = vpop.f32.mrb[0].mxu0
        %3004 = vdwg.mxu0
        %v3005 = vadd.f32 %v2882, %v2967
        %v3006 = vadd.f32 %v2883, %v2972
        %v3007 = vadd.f32 %v2884, %v2977
        %v3008 = vadd.f32 %v2885, %v2982
        %v3009 = vadd.f32 %v2886, %v2987
        %v3010 = vadd.f32 %v2887, %v2992
        %v3011 = vadd.f32 %v2888, %v2997
        %v3012 = vadd.f32 %v2889, %v3002
        %v3013 = vrot.slane %v2282, 2
        %v3014 = vsel %vm1152, %v2580, %v3013
        %v3016 = vsel %vm1144, %v2569, 0.0
        %v3017 = vsel %vm1145, %v2571, 0.0
        %v3018 = vsel %vm1146, %v2573, 0.0
        %v3019 = vsel %vm1147, %v2575, 0.0
        %v3020 = vsel %vm1148, %v2577, 0.0
        %v3021 = vsel %vm1149, %v2579, 0.0
        %v3022 = vsel %vm1150, %v2581, 0.0
        %v3023 = vsel %vm1151, %v3014, 0.0
        %s3024 = scalar_lea.vmem %s9, 160
        %v3025 = vld [vmem:[%s3024] sm:$0xff]
        %v3026 = vld [vmem:[%s3024 + $0x8] sm:$0xff]
        %v3027 = vld [vmem:[%s3024 + $0x10] sm:$0xff]
        %v3028 = vld [vmem:[%s3024 + $0x18] sm:$0xff]
        %v3030 = vsel %vm2316, %v3016, 0
        %v3033 = vsel %vm2316, %v3017, 0
        %v3036 = vsel %vm2316, %v3018, 0
        %v3039 = vsel %vm2316, %v3019, 0
        %v3042 = vsel %vm2316, %v3020, 0
        %v3045 = vsel %vm2316, %v3021, 0
        %v3048 = vsel %vm2316, %v3022, 0
        %v3051 = vsel %vm2316, %v3023, 0
        %3053 = vmatprep.subr.mxu0 0.0
        %3054 = vmatpush1.msra.mxu0 %v3025
        %3055 = vmatprep.subr.mxu0 0.0
        %3056 = vmatpush1.msra.mxu0 %v3026
        %3057 = vmatprep.subr.mxu0 0.0
        %3058 = vmatpush1.msra.mxu0 %v3027
        %3059 = vmatprep.subr.mxu0 0.0
        %3060 = vmatpush1.msra.mxu0 %v3028
        %3061 = vmatprep.subr.mxu0 0.0
        %3062 = vmatpush1.msra.mxu0 0.0
        %3063 = vmatprep.subr.mxu0 0.0
        %3064 = vmatpush1.msra.mxu0 0.0
        %3065 = vmatprep.subr.mxu0 0.0
        %3066 = vmatpush1.msra.mxu0 0.0
        %3067 = vmatprep.subr.mxu0 0.0
        %3068 = vmatpush1.msra.mxu0 0.0
        %3069 = vmatprep.subr.mxu0 0.0
        %3070 = vmatpush1.msra.mxu0 0.0
        %3071 = vmatprep.subr.mxu0 0.0
        %3072 = vmatpush1.msra.mxu0 0.0
        %3073 = vmatprep.subr.mxu0 0.0
        %3074 = vmatpush1.msra.mxu0 0.0
        %3075 = vmatprep.subr.mxu0 0.0
        %3076 = vmatpush1.msra.mxu0 0.0
        %3077 = vmatprep.subr.mxu0 0.0
        %3078 = vmatpush1.msra.mxu0 0.0
        %3079 = vmatprep.subr.mxu0 0.0
        %3080 = vmatpush1.msra.mxu0 0.0
        %3081 = vmatprep.subr.mxu0 0.0
        %3082 = vmatpush1.msra.mxu0 0.0
        %3083 = vmatprep.subr.mxu0 0.0
        %3084 = vmatpush1.msra.mxu0 0.0
        %3085 = vmatprep.subr.mxu0 0.0
        %3086 = vmatpush1.msra.mxu0 0.0
        %3087 = vmatprep.subr.mxu0 0.0
        %3088 = vmatpush1.msra.mxu0 0.0
        %3089 = vmatprep.subr.mxu0 0.0
        %3090 = vmatpush1.msra.mxu0 0.0
        %3091 = vmatprep.subr.mxu0 0.0
        %3092 = vmatpush1.msra.mxu0 0.0
        %3093 = vmatprep.subr.mxu0 0.0
        %3094 = vmatpush1.msra.mxu0 0.0
        %3095 = vmatprep.subr.mxu0 0.0
        %3096 = vmatpush1.msra.mxu0 0.0
        %3097 = vmatprep.subr.mxu0 0.0
        %3098 = vmatpush1.msra.mxu0 0.0
        %3099 = vmatprep.subr.mxu0 0.0
        %3100 = vmatpush1.msra.mxu0 0.0
        %3101 = vmatprep.subr.mxu0 0.0
        %3102 = vmatpush1.msra.mxu0 0.0
        %3103 = vmatprep.subr.mxu0 0.0
        %3104 = vmatpush1.msra.mxu0 0.0
        %3105 = vmatprep.subr.mxu0 0.0
        %3106 = vmatpush1.msra.mxu0 0.0
        %3107 = vmatprep.subr.mxu0 0.0
        %3108 = vmatpush1.msra.mxu0 0.0
        %3109 = vmatprep.subr.mxu0 0.0
        %3110 = vmatpush1.msra.mxu0 0.0
        %3111 = vmatprep.subr.mxu0 0.0
        %3112 = vmatpush1.msra.mxu0 0.0
        %3113 = vmatprep.subr.mxu0 0.0
        %3114 = vmatpush1.msra.mxu0 0.0
        %3115 = vmatprep.subr.mxu0 0.0
        %3116 = vmatpush1.msra.mxu0 0.0
        %3117 = vmatprep.mubr.f32.mxu0 0.0
        %3118 = vmatmul.mubr.f32.gmra.mrb[0].mxu0 %v3030
        %v3119 = vpop.f32.mrb[0].mxu0
        %v3120 = vadd.f32 0.0, %v3119
        %v3121 = vpop.f32.mrb[0].mxu0
        %3122 = vmatprep.mubr.f32.mxu0 0.0
        %3123 = vmatmul.mubr.f32.gmra.mrb[0].mxu0 %v3033
        %v3124 = vpop.f32.mrb[0].mxu0
        %v3125 = vadd.f32 0.0, %v3124
        %v3126 = vpop.f32.mrb[0].mxu0
        %3127 = vmatprep.mubr.f32.mxu0 0.0
        %3128 = vmatmul.mubr.f32.gmra.mrb[0].mxu0 %v3036
        %v3129 = vpop.f32.mrb[0].mxu0
        %v3130 = vadd.f32 0.0, %v3129
        %v3131 = vpop.f32.mrb[0].mxu0
        %3132 = vmatprep.mubr.f32.mxu0 0.0
        %3133 = vmatmul.mubr.f32.gmra.mrb[0].mxu0 %v3039
        %v3134 = vpop.f32.mrb[0].mxu0
        %v3135 = vadd.f32 0.0, %v3134
        %v3136 = vpop.f32.mrb[0].mxu0
        %3137 = vmatprep.mubr.f32.mxu0 0.0
        %3138 = vmatmul.mubr.f32.gmra.mrb[0].mxu0 %v3042
        %v3139 = vpop.f32.mrb[0].mxu0
        %v3140 = vadd.f32 0.0, %v3139
        %v3141 = vpop.f32.mrb[0].mxu0
        %3142 = vmatprep.mubr.f32.mxu0 0.0
        %3143 = vmatmul.mubr.f32.gmra.mrb[0].mxu0 %v3045
        %v3144 = vpop.f32.mrb[0].mxu0
        %v3145 = vadd.f32 0.0, %v3144
        %v3146 = vpop.f32.mrb[0].mxu0
        %3147 = vmatprep.mubr.f32.mxu0 0.0
        %3148 = vmatmul.mubr.f32.gmra.mrb[0].mxu0 %v3048
        %v3149 = vpop.f32.mrb[0].mxu0
        %v3150 = vadd.f32 0.0, %v3149
        %v3151 = vpop.f32.mrb[0].mxu0
        %3152 = vmatprep.mubr.f32.mxu0 0.0
        %3153 = vmatmul.mubr.f32.gmra.mrb[0].mxu0 %v3051
        %v3154 = vpop.f32.mrb[0].mxu0
        %v3155 = vadd.f32 0.0, %v3154
        %v3156 = vpop.f32.mrb[0].mxu0
        %3157 = vdwg.mxu0
        %v3158 = vadd.f32 %v3005, %v3120
        %v3159 = vadd.f32 %v3006, %v3125
        %v3160 = vadd.f32 %v3007, %v3130
        %v3161 = vadd.f32 %v3008, %v3135
        %v3162 = vadd.f32 %v3009, %v3140
        %v3163 = vadd.f32 %v3010, %v3145
        %v3164 = vadd.f32 %v3011, %v3150
        %v3165 = vadd.f32 %v3012, %v3155
        %v3166 = vsel %vm823, %v2259, 0.0
        %v3167 = vsel %vm824, %v2261, 0.0
        %v3168 = vsel %vm825, %v2263, 0.0
        %v3169 = vsel %vm826, %v2265, 0.0
        %v3170 = vsel %vm827, %v2267, 0.0
        %v3171 = vsel %vm828, %v2269, 0.0
        %v3172 = vsel %vm829, %v2271, 0.0
        %v3173 = vsel %vm830, %v2282, 0.0
        %s3174 = scalar_lea.vmem %s9, 192
        %v3175 = vld [vmem:[%s3174] sm:$0xff]
        %v3176 = vld [vmem:[%s3174 + $0x8] sm:$0xff]
        %v3177 = vld [vmem:[%s3174 + $0x10] sm:$0xff]
        %v3178 = vld [vmem:[%s3174 + $0x18] sm:$0xff]
        %v3180 = vsel %vm2316, %v3166, 0
        %v3183 = vsel %vm2316, %v3167, 0
        %v3186 = vsel %vm2316, %v3168, 0
        %v3189 = vsel %vm2316, %v3169, 0
        %v3192 = vsel %vm2316, %v3170, 0
        %v3195 = vsel %vm2316, %v3171, 0
        %v3198 = vsel %vm2316, %v3172, 0
        %v3201 = vsel %vm2316, %v3173, 0
        %3203 = vmatprep.subr.mxu0 0.0
        %3204 = vmatpush1.msra.mxu0 %v3175
        %3205 = vmatprep.subr.mxu0 0.0
        %3206 = vmatpush1.msra.mxu0 %v3176
        %3207 = vmatprep.subr.mxu0 0.0
        %3208 = vmatpush1.msra.mxu0 %v3177
        %3209 = vmatprep.subr.mxu0 0.0
        %3210 = vmatpush1.msra.mxu0 %v3178
        %3211 = vmatprep.subr.mxu0 0.0
        %3212 = vmatpush1.msra.mxu0 0.0
        %3213 = vmatprep.subr.mxu0 0.0
        %3214 = vmatpush1.msra.mxu0 0.0
        %3215 = vmatprep.subr.mxu0 0.0
        %3216 = vmatpush1.msra.mxu0 0.0
        %3217 = vmatprep.subr.mxu0 0.0
        %3218 = vmatpush1.msra.mxu0 0.0
        %3219 = vmatprep.subr.mxu0 0.0
        %3220 = vmatpush1.msra.mxu0 0.0
        %3221 = vmatprep.subr.mxu0 0.0
        %3222 = vmatpush1.msra.mxu0 0.0
        %3223 = vmatprep.subr.mxu0 0.0
        %3224 = vmatpush1.msra.mxu0 0.0
        %3225 = vmatprep.subr.mxu0 0.0
        %3226 = vmatpush1.msra.mxu0 0.0
        %3227 = vmatprep.subr.mxu0 0.0
        %3228 = vmatpush1.msra.mxu0 0.0
        %3229 = vmatprep.subr.mxu0 0.0
        %3230 = vmatpush1.msra.mxu0 0.0
        %3231 = vmatprep.subr.mxu0 0.0
        %3232 = vmatpush1.msra.mxu0 0.0
        %3233 = vmatprep.subr.mxu0 0.0
        %3234 = vmatpush1.msra.mxu0 0.0
        %3235 = vmatprep.subr.mxu0 0.0
        %3236 = vmatpush1.msra.mxu0 0.0
        %3237 = vmatprep.subr.mxu0 0.0
        %3238 = vmatpush1.msra.mxu0 0.0
        %3239 = vmatprep.subr.mxu0 0.0
        %3240 = vmatpush1.msra.mxu0 0.0
        %3241 = vmatprep.subr.mxu0 0.0
        %3242 = vmatpush1.msra.mxu0 0.0
        %3243 = vmatprep.subr.mxu0 0.0
        %3244 = vmatpush1.msra.mxu0 0.0
        %3245 = vmatprep.subr.mxu0 0.0
        %3246 = vmatpush1.msra.mxu0 0.0
        %3247 = vmatprep.subr.mxu0 0.0
        %3248 = vmatpush1.msra.mxu0 0.0
        %3249 = vmatprep.subr.mxu0 0.0
        %3250 = vmatpush1.msra.mxu0 0.0
        %3251 = vmatprep.subr.mxu0 0.0
        %3252 = vmatpush1.msra.mxu0 0.0
        %3253 = vmatprep.subr.mxu0 0.0
        %3254 = vmatpush1.msra.mxu0 0.0
        %3255 = vmatprep.subr.mxu0 0.0
        %3256 = vmatpush1.msra.mxu0 0.0
        %3257 = vmatprep.subr.mxu0 0.0
        %3258 = vmatpush1.msra.mxu0 0.0
        %3259 = vmatprep.subr.mxu0 0.0
        %3260 = vmatpush1.msra.mxu0 0.0
        %3261 = vmatprep.subr.mxu0 0.0
        %3262 = vmatpush1.msra.mxu0 0.0
        %3263 = vmatprep.subr.mxu0 0.0
        %3264 = vmatpush1.msra.mxu0 0.0
        %3265 = vmatprep.subr.mxu0 0.0
        %3266 = vmatpush1.msra.mxu0 0.0
        %3267 = vmatprep.mubr.f32.mxu0 0.0
        %3268 = vmatmul.mubr.f32.gmra.mrb[0].mxu0 %v3180
        %v3269 = vpop.f32.mrb[0].mxu0
        %v3270 = vadd.f32 0.0, %v3269
        %v3271 = vpop.f32.mrb[0].mxu0
        %3272 = vmatprep.mubr.f32.mxu0 0.0
        %3273 = vmatmul.mubr.f32.gmra.mrb[0].mxu0 %v3183
        %v3274 = vpop.f32.mrb[0].mxu0
        %v3275 = vadd.f32 0.0, %v3274
        %v3276 = vpop.f32.mrb[0].mxu0
        %3277 = vmatprep.mubr.f32.mxu0 0.0
        %3278 = vmatmul.mubr.f32.gmra.mrb[0].mxu0 %v3186
        %v3279 = vpop.f32.mrb[0].mxu0
        %v3280 = vadd.f32 0.0, %v3279
        %v3281 = vpop.f32.mrb[0].mxu0
        %3282 = vmatprep.mubr.f32.mxu0 0.0
        %3283 = vmatmul.mubr.f32.gmra.mrb[0].mxu0 %v3189
        %v3284 = vpop.f32.mrb[0].mxu0
        %v3285 = vadd.f32 0.0, %v3284
        %v3286 = vpop.f32.mrb[0].mxu0
        %3287 = vmatprep.mubr.f32.mxu0 0.0
        %3288 = vmatmul.mubr.f32.gmra.mrb[0].mxu0 %v3192
        %v3289 = vpop.f32.mrb[0].mxu0
        %v3290 = vadd.f32 0.0, %v3289
        %v3291 = vpop.f32.mrb[0].mxu0
        %3292 = vmatprep.mubr.f32.mxu0 0.0
        %3293 = vmatmul.mubr.f32.gmra.mrb[0].mxu0 %v3195
        %v3294 = vpop.f32.mrb[0].mxu0
        %v3295 = vadd.f32 0.0, %v3294
        %v3296 = vpop.f32.mrb[0].mxu0
        %3297 = vmatprep.mubr.f32.mxu0 0.0
        %3298 = vmatmul.mubr.f32.gmra.mrb[0].mxu0 %v3198
        %v3299 = vpop.f32.mrb[0].mxu0
        %v3300 = vadd.f32 0.0, %v3299
        %v3301 = vpop.f32.mrb[0].mxu0
        %3302 = vmatprep.mubr.f32.mxu0 0.0
        %3303 = vmatmul.mubr.f32.gmra.mrb[0].mxu0 %v3201
        %v3304 = vpop.f32.mrb[0].mxu0
        %v3305 = vadd.f32 0.0, %v3304
        %v3306 = vpop.f32.mrb[0].mxu0
        %3307 = vdwg.mxu0
        %v3308 = vadd.f32 %v3158, %v3270
        %v3309 = vadd.f32 %v3159, %v3275
        %v3310 = vadd.f32 %v3160, %v3280
        %v3311 = vadd.f32 %v3161, %v3285
        %v3312 = vadd.f32 %v3162, %v3290
        %v3313 = vadd.f32 %v3163, %v3295
        %v3314 = vadd.f32 %v3164, %v3300
        %v3315 = vadd.f32 %v3165, %v3305
        %s3316 = scalar_lea.vmem %s9, 224
        %v3317 = vld [vmem:[%s3316] sm:$0xff]
        %v3318 = vld [vmem:[%s3316 + $0x8] sm:$0xff]
        %v3319 = vld [vmem:[%s3316 + $0x10] sm:$0xff]
        %v3320 = vld [vmem:[%s3316 + $0x18] sm:$0xff]
        %v3321 = vsel %vm845, %v2896, %v846
        %v3322 = vsel %vm2316, %v3321, 0
        %3324 = vmatprep.subr.mxu0 0.0
        %3325 = vmatpush1.msra.mxu0 %v3317
        %3326 = vmatprep.subr.mxu0 0.0
        %3327 = vmatpush1.msra.mxu0 %v3318
        %3328 = vmatprep.subr.mxu0 0.0
        %3329 = vmatpush1.msra.mxu0 %v3319
        %3330 = vmatprep.subr.mxu0 0.0
        %3331 = vmatpush1.msra.mxu0 %v3320
        %3332 = vmatprep.subr.mxu0 0.0
        %3333 = vmatpush1.msra.mxu0 0.0
        %3334 = vmatprep.subr.mxu0 0.0
        %3335 = vmatpush1.msra.mxu0 0.0
        %3336 = vmatprep.subr.mxu0 0.0
        %3337 = vmatpush1.msra.mxu0 0.0
        %3338 = vmatprep.subr.mxu0 0.0
        %3339 = vmatpush1.msra.mxu0 0.0
        %3340 = vmatprep.subr.mxu0 0.0
        %3341 = vmatpush1.msra.mxu0 0.0
        %3342 = vmatprep.subr.mxu0 0.0
        %3343 = vmatpush1.msra.mxu0 0.0
        %3344 = vmatprep.subr.mxu0 0.0
        %3345 = vmatpush1.msra.mxu0 0.0
        %3346 = vmatprep.subr.mxu0 0.0
        %3347 = vmatpush1.msra.mxu0 0.0
        %3348 = vmatprep.subr.mxu0 0.0
        %3349 = vmatpush1.msra.mxu0 0.0
        %3350 = vmatprep.subr.mxu0 0.0
        %3351 = vmatpush1.msra.mxu0 0.0
        %3352 = vmatprep.subr.mxu0 0.0
        %3353 = vmatpush1.msra.mxu0 0.0
        %3354 = vmatprep.subr.mxu0 0.0
        %3355 = vmatpush1.msra.mxu0 0.0
        %3356 = vmatprep.subr.mxu0 0.0
        %3357 = vmatpush1.msra.mxu0 0.0
        %3358 = vmatprep.subr.mxu0 0.0
        %3359 = vmatpush1.msra.mxu0 0.0
        %3360 = vmatprep.subr.mxu0 0.0
        %3361 = vmatpush1.msra.mxu0 0.0
        %3362 = vmatprep.subr.mxu0 0.0
        %3363 = vmatpush1.msra.mxu0 0.0
        %3364 = vmatprep.subr.mxu0 0.0
        %3365 = vmatpush1.msra.mxu0 0.0
        %3366 = vmatprep.subr.mxu0 0.0
        %3367 = vmatpush1.msra.mxu0 0.0
        %3368 = vmatprep.subr.mxu0 0.0
        %3369 = vmatpush1.msra.mxu0 0.0
        %3370 = vmatprep.subr.mxu0 0.0
        %3371 = vmatpush1.msra.mxu0 0.0
        %3372 = vmatprep.subr.mxu0 0.0
        %3373 = vmatpush1.msra.mxu0 0.0
        %3374 = vmatprep.subr.mxu0 0.0
        %3375 = vmatpush1.msra.mxu0 0.0
        %3376 = vmatprep.subr.mxu0 0.0
        %3377 = vmatpush1.msra.mxu0 0.0
        %3378 = vmatprep.subr.mxu0 0.0
        %3379 = vmatpush1.msra.mxu0 0.0
        %3380 = vmatprep.subr.mxu0 0.0
        %3381 = vmatpush1.msra.mxu0 0.0
        %3382 = vmatprep.subr.mxu0 0.0
        %3383 = vmatpush1.msra.mxu0 0.0
        %3384 = vmatprep.subr.mxu0 0.0
        %3385 = vmatpush1.msra.mxu0 0.0
        %3386 = vmatprep.subr.mxu0 0.0
        %3387 = vmatpush1.msra.mxu0 0.0
        %3388 = vmatprep.mubr.f32.mxu0 0.0
        %3389 = vmatmul.mubr.f32.gmra.mrb[0].mxu0 %v2321
        %v3390 = vpop.f32.mrb[0].mxu0
        %v3391 = vadd.f32 0.0, %v3390
        %v3392 = vpop.f32.mrb[0].mxu0
        %3393 = vmatprep.mubr.f32.mxu0 0.0
        %3394 = vmatmul.mubr.f32.gmra.mrb[0].mxu0 %v2323
        %v3395 = vpop.f32.mrb[0].mxu0
        %v3396 = vadd.f32 0.0, %v3395
        %v3397 = vpop.f32.mrb[0].mxu0
        %3398 = vmatprep.mubr.f32.mxu0 0.0
        %3399 = vmatmul.mubr.f32.gmra.mrb[0].mxu0 %v2325
        %v3400 = vpop.f32.mrb[0].mxu0
        %v3401 = vadd.f32 0.0, %v3400
        %v3402 = vpop.f32.mrb[0].mxu0
        %3403 = vmatprep.mubr.f32.mxu0 0.0
        %3404 = vmatmul.mubr.f32.gmra.mrb[0].mxu0 %v2327
        %v3405 = vpop.f32.mrb[0].mxu0
        %v3406 = vadd.f32 0.0, %v3405
        %v3407 = vpop.f32.mrb[0].mxu0
        %3408 = vmatprep.mubr.f32.mxu0 0.0
        %3409 = vmatmul.mubr.f32.gmra.mrb[0].mxu0 %v2329
        %v3410 = vpop.f32.mrb[0].mxu0
        %v3411 = vadd.f32 0.0, %v3410
        %v3412 = vpop.f32.mrb[0].mxu0
        %3413 = vmatprep.mubr.f32.mxu0 0.0
        %3414 = vmatmul.mubr.f32.gmra.mrb[0].mxu0 %v2331
        %v3415 = vpop.f32.mrb[0].mxu0
        %v3416 = vadd.f32 0.0, %v3415
        %v3417 = vpop.f32.mrb[0].mxu0
        %3418 = vmatprep.mubr.f32.mxu0 0.0
        %3419 = vmatmul.mubr.f32.gmra.mrb[0].mxu0 %v2898
        %v3420 = vpop.f32.mrb[0].mxu0
        %v3421 = vadd.f32 0.0, %v3420
        %v3422 = vpop.f32.mrb[0].mxu0
        %3423 = vmatprep.mubr.f32.mxu0 0.0
        %3424 = vmatmul.mubr.f32.gmra.mrb[0].mxu0 %v3322
        %v3425 = vpop.f32.mrb[0].mxu0
        %v3426 = vadd.f32 0.0, %v3425
        %v3427 = vpop.f32.mrb[0].mxu0
        %3428 = vdwg.mxu0
        %v3429 = vadd.f32 %v3308, %v3391
        %v3430 = vadd.f32 %v3309, %v3396
        %v3431 = vadd.f32 %v3310, %v3401
        %v3432 = vadd.f32 %v3311, %v3406
        %v3433 = vadd.f32 %v3312, %v3411
        %v3434 = vadd.f32 %v3313, %v3416
        %v3435 = vadd.f32 %v3314, %v3421
        %v3436 = vadd.f32 %v3315, %v3426
        %v3437 = vsel %vm1152, %v3013, %v1153
        %v3439 = vsel %vm1144, %v2571, 0.0
        %v3440 = vsel %vm1145, %v2573, 0.0
        %v3441 = vsel %vm1146, %v2575, 0.0
        %v3442 = vsel %vm1147, %v2577, 0.0
        %v3443 = vsel %vm1148, %v2579, 0.0
        %v3444 = vsel %vm1149, %v2581, 0.0
        %v3445 = vsel %vm1150, %v3014, 0.0
        %v3446 = vsel %vm1151, %v3437, 0.0
        %s3447 = scalar_lea.vmem %s9, 256
        %v3448 = vld [vmem:[%s3447] sm:$0xff]
        %v3449 = vld [vmem:[%s3447 + $0x8] sm:$0xff]
        %v3450 = vld [vmem:[%s3447 + $0x10] sm:$0xff]
        %v3451 = vld [vmem:[%s3447 + $0x18] sm:$0xff]
        %v3453 = vsel %vm2316, %v3439, 0
        %v3456 = vsel %vm2316, %v3440, 0
        %v3459 = vsel %vm2316, %v3441, 0
        %v3462 = vsel %vm2316, %v3442, 0
        %v3465 = vsel %vm2316, %v3443, 0
        %v3468 = vsel %vm2316, %v3444, 0
        %v3471 = vsel %vm2316, %v3445, 0
        %v3474 = vsel %vm2316, %v3446, 0
        %3476 = vmatprep.subr.mxu0 0.0
        %3477 = vmatpush1.msra.mxu0 %v3448
        %3478 = vmatprep.subr.mxu0 0.0
        %3479 = vmatpush1.msra.mxu0 %v3449
        %3480 = vmatprep.subr.mxu0 0.0
        %3481 = vmatpush1.msra.mxu0 %v3450
        %3482 = vmatprep.subr.mxu0 0.0
        %3483 = vmatpush1.msra.mxu0 %v3451
        %3484 = vmatprep.subr.mxu0 0.0
        %3485 = vmatpush1.msra.mxu0 0.0
        %3486 = vmatprep.subr.mxu0 0.0
        %3487 = vmatpush1.msra.mxu0 0.0
        %3488 = vmatprep.subr.mxu0 0.0
        %3489 = vmatpush1.msra.mxu0 0.0
        %3490 = vmatprep.subr.mxu0 0.0
        %3491 = vmatpush1.msra.mxu0 0.0
        %3492 = vmatprep.subr.mxu0 0.0
        %3493 = vmatpush1.msra.mxu0 0.0
        %3494 = vmatprep.subr.mxu0 0.0
        %3495 = vmatpush1.msra.mxu0 0.0
        %3496 = vmatprep.subr.mxu0 0.0
        %3497 = vmatpush1.msra.mxu0 0.0
        %3498 = vmatprep.subr.mxu0 0.0
        %3499 = vmatpush1.msra.mxu0 0.0
        %3500 = vmatprep.subr.mxu0 0.0
        %3501 = vmatpush1.msra.mxu0 0.0
        %3502 = vmatprep.subr.mxu0 0.0
        %3503 = vmatpush1.msra.mxu0 0.0
        %3504 = vmatprep.subr.mxu0 0.0
        %3505 = vmatpush1.msra.mxu0 0.0
        %3506 = vmatprep.subr.mxu0 0.0
        %3507 = vmatpush1.msra.mxu0 0.0
        %3508 = vmatprep.subr.mxu0 0.0
        %3509 = vmatpush1.msra.mxu0 0.0
        %3510 = vmatprep.subr.mxu0 0.0
        %3511 = vmatpush1.msra.mxu0 0.0
        %3512 = vmatprep.subr.mxu0 0.0
        %3513 = vmatpush1.msra.mxu0 0.0
        %3514 = vmatprep.subr.mxu0 0.0
        %3515 = vmatpush1.msra.mxu0 0.0
        %3516 = vmatprep.subr.mxu0 0.0
        %3517 = vmatpush1.msra.mxu0 0.0
        %3518 = vmatprep.subr.mxu0 0.0
        %3519 = vmatpush1.msra.mxu0 0.0
        %3520 = vmatprep.subr.mxu0 0.0
        %3521 = vmatpush1.msra.mxu0 0.0
        %3522 = vmatprep.subr.mxu0 0.0
        %3523 = vmatpush1.msra.mxu0 0.0
        %3524 = vmatprep.subr.mxu0 0.0
        %3525 = vmatpush1.msra.mxu0 0.0
        %3526 = vmatprep.subr.mxu0 0.0
        %3527 = vmatpush1.msra.mxu0 0.0
        %3528 = vmatprep.subr.mxu0 0.0
        %3529 = vmatpush1.msra.mxu0 0.0
        %3530 = vmatprep.subr.mxu0 0.0
        %3531 = vmatpush1.msra.mxu0 0.0
        %3532 = vmatprep.subr.mxu0 0.0
        %3533 = vmatpush1.msra.mxu0 0.0
        %3534 = vmatprep.subr.mxu0 0.0
        %3535 = vmatpush1.msra.mxu0 0.0
        %3536 = vmatprep.subr.mxu0 0.0
        %3537 = vmatpush1.msra.mxu0 0.0
        %3538 = vmatprep.subr.mxu0 0.0
        %3539 = vmatpush1.msra.mxu0 0.0
        %3540 = vmatprep.mubr.f32.mxu0 0.0
        %3541 = vmatmul.mubr.f32.gmra.mrb[0].mxu0 %v3453
        %v3542 = vpop.f32.mrb[0].mxu0
        %v3543 = vadd.f32 0.0, %v3542
        %v3544 = vpop.f32.mrb[0].mxu0
        %3545 = vmatprep.mubr.f32.mxu0 0.0
        %3546 = vmatmul.mubr.f32.gmra.mrb[0].mxu0 %v3456
        %v3547 = vpop.f32.mrb[0].mxu0
        %v3548 = vadd.f32 0.0, %v3547
        %v3549 = vpop.f32.mrb[0].mxu0
        %3550 = vmatprep.mubr.f32.mxu0 0.0
        %3551 = vmatmul.mubr.f32.gmra.mrb[0].mxu0 %v3459
        %v3552 = vpop.f32.mrb[0].mxu0
        %v3553 = vadd.f32 0.0, %v3552
        %v3554 = vpop.f32.mrb[0].mxu0
        %3555 = vmatprep.mubr.f32.mxu0 0.0
        %3556 = vmatmul.mubr.f32.gmra.mrb[0].mxu0 %v3462
        %v3557 = vpop.f32.mrb[0].mxu0
        %v3558 = vadd.f32 0.0, %v3557
        %v3559 = vpop.f32.mrb[0].mxu0
        %3560 = vmatprep.mubr.f32.mxu0 0.0
        %3561 = vmatmul.mubr.f32.gmra.mrb[0].mxu0 %v3465
        %v3562 = vpop.f32.mrb[0].mxu0
        %v3563 = vadd.f32 0.0, %v3562
        %v3564 = vpop.f32.mrb[0].mxu0
        %3565 = vmatprep.mubr.f32.mxu0 0.0
        %3566 = vmatmul.mubr.f32.gmra.mrb[0].mxu0 %v3468
        %v3567 = vpop.f32.mrb[0].mxu0
        %v3568 = vadd.f32 0.0, %v3567
        %v3569 = vpop.f32.mrb[0].mxu0
        %3570 = vmatprep.mubr.f32.mxu0 0.0
        %3571 = vmatmul.mubr.f32.gmra.mrb[0].mxu0 %v3471
        %v3572 = vpop.f32.mrb[0].mxu0
        %v3573 = vadd.f32 0.0, %v3572
        %v3574 = vpop.f32.mrb[0].mxu0
        %3575 = vmatprep.mubr.f32.mxu0 0.0
        %3576 = vmatmul.mubr.f32.gmra.mrb[0].mxu0 %v3474
        %v3577 = vpop.f32.mrb[0].mxu0
        %v3578 = vadd.f32 0.0, %v3577
        %v3579 = vpop.f32.mrb[0].mxu0
        %3580 = vdwg.mxu0
        %v3581 = vadd.f32 %v3429, %v3543
        %v3582 = vadd.f32 %v3430, %v3548
        %v3583 = vadd.f32 %v3431, %v3553
        %v3584 = vadd.f32 %v3432, %v3558
        %v3585 = vadd.f32 %v3433, %v3563
        %v3586 = vadd.f32 %v3434, %v3568
        %v3587 = vadd.f32 %v3435, %v3573
        %v3588 = vadd.f32 %v3436, %v3578
        %v3589 = vld [vmem:[%s10] sm:$0x1]
        %v3591 = vlaneseq
        %v3592 = vshrl.u32 %v3591, 7
        %v3593 = vsub.s32 0, %v3592
        %v3594 = vrot.slane %v3589, %v3593
        %v3596 = vmul.f32 %v3581, %v3594
        %v3597 = vmul.f32 %v3582, %v3594
        %v3598 = vmul.f32 %v3583, %v3594
        %v3599 = vmul.f32 %v3584, %v3594
        %v3600 = vmul.f32 %v3585, %v3594
        %v3601 = vmul.f32 %v3586, %v3594
        %v3602 = vmul.f32 %v3587, %v3594
        %v3603 = vmul.f32 %v3588, %v3594
        %v3604 = vld [vmem:[%s11] sm:$0x1]
        %v3606 = vlaneseq
        %v3607 = vshrl.u32 %v3606, 7
        %v3608 = vsub.s32 0, %v3607
        %v3609 = vrot.slane %v3604, %v3608
        %v3611 = vadd.f32 %v3596, %v3609
        %v3612 = vadd.f32 %v3597, %v3609
        %v3613 = vadd.f32 %v3598, %v3609
        %v3614 = vadd.f32 %v3599, %v3609
        %v3615 = vadd.f32 %v3600, %v3609
        %v3616 = vadd.f32 %v3601, %v3609
        %v3617 = vadd.f32 %v3602, %v3609
        %v3618 = vadd.f32 %v3603, %v3609
        %v3619 = vxor.u32 %v3611, 2147483648
        %v3620 = vxor.u32 %v3612, 2147483648
        %v3621 = vxor.u32 %v3613, 2147483648
        %v3622 = vxor.u32 %v3614, 2147483648
        %v3623 = vxor.u32 %v3615, 2147483648
        %v3624 = vxor.u32 %v3616, 2147483648
        %v3625 = vxor.u32 %v3617, 2147483648
        %v3626 = vxor.u32 %v3618, 2147483648
        %v3627 = vmul.f32 %v3619, 1.442695
        %v3628 = vpow.pop %v3627
        %v3629 = vmul.f32 %v3620, 1.442695
        %v3630 = vpow.pop %v3629
        %v3631 = vmul.f32 %v3621, 1.442695
        %v3632 = vpow.pop %v3631
        %v3633 = vmul.f32 %v3622, 1.442695
        %v3634 = vpow.pop %v3633
        %v3635 = vmul.f32 %v3623, 1.442695
        %v3636 = vpow.pop %v3635
        %v3637 = vmul.f32 %v3624, 1.442695
        %v3638 = vpow.pop %v3637
        %v3639 = vmul.f32 %v3625, 1.442695
        %v3640 = vpow.pop %v3639
        %v3641 = vmul.f32 %v3626, 1.442695
        %v3642 = vpow.pop %v3641
        %v3643 = vadd.f32 %v3628, 1.0
        %v3644 = vadd.f32 %v3630, 1.0
        %v3645 = vadd.f32 %v3632, 1.0
        %v3646 = vadd.f32 %v3634, 1.0
        %v3647 = vadd.f32 %v3636, 1.0
        %v3648 = vadd.f32 %v3638, 1.0
        %v3649 = vadd.f32 %v3640, 1.0
        %v3650 = vadd.f32 %v3642, 1.0
        %v3651 = vrcp.pop %v3643
        %v3652 = vmul.f32 1.0, %v3651
        %v3653 = vrcp.pop %v3644
        %v3654 = vmul.f32 1.0, %v3653
        %v3655 = vrcp.pop %v3645
        %v3656 = vmul.f32 1.0, %v3655
        %v3657 = vrcp.pop %v3646
        %v3658 = vmul.f32 1.0, %v3657
        %v3659 = vrcp.pop %v3647
        %v3660 = vmul.f32 1.0, %v3659
        %v3661 = vrcp.pop %v3648
        %v3662 = vmul.f32 1.0, %v3661
        %v3663 = vrcp.pop %v3649
        %v3664 = vmul.f32 1.0, %v3663
        %v3665 = vrcp.pop %v3650
        %v3666 = vmul.f32 1.0, %v3665
        %v3667 = vmul.f32 %v3611, %v3652
        %v3668 = vmul.f32 %v3612, %v3654
        %v3669 = vmul.f32 %v3613, %v3656
        %v3670 = vmul.f32 %v3614, %v3658
        %v3671 = vmul.f32 %v3615, %v3660
        %v3672 = vmul.f32 %v3616, %v3662
        %v3673 = vmul.f32 %v3617, %v3664
        %v3674 = vmul.f32 %v3618, %v3666
        %v3675 = vld [vmem:[%s12] sm:$0xff]
        %v3676 = vld [vmem:[%s12 + $0x8] sm:$0xff]
        %v3677 = vld [vmem:[%s12 + $0x10] sm:$0xff]
        %v3678 = vld [vmem:[%s12 + $0x18] sm:$0xff]
        %v3679 = vld [vmem:[%s13] sm:$0x1]
        %v3681 = vlaneseq
        %v3682 = vshrl.u32 %v3681, 7
        %v3683 = vsub.s32 0, %v3682
        %v3684 = vrot.slane %v3679, %v3683
        %v3687 = vsel %vm2316, %v3667, 0
        %v3690 = vsel %vm2316, %v3668, 0
        %v3693 = vsel %vm2316, %v3669, 0
        %v3696 = vsel %vm2316, %v3670, 0
        %v3699 = vsel %vm2316, %v3671, 0
        %v3702 = vsel %vm2316, %v3672, 0
        %v3705 = vsel %vm2316, %v3673, 0
        %v3708 = vsel %vm2316, %v3674, 0
        %3710 = vmatprep.subr.mxu0 0.0
        %3711 = vmatpush1.msra.mxu0 %v3675
        %3712 = vmatprep.subr.mxu0 0.0
        %3713 = vmatpush1.msra.mxu0 %v3676
        %3714 = vmatprep.subr.mxu0 0.0
        %3715 = vmatpush1.msra.mxu0 %v3677
        %3716 = vmatprep.subr.mxu0 0.0
        %3717 = vmatpush1.msra.mxu0 %v3678
        %3718 = vmatprep.subr.mxu0 0.0
        %3719 = vmatpush1.msra.mxu0 0.0
        %3720 = vmatprep.subr.mxu0 0.0
        %3721 = vmatpush1.msra.mxu0 0.0
        %3722 = vmatprep.subr.mxu0 0.0
        %3723 = vmatpush1.msra.mxu0 0.0
        %3724 = vmatprep.subr.mxu0 0.0
        %3725 = vmatpush1.msra.mxu0 0.0
        %3726 = vmatprep.subr.mxu0 0.0
        %3727 = vmatpush1.msra.mxu0 0.0
        %3728 = vmatprep.subr.mxu0 0.0
        %3729 = vmatpush1.msra.mxu0 0.0
        %3730 = vmatprep.subr.mxu0 0.0
        %3731 = vmatpush1.msra.mxu0 0.0
        %3732 = vmatprep.subr.mxu0 0.0
        %3733 = vmatpush1.msra.mxu0 0.0
        %3734 = vmatprep.subr.mxu0 0.0
        %3735 = vmatpush1.msra.mxu0 0.0
        %3736 = vmatprep.subr.mxu0 0.0
        %3737 = vmatpush1.msra.mxu0 0.0
        %3738 = vmatprep.subr.mxu0 0.0
        %3739 = vmatpush1.msra.mxu0 0.0
        %3740 = vmatprep.subr.mxu0 0.0
        %3741 = vmatpush1.msra.mxu0 0.0
        %3742 = vmatprep.subr.mxu0 0.0
        %3743 = vmatpush1.msra.mxu0 0.0
        %3744 = vmatprep.subr.mxu0 0.0
        %3745 = vmatpush1.msra.mxu0 0.0
        %3746 = vmatprep.subr.mxu0 0.0
        %3747 = vmatpush1.msra.mxu0 0.0
        %3748 = vmatprep.subr.mxu0 0.0
        %3749 = vmatpush1.msra.mxu0 0.0
        %3750 = vmatprep.subr.mxu0 0.0
        %3751 = vmatpush1.msra.mxu0 0.0
        %3752 = vmatprep.subr.mxu0 0.0
        %3753 = vmatpush1.msra.mxu0 0.0
        %3754 = vmatprep.subr.mxu0 0.0
        %3755 = vmatpush1.msra.mxu0 0.0
        %3756 = vmatprep.subr.mxu0 0.0
        %3757 = vmatpush1.msra.mxu0 0.0
        %3758 = vmatprep.subr.mxu0 0.0
        %3759 = vmatpush1.msra.mxu0 0.0
        %3760 = vmatprep.subr.mxu0 0.0
        %3761 = vmatpush1.msra.mxu0 0.0
        %3762 = vmatprep.subr.mxu0 0.0
        %3763 = vmatpush1.msra.mxu0 0.0
        %3764 = vmatprep.subr.mxu0 0.0
        %3765 = vmatpush1.msra.mxu0 0.0
        %3766 = vmatprep.subr.mxu0 0.0
        %3767 = vmatpush1.msra.mxu0 0.0
        %3768 = vmatprep.subr.mxu0 0.0
        %3769 = vmatpush1.msra.mxu0 0.0
        %3770 = vmatprep.subr.mxu0 0.0
        %3771 = vmatpush1.msra.mxu0 0.0
        %3772 = vmatprep.subr.mxu0 0.0
        %3773 = vmatpush1.msra.mxu0 0.0
        %3774 = vmatprep.mubr.f32.mxu0 0.0
        %3775 = vmatmul.mubr.f32.gmra.mrb[0].mxu0 %v3687
        %v3776 = vpop.f32.mrb[0].mxu0
        %v3777 = vadd.f32 %v3684, %v3776
        %v3778 = vpop.f32.mrb[0].mxu0
        %3779 = vmatprep.mubr.f32.mxu0 0.0
        %3780 = vmatmul.mubr.f32.gmra.mrb[0].mxu0 %v3690
        %v3781 = vpop.f32.mrb[0].mxu0
        %v3782 = vadd.f32 %v3684, %v3781
        %v3783 = vpop.f32.mrb[0].mxu0
        %3784 = vmatprep.mubr.f32.mxu0 0.0
        %3785 = vmatmul.mubr.f32.gmra.mrb[0].mxu0 %v3693
        %v3786 = vpop.f32.mrb[0].mxu0
        %v3787 = vadd.f32 %v3684, %v3786
        %v3788 = vpop.f32.mrb[0].mxu0
        %3789 = vmatprep.mubr.f32.mxu0 0.0
        %3790 = vmatmul.mubr.f32.gmra.mrb[0].mxu0 %v3696
        %v3791 = vpop.f32.mrb[0].mxu0
        %v3792 = vadd.f32 %v3684, %v3791
        %v3793 = vpop.f32.mrb[0].mxu0
        %3794 = vmatprep.mubr.f32.mxu0 0.0
        %3795 = vmatmul.mubr.f32.gmra.mrb[0].mxu0 %v3699
        %v3796 = vpop.f32.mrb[0].mxu0
        %v3797 = vadd.f32 %v3684, %v3796
        %v3798 = vpop.f32.mrb[0].mxu0
        %3799 = vmatprep.mubr.f32.mxu0 0.0
        %3800 = vmatmul.mubr.f32.gmra.mrb[0].mxu0 %v3702
        %v3801 = vpop.f32.mrb[0].mxu0
        %v3802 = vadd.f32 %v3684, %v3801
        %v3803 = vpop.f32.mrb[0].mxu0
        %3804 = vmatprep.mubr.f32.mxu0 0.0
        %3805 = vmatmul.mubr.f32.gmra.mrb[0].mxu0 %v3705
        %v3806 = vpop.f32.mrb[0].mxu0
        %v3807 = vadd.f32 %v3684, %v3806
        %v3808 = vpop.f32.mrb[0].mxu0
        %3809 = vmatprep.mubr.f32.mxu0 0.0
        %3810 = vmatmul.mubr.f32.gmra.mrb[0].mxu0 %v3708
        %v3811 = vpop.f32.mrb[0].mxu0
        %v3812 = vadd.f32 %v3684, %v3811
        %v3813 = vpop.f32.mrb[0].mxu0
        %3814 = vdwg.mxu0
        %v3815 = vlaneseq
        %v3816 = vand.u32 %v3815, 127
        %vm3817 = vcmp.eq.s32.totalorder %v3816, 0
        %3819 = vset.pattern.permute.xlu0 0
        %3820 = vperm.xlu0 %3819, %v724
        %v3821 = vpop.permute.xlu0 %3820
        %3824 = vset.pattern.permute.xlu0 0
        %3825 = vperm.xlu0 %3824, %v725
        %v3826 = vpop.permute.xlu0 %3825
        %3829 = vset.pattern.permute.xlu0 0
        %3830 = vperm.xlu0 %3829, %v726
        %v3831 = vpop.permute.xlu0 %3830
        %3834 = vset.pattern.permute.xlu0 0
        %3835 = vperm.xlu0 %3834, %v727
        %v3836 = vpop.permute.xlu0 %3835
        %3839 = vset.pattern.permute.xlu0 0
        %3840 = vperm.xlu0 %3839, %v728
        %v3841 = vpop.permute.xlu0 %3840
        %3844 = vset.pattern.permute.xlu0 0
        %3845 = vperm.xlu0 %3844, %v729
        %v3846 = vpop.permute.xlu0 %3845
        %3849 = vset.pattern.permute.xlu0 0
        %3850 = vperm.xlu0 %3849, %v730
        %v3851 = vpop.permute.xlu0 %3850
        %3854 = vset.pattern.permute.xlu0 0
        %3855 = vperm.xlu0 %3854, %v731
        %v3856 = vpop.permute.xlu0 %3855
        %3859 = vset.pattern.permute.xlu0 0
        %3860 = vperm.xlu0 %3859, %v732
        %v3861 = vpop.permute.xlu0 %3860
        %3864 = vset.pattern.permute.xlu0 0
        %3865 = vperm.xlu0 %3864, %v733
        %v3866 = vpop.permute.xlu0 %3865
        %3869 = vset.pattern.permute.xlu0 0
        %3870 = vperm.xlu0 %3869, %v734
        %v3871 = vpop.permute.xlu0 %3870
        %3874 = vset.pattern.permute.xlu0 0
        %3875 = vperm.xlu0 %3874, %v735
        %v3876 = vpop.permute.xlu0 %3875
        %3879 = vset.pattern.permute.xlu0 0
        %3880 = vperm.xlu0 %3879, %v736
        %v3881 = vpop.permute.xlu0 %3880
        %3884 = vset.pattern.permute.xlu0 0
        %3885 = vperm.xlu0 %3884, %v737
        %v3886 = vpop.permute.xlu0 %3885
        %3889 = vset.pattern.permute.xlu0 0
        %3890 = vperm.xlu0 %3889, %v738
        %v3891 = vpop.permute.xlu0 %3890
        %3894 = vset.pattern.permute.xlu0 0
        %3895 = vperm.xlu0 %3894, %v739
        %v3896 = vpop.permute.xlu0 %3895
        %v3898 = vsel %vm3817, %v3821, %v3861
        %v3899 = vsel %vm3817, %v3826, %v3866
        %v3900 = vsel %vm3817, %v3831, %v3871
        %v3901 = vsel %vm3817, %v3836, %v3876
        %v3902 = vsel %vm3817, %v3841, %v3881
        %v3903 = vsel %vm3817, %v3846, %v3886
        %v3904 = vsel %vm3817, %v3851, %v3891
        %v3905 = vsel %vm3817, %v3856, %v3896
        %v3906 = vadd.f32 %v3777, %v3898
        %v3907 = vadd.f32 %v3782, %v3899
        %v3908 = vadd.f32 %v3787, %v3900
        %v3909 = vadd.f32 %v3792, %v3901
        %v3910 = vadd.f32 %v3797, %v3902
        %v3911 = vadd.f32 %v3802, %v3903
        %v3912 = vadd.f32 %v3807, %v3904
        %v3913 = vadd.f32 %v3812, %v3905
        %v3914 = vmul.f32 %v3906, 8.0
        %v3915 = vmul.f32 %v3907, 8.0
        %v3916 = vmul.f32 %v3908, 8.0
        %v3917 = vmul.f32 %v3909, 8.0
        %v3918 = vmul.f32 %v3910, 8.0
        %v3919 = vmul.f32 %v3911, 8.0
        %v3920 = vmul.f32 %v3912, 8.0
        %v3921 = vmul.f32 %v3913, 8.0
        %v3922 = vmul.f32 %v3777, 1.442695
        %v3923 = vpow.pop %v3922
        %v3924 = vmul.f32 %v3782, 1.442695
        %v3925 = vpow.pop %v3924
        %v3926 = vmul.f32 %v3787, 1.442695
        %v3927 = vpow.pop %v3926
        %v3928 = vmul.f32 %v3792, 1.442695
        %v3929 = vpow.pop %v3928
        %v3930 = vmul.f32 %v3797, 1.442695
        %v3931 = vpow.pop %v3930
        %v3932 = vmul.f32 %v3802, 1.442695
        %v3933 = vpow.pop %v3932
        %v3934 = vmul.f32 %v3807, 1.442695
        %v3935 = vpow.pop %v3934
        %v3936 = vmul.f32 %v3812, 1.442695
        %v3937 = vpow.pop %v3936
        %v3938 = vmul.f32 %v3923, 8.0
        %v3939 = vmul.f32 %v3925, 8.0
        %v3940 = vmul.f32 %v3927, 8.0
        %v3941 = vmul.f32 %v3929, 8.0
        %v3942 = vmul.f32 %v3931, 8.0
        %v3943 = vmul.f32 %v3933, 8.0
        %v3944 = vmul.f32 %v3935, 8.0
        %v3945 = vmul.f32 %v3937, 8.0
        %v3946 = vxor.u32 %v3777, 2147483648
        %v3947 = vxor.u32 %v3782, 2147483648
        %v3948 = vxor.u32 %v3787, 2147483648
        %v3949 = vxor.u32 %v3792, 2147483648
        %v3950 = vxor.u32 %v3797, 2147483648
        %v3951 = vxor.u32 %v3802, 2147483648
        %v3952 = vxor.u32 %v3807, 2147483648
        %v3953 = vxor.u32 %v3812, 2147483648
        %v3954 = vmul.f32 %v3946, 1.442695
        %v3955 = vpow.pop %v3954
        %v3956 = vmul.f32 %v3947, 1.442695
        %v3957 = vpow.pop %v3956
        %v3958 = vmul.f32 %v3948, 1.442695
        %v3959 = vpow.pop %v3958
        %v3960 = vmul.f32 %v3949, 1.442695
        %v3961 = vpow.pop %v3960
        %v3962 = vmul.f32 %v3950, 1.442695
        %v3963 = vpow.pop %v3962
        %v3964 = vmul.f32 %v3951, 1.442695
        %v3965 = vpow.pop %v3964
        %v3966 = vmul.f32 %v3952, 1.442695
        %v3967 = vpow.pop %v3966
        %v3968 = vmul.f32 %v3953, 1.442695
        %v3969 = vpow.pop %v3968
        %v3970 = vadd.f32 %v3955, 1.0
        %v3971 = vadd.f32 %v3957, 1.0
        %v3972 = vadd.f32 %v3959, 1.0
        %v3973 = vadd.f32 %v3961, 1.0
        %v3974 = vadd.f32 %v3963, 1.0
        %v3975 = vadd.f32 %v3965, 1.0
        %v3976 = vadd.f32 %v3967, 1.0
        %v3977 = vadd.f32 %v3969, 1.0
        %v3978 = vrcp.pop %v3970
        %v3979 = vmul.f32 1.0, %v3978
        %v3980 = vrcp.pop %v3971
        %v3981 = vmul.f32 1.0, %v3980
        %v3982 = vrcp.pop %v3972
        %v3983 = vmul.f32 1.0, %v3982
        %v3984 = vrcp.pop %v3973
        %v3985 = vmul.f32 1.0, %v3984
        %v3986 = vrcp.pop %v3974
        %v3987 = vmul.f32 1.0, %v3986
        %v3988 = vrcp.pop %v3975
        %v3989 = vmul.f32 1.0, %v3988
        %v3990 = vrcp.pop %v3976
        %v3991 = vmul.f32 1.0, %v3990
        %v3992 = vrcp.pop %v3977
        %v3993 = vmul.f32 1.0, %v3992
        %vm3994 = vcmp.lt.s32.totalorder %v3816, 2
        %vm3995 = vcmp.lt.s32.totalorder %v3816, 26
        %v3996 = vsel %vm3995, %v3938, %v3979
        %v3997 = vsel %vm3995, %v3939, %v3981
        %v3998 = vsel %vm3995, %v3940, %v3983
        %v3999 = vsel %vm3995, %v3941, %v3985
        %v4000 = vsel %vm3995, %v3942, %v3987
        %v4001 = vsel %vm3995, %v3943, %v3989
        %v4002 = vsel %vm3995, %v3944, %v3991
        %v4003 = vsel %vm3995, %v3945, %v3993
        %v4004 = vsel %vm3994, %v3914, %v3996
        %v4005 = vsel %vm3994, %v3915, %v3997
        %v4006 = vsel %vm3994, %v3916, %v3998
        %v4007 = vsel %vm3994, %v3917, %v3999
        %v4008 = vsel %vm3994, %v3918, %v4000
        %v4009 = vsel %vm3994, %v3919, %v4001
        %v4010 = vsel %vm3994, %v3920, %v4002
        %v4011 = vsel %vm3994, %v3921, %v4003
        %4012 = vst.msk [vmem:[%s497] sm:$0xff] %vm2316, %v4004
        %4013 = vst.msk [vmem:[%s497 + $0x8] sm:$0xff] %vm2316, %v4005
        %4014 = vst.msk [vmem:[%s497 + $0x10] sm:$0xff] %vm2316, %v4006
        %4015 = vst.msk [vmem:[%s497 + $0x18] sm:$0xff] %vm2316, %v4007
        %4016 = vst.msk [vmem:[%s497 + $0x20] sm:$0xff] %vm2316, %v4008
        %4017 = vst.msk [vmem:[%s497 + $0x28] sm:$0xff] %vm2316, %v4009
        %4018 = vst.msk [vmem:[%s497 + $0x30] sm:$0xff] %vm2316, %v4010
        %4019 = vst.msk [vmem:[%s497 + $0x38] sm:$0xff] %vm2316, %v4011
        %p4020 = scmp.lt.s32.totalorder %s27, 1
        %s4021 = scalar_select %p4020, %s27, 1
        %s4022 = smul.addr %s4021, 8
        %s4023 = smul.addr %s4022, 8
        %s4024 = scalar_lea.vmem %s14, %s4023
        // Predicated region
        $region85: #{tpu_custom_call.1} parent=75 // pred_check
          %p4025 = pneg %p344
        $region86: #{tpu_custom_call.1} parent=75 // pred_check_branch
          %4027 = sbr.rel (%p4025) target = $region88
        $region87: #{tpu_custom_call.1} parent=75 // pred_region
          _
        $region88: #{tpu_custom_call.1} parent=75 // pred_fallthru
          _
      $region76: #{tpu_custom_call.1} parent=5 // pred_fallthru
        _
      %p4028 = scmp.le.s32.totalorder 2, %s22
      // Predicated region
      $region89: #{tpu_custom_call.1} parent=5 // pred_check
        %p4029 = pneg %p4028
      $region90: #{tpu_custom_call.1} parent=5 // pred_check_branch
        %4031 = sbr.rel (%p4029) target = $region92
      $region91: #{tpu_custom_call.1} parent=5 // pred_region
        %s4032 = ssub.s32 %s22, 2
        // Predicated region
        $region93: #{tpu_custom_call.1} parent=91 // pred_check
          %p4033 = pneg %p350
        $region94: #{tpu_custom_call.1} parent=91 // pred_check_branch
          %4035 = sbr.rel (%p4033) target = $region96
        $region95: #{tpu_custom_call.1} parent=91 // pred_region
          %p4036 = scmp.lt.s32.totalorder %s28, 1
          %s4037 = scalar_select %p4036, %s28, 1
          %s4038 = smul.addr %s4037, 8
          %s4039 = smul.addr %s4038, 8
          %s4040 = scalar_lea.vmem %s14, %s4039
        $region96: #{tpu_custom_call.1} parent=91 // pred_fallthru
          _
      $region92: #{tpu_custom_call.1} parent=5 // pred_fallthru
        _
    $region6: #{tpu_custom_call.1} parent=1 // loop_footer
      %s26 = sadd.s32 1, %s22
    $region7: #{tpu_custom_call.1} parent=1 // loop_footer_branch
      %21 = sbr.rel target = $region3
    $region8: #{tpu_custom_call.1} parent=1 // loop_exit
      _
    %4041 = vsyncpa [#allocation3], 1
    %s4042 = scalar_lea.sflag [#allocation3], 1
    %4043 = vsyncpa %s4042, 1
    %4044 = vsyncpa [#allocation5], 1

</llo_original>
